<compile_context>
chip_gen: v5e
topology: v5e:2x2
jax: 0.10.0
libtpu: 0.0.40
codegen_flags: <defaults>
</compile_context>

<pallas_src>
import functools

import jax
import jax.numpy as jnp
from jax.experimental import pallas as pl
from jax.experimental.pallas import tpu as pltpu

FEAT_C = 512   # resnet18 final feature channels
HIDDEN = 32
OUT = 2


def match_head_kernel(img_ref, aud_ref, w1i_ref, w1a_ref, b1_ref,
                      w2_ref, b2_ref, out_ref):
    # AdaptiveAvgPool2d((1,1)) + flatten + concat + Linear(1024, 32):
    # the spatial mean is pre-folded into the expanded weight halves, so this
    # is just two MXU matmuls over the raw (TB, C*H*W) feature blocks.
    h = (jnp.dot(img_ref[...], w1i_ref[...], preferred_element_type=jnp.float32)
         + jnp.dot(aud_ref[...], w1a_ref[...], preferred_element_type=jnp.float32)
         + b1_ref[...])                                           # (TB, 32)
    h = jnp.maximum(h, 0.0)                                       # ReLU(inplace=True)
    out_ref[...] = (jnp.dot(h, w2_ref[...], preferred_element_type=jnp.float32)
                    + b2_ref[...]).astype(out_ref.dtype)          # Linear(32, 2)


def prepare_params(params, H, W, feat_dtype=jnp.float32):
    """One-time weight preprocessing (hoist out of the per-call hot path).

    Folds the AdaptiveAvgPool2d mean (1/(H*W)) and the NCHW (c, h, w)
    flattening order into expanded halves of the first Linear weight so the
    kernel never transposes or reduces the feature maps.
    """
    hw = H * W
    w1, b1, w2, b2 = params["w1"], params["b1"], params["w2"], params["b2"]
    # torch nn.Linear stores W as (out, in) and computes x @ W.T + b.
    w1i = jnp.asarray(w1[:, :FEAT_C]).T                 # (512, 32) image half
    w1a = jnp.asarray(w1[:, FEAT_C:]).T                 # (512, 32) audio half
    # Row c*HW + s of the expanded weight is w1[c]/HW -> matches the (c,h,w)
    # flattening of the NCHW feature map and implements the spatial mean.
    w1i_e = (jnp.repeat(w1i, hw, axis=0) / hw).astype(feat_dtype)   # (512*HW, 32)
    w1a_e = (jnp.repeat(w1a, hw, axis=0) / hw).astype(feat_dtype)   # (512*HW, 32)
    return {
        "w1i": w1i_e,
        "w1a": w1a_e,
        "b1": jnp.asarray(b1, jnp.float32).reshape(1, HIDDEN),
        "w2": jnp.asarray(w2, jnp.float32).T,                        # (32, 2)
        "b2": jnp.asarray(b2, jnp.float32).reshape(1, OUT),
    }


@functools.partial(jax.jit, static_argnames=("tb",))
def match_net_forward(image_feat_nchw, audio_feat_nchw, prepared, *, tb=32):
    """image_feat_nchw / audio_feat_nchw: (B, 512, H, W) float32 or bfloat16."""
    B, C, H, W = image_feat_nchw.shape
    assert C == FEAT_C
    chw = C * H * W

    # NCHW -> (B, C*H*W) is a contiguous (free) reshape; no HBM transpose.
    img = image_feat_nchw.reshape(B, chw)
    aud = audio_feat_nchw.reshape(B, chw)

    w1i, w1a = prepared["w1i"], prepared["w1a"]
    b1, w2, b2 = prepared["b1"], prepared["w2"], prepared["b2"]

    # Batch tile: one tile == whole batch when small; otherwise a sublane-
    # aligned tile so the feature blocks double-buffer through VMEM.
    TB = min(tb, B)
    if TB < B:
        TB = max(8, (TB // 8) * 8)            # (8, 128) sublane alignment
    grid_b = pl.cdiv(B, TB)
    Bp = grid_b * TB
    if Bp != B:
        pad = ((0, Bp - B), (0, 0))
        img = jnp.pad(img, pad)
        aud = jnp.pad(aud, pad)

    feat_bytes = img.dtype.itemsize
    w_bytes = w1i.dtype.itemsize
    # 2 feature inputs x 2 pipeline buffers + resident weight halves + slack.
    vmem_needed = (4 * TB * chw * feat_bytes
                   + 4 * chw * HIDDEN * w_bytes
                   + (2 << 20))
    # Raise above the 16 MiB v5e default if needed; stay under v7x's 64 MiB.
    vmem_limit = int(min(max(vmem_needed, 16 * 2**20), 48 * 2**20))

    cost = pl.CostEstimate(
        flops=2 * Bp * (2 * chw) * HIDDEN + 2 * Bp * HIDDEN * OUT,
        transcendentals=0,
        bytes_accessed=(2 * Bp * chw * feat_bytes
                        + 2 * chw * HIDDEN * w_bytes
                        + Bp * OUT * 4),
    )

    out = pl.pallas_call(
        match_head_kernel,
        out_shape=jax.ShapeDtypeStruct((Bp, OUT), jnp.float32),
        grid_spec=pltpu.PrefetchScalarGridSpec(
            num_scalar_prefetch=0,
            grid=(grid_b,),
            in_specs=[
                pl.BlockSpec((TB, chw), lambda b: (b, 0)),        # image feats
                pl.BlockSpec((TB, chw), lambda b: (b, 0)),        # audio feats
                pl.BlockSpec((chw, HIDDEN), lambda b: (0, 0)),    # w1 image half (resident)
                pl.BlockSpec((chw, HIDDEN), lambda b: (0, 0)),    # w1 audio half (resident)
                pl.BlockSpec((1, HIDDEN), lambda b: (0, 0)),      # b1
                pl.BlockSpec((HIDDEN, OUT), lambda b: (0, 0)),    # w2
                pl.BlockSpec((1, OUT), lambda b: (0, 0)),         # b2
            ],
            out_specs=pl.BlockSpec((TB, OUT), lambda b: (b, 0)),
        ),
        compiler_params=pltpu.CompilerParams(
            dimension_semantics=("parallel",),
            vmem_limit_bytes=vmem_limit,
        ),
        cost_estimate=cost,
    )(img, aud, w1i, w1a, b1, w2, b2)
    return out[:B]


def _reference(image_feat_nchw, audio_feat_nchw, params):
    img = jnp.mean(image_feat_nchw.astype(jnp.float32), axis=(2, 3))
    aud = jnp.mean(audio_feat_nchw.astype(jnp.float32), axis=(2, 3))
    x = jnp.concatenate([img, aud], axis=1)
    h = jnp.maximum(x @ params["w1"].T + params["b1"], 0.0)
    return h @ params["w2"].T + params["b2"]


if __name__ == "__main__":
    key = jax.random.PRNGKey(0)
    k_img, k_aud, k_w1, k_b1, k_w2, k_b2 = jax.random.split(key, 6)

    H, W = 4, 4  # small spatial size of the truncated-resnet feature map

    # Deterministic parameters for Linear(1024, 32) and Linear(32, 2).
    params = {
        "w1": jax.random.normal(k_w1, (HIDDEN, 2 * FEAT_C), jnp.float32) * 0.03,
        "b1": jax.random.normal(k_b1, (HIDDEN,), jnp.float32) * 0.03,
        "w2": jax.random.normal(k_w2, (OUT, HIDDEN), jnp.float32) * 0.1,
        "b2": jax.random.normal(k_b2, (OUT,), jnp.float32) * 0.1,
    }
    prepared = prepare_params(params, H, W, feat_dtype=jnp.float32)

    # Case 1: single-tile path (B=2, whole batch in one block).
    B = 2
    image_feat = jax.random.normal(k_img, (B, FEAT_C, H, W), jnp.float32)
    audio_feat = jax.random.normal(k_aud, (B, FEAT_C, H, W), jnp.float32)
    out = jax.block_until_ready(match_net_forward(image_feat, audio_feat, prepared))
    ref = _reference(image_feat, audio_feat, params)
    assert out.shape == (B, OUT), out.shape
    assert jnp.allclose(out, ref, atol=2e-3, rtol=2e-3), (out, ref)

    # Case 2: gridded/pipelined path (B=16, batch tile of 8 -> 2 grid steps).
    B2 = 16
    image_feat2 = jax.random.normal(k_img, (B2, FEAT_C, H, W), jnp.float32)
    audio_feat2 = jax.random.normal(k_aud, (B2, FEAT_C, H, W), jnp.float32)
    out2 = jax.block_until_ready(
        match_net_forward(image_feat2, audio_feat2, prepared, tb=8))
    ref2 = _reference(image_feat2, audio_feat2, params)
    assert out2.shape == (B2, OUT), out2.shape
    assert jnp.allclose(out2, ref2, atol=2e-3, rtol=2e-3), (out2, ref2)

    print("KERNEL_OK")
</pallas_src>

<mosaic_0001>
module attributes {stable_mosaic.version = 11 : i64} {
  func.func @match_head_kernel(%arg0: i32, %arg1: memref<2x8192xf32, #tpu.memory_space<vmem>>, %arg2: memref<2x8192xf32, #tpu.memory_space<vmem>>, %arg3: memref<8192x32xf32, #tpu.memory_space<vmem>>, %arg4: memref<8192x32xf32, #tpu.memory_space<vmem>>, %arg5: memref<1x32xf32, #tpu.memory_space<vmem>>, %arg6: memref<32x2xf32, #tpu.memory_space<vmem>>, %arg7: memref<1x2xf32, #tpu.memory_space<vmem>>, %arg8: memref<2x2xf32, #tpu.memory_space<vmem>>) attributes {dimension_semantics = [#tpu.dimension_semantics<parallel>], iteration_bounds = array<i64: 1>, scalar_prefetch = 0 : i64, scratch_operands = 0 : i64, tpu.core_type = #tpu.core_type<tc>, window_params = [{transform_indices = @transform_0, window_bounds = array<i64: 2, 8192>}, {transform_indices = @transform_1, window_bounds = array<i64: 2, 8192>}, {pipeline_mode = #tpu.pipeline_mode<synchronous>, transform_indices = @transform_2, window_bounds = array<i64: 8192, 32>}, {pipeline_mode = #tpu.pipeline_mode<synchronous>, transform_indices = @transform_3, window_bounds = array<i64: 8192, 32>}, {pipeline_mode = #tpu.pipeline_mode<synchronous>, transform_indices = @transform_4, window_bounds = array<i64: 1, 32>}, {pipeline_mode = #tpu.pipeline_mode<synchronous>, transform_indices = @transform_5, window_bounds = array<i64: 32, 2>}, {pipeline_mode = #tpu.pipeline_mode<synchronous>, transform_indices = @transform_6, window_bounds = array<i64: 1, 2>}, {transform_indices = @transform_7, window_bounds = array<i64: 2, 2>}]} {
    %c0 = arith.constant 0 : index
    %c0_0 = arith.constant 0 : index
    %0 = vector.load %arg1[%c0, %c0_0] : memref<2x8192xf32, #tpu.memory_space<vmem>>, vector<2x8192xf32>
    %c0_1 = arith.constant 0 : index
    %c0_2 = arith.constant 0 : index
    %1 = vector.load %arg3[%c0_1, %c0_2] : memref<8192x32xf32, #tpu.memory_space<vmem>>, vector<8192x32xf32>
    %cst = arith.constant dense<0.000000e+00> : vector<2x32xf32>
    %2 = tpu.matmul %0, %1, %cst {dimension_numbers = #tpu.dot_dimension_numbers<[1], [0], [0], [1], [0, 0, 1, 1], [], []>} : vector<2x8192xf32>, vector<8192x32xf32>, vector<2x32xf32> -> vector<2x32xf32>
    %c0_3 = arith.constant 0 : index
    %c0_4 = arith.constant 0 : index
    %3 = vector.load %arg2[%c0_3, %c0_4] : memref<2x8192xf32, #tpu.memory_space<vmem>>, vector<2x8192xf32>
    %c0_5 = arith.constant 0 : index
    %c0_6 = arith.constant 0 : index
    %4 = vector.load %arg4[%c0_5, %c0_6] : memref<8192x32xf32, #tpu.memory_space<vmem>>, vector<8192x32xf32>
    %cst_7 = arith.constant dense<0.000000e+00> : vector<2x32xf32>
    %5 = tpu.matmul %3, %4, %cst_7 {dimension_numbers = #tpu.dot_dimension_numbers<[1], [0], [0], [1], [0, 0, 1, 1], [], []>} : vector<2x8192xf32>, vector<8192x32xf32>, vector<2x32xf32> -> vector<2x32xf32>
    %6 = arith.addf %2, %5 : vector<2x32xf32>
    %c0_8 = arith.constant 0 : index
    %c0_9 = arith.constant 0 : index
    %7 = vector.load %arg5[%c0_8, %c0_9] : memref<1x32xf32, #tpu.memory_space<vmem>>, vector<1x32xf32>
    %8 = vector.broadcast %7 : vector<1x32xf32> to vector<2x32xf32>
    %9 = arith.addf %6, %8 : vector<2x32xf32>
    %cst_10 = arith.constant 0.000000e+00 : f32
    %10 = vector.broadcast %cst_10 : f32 to vector<2x32xf32>
    %11 = arith.maximumf %9, %10 : vector<2x32xf32>
    %c0_11 = arith.constant 0 : index
    %c0_12 = arith.constant 0 : index
    %12 = vector.load %arg6[%c0_11, %c0_12] : memref<32x2xf32, #tpu.memory_space<vmem>>, vector<32x2xf32>
    %cst_13 = arith.constant dense<0.000000e+00> : vector<2x2xf32>
    %13 = tpu.matmul %11, %12, %cst_13 {dimension_numbers = #tpu.dot_dimension_numbers<[1], [0], [0], [1], [0, 0, 1, 1], [], []>} : vector<2x32xf32>, vector<32x2xf32>, vector<2x2xf32> -> vector<2x2xf32>
    %c0_14 = arith.constant 0 : index
    %c0_15 = arith.constant 0 : index
    %14 = vector.load %arg7[%c0_14, %c0_15] : memref<1x2xf32, #tpu.memory_space<vmem>>, vector<1x2xf32>
    %15 = vector.broadcast %14 : vector<1x2xf32> to vector<2x2xf32>
    %16 = arith.addf %13, %15 : vector<2x2xf32>
    %c0_16 = arith.constant 0 : index
    %c0_17 = arith.constant 0 : index
    %17 = vector.load %arg8[%c0_16, %c0_17] : memref<2x2xf32, #tpu.memory_space<vmem>>, vector<2x2xf32>
    tpu.vector_store %arg8[%c0_16, %c0_17], %16 {strides = array<i32>} : memref<2x2xf32, #tpu.memory_space<vmem>>, vector<2x2xf32>,
    return
  }
  func.func @transform_0(%arg0: i32) -> (i32, i32) {
    %c0_i32 = arith.constant 0 : i32
    %c0_i32_0 = arith.constant 0 : i32
    return %arg0, %c0_i32 : i32, i32
  }
  func.func @transform_1(%arg0: i32) -> (i32, i32) {
    %c0_i32 = arith.constant 0 : i32
    %c0_i32_0 = arith.constant 0 : i32
    return %arg0, %c0_i32 : i32, i32
  }
  func.func @transform_2(%arg0: i32) -> (i32, i32) {
    %c0_i32 = arith.constant 0 : i32
    %c0_i32_0 = arith.constant 0 : i32
    %c0_i32_1 = arith.constant 0 : i32
    return %c0_i32, %c0_i32_0 : i32, i32
  }
  func.func @transform_3(%arg0: i32) -> (i32, i32) {
    %c0_i32 = arith.constant 0 : i32
    %c0_i32_0 = arith.constant 0 : i32
    %c0_i32_1 = arith.constant 0 : i32
    return %c0_i32, %c0_i32_0 : i32, i32
  }
  func.func @transform_4(%arg0: i32) -> (i32, i32) {
    %c0_i32 = arith.constant 0 : i32
    %c0_i32_0 = arith.constant 0 : i32
    %c0_i32_1 = arith.constant 0 : i32
    return %c0_i32, %c0_i32_0 : i32, i32
  }
  func.func @transform_5(%arg0: i32) -> (i32, i32) {
    %c0_i32 = arith.constant 0 : i32
    %c0_i32_0 = arith.constant 0 : i32
    %c0_i32_1 = arith.constant 0 : i32
    return %c0_i32, %c0_i32_0 : i32, i32
  }
  func.func @transform_6(%arg0: i32) -> (i32, i32) {
    %c0_i32 = arith.constant 0 : i32
    %c0_i32_0 = arith.constant 0 : i32
    %c0_i32_1 = arith.constant 0 : i32
    return %c0_i32, %c0_i32_0 : i32, i32
  }
  func.func @transform_7(%arg0: i32) -> (i32, i32) {
    %c0_i32 = arith.constant 0 : i32
    %c0_i32_0 = arith.constant 0 : i32
    return %arg0, %c0_i32 : i32, i32
  }
}

</mosaic_0001>

<llo_original>
// kernel: match_net_forward.1
$region0: #{match_net_forward.1}
  #allocation0 [shape = 'u32[]', space=smem, size = 0x4, offset = 0x4, fixed_abs, tag = 'smem constant byte address 0x4 - core index']
  #allocation1 [shape = 'u32[72,128]{1,0:T(1,128)}', space=vmem, size = 0x9000, scoped, tag = 'internal scratch']
  %s0 = inlined_call_operand.vmem [shape: f32[2,8192], index: 0, kind: input, shape index: {}]
  %s1 = inlined_call_operand.vmem [shape: f32[2,8192], index: 1, kind: input, shape index: {}]
  %s2 = inlined_call_operand.vmem [shape: f32[8192,32], index: 2, kind: input, shape index: {}]
  %s3 = inlined_call_operand.vmem [shape: f32[8192,32], index: 3, kind: input, shape index: {}]
  %s4 = inlined_call_operand.vmem [shape: f32[1,32], index: 4, kind: input, shape index: {}]
  %s5 = inlined_call_operand.vmem [shape: f32[32,2], index: 5, kind: input, shape index: {}]
  %s6 = inlined_call_operand.vmem [shape: f32[1,2], index: 6, kind: input, shape index: {}]
  %s7 = inlined_call_operand.hbm [shape: f32[2,2], index: 7, kind: output, shape index: {}]
  %s8 = sld [smem:[#allocation0]]
  $region38: #{match_net_forward.1} parent=0
    _
  %s10 = ssub.s32 1, %s8
  %s11 = scalar_select 0, %s10, %s8
  $region1: #{match_net_forward.1} parent=0
    #allocation2 [shape = 'u8[1024]{0}', space=vmem, size = 0x400, scoped, tag = 'output window, operand 0, single buffered']
    #allocation3 [shape = 's32[1]{0}', space=sflag, size = 0x4, scoped, tag = 'scoped memory for match_net_forward.1']
    %12 = vsyncpa [#allocation3], 0
    // Predicated region
    $region2: #{match_net_forward.1} parent=1 // pred_check
      _
    $region3: #{match_net_forward.1} parent=1 // pred_check_branch
      %14 = sbr.rel (0) target = $region5
    $region4: #{match_net_forward.1} parent=1 // pred_region
      _
    $region5: #{match_net_forward.1} parent=1 // pred_fallthru
      _
    // Predicated region
    $region6: #{match_net_forward.1} parent=1 // pred_check
      _
    $region7: #{match_net_forward.1} parent=1 // pred_check_branch
      %16 = sbr.rel (0) target = $region9
    $region8: #{match_net_forward.1} parent=1 // pred_region
      _
    $region9: #{match_net_forward.1} parent=1 // pred_fallthru
      _
    // Predicated region
    $region10: #{match_net_forward.1} parent=1 // pred_check
      _
    $region11: #{match_net_forward.1} parent=1 // pred_check_branch
      %18 = sbr.rel (0) target = $region13
    $region12: #{match_net_forward.1} parent=1 // pred_region
      _
    $region13: #{match_net_forward.1} parent=1 // pred_fallthru
      _
    // Predicated region
    $region14: #{match_net_forward.1} parent=1 // pred_check
      _
    $region15: #{match_net_forward.1} parent=1 // pred_check_branch
      %20 = sbr.rel (0) target = $region17
    $region16: #{match_net_forward.1} parent=1 // pred_region
      _
    $region17: #{match_net_forward.1} parent=1 // pred_fallthru
      _
    // Predicated region
    $region18: #{match_net_forward.1} parent=1 // pred_check
      _
    $region19: #{match_net_forward.1} parent=1 // pred_check_branch
      %22 = sbr.rel (0) target = $region21
    $region20: #{match_net_forward.1} parent=1 // pred_region
      _
    $region21: #{match_net_forward.1} parent=1 // pred_fallthru
      _
    // Predicated region
    $region22: #{match_net_forward.1} parent=1 // pred_check
      _
    $region23: #{match_net_forward.1} parent=1 // pred_check_branch
      %24 = sbr.rel (0) target = $region25
    $region24: #{match_net_forward.1} parent=1 // pred_region
      _
    $region25: #{match_net_forward.1} parent=1 // pred_fallthru
      _
    // Predicated region
    $region26: #{match_net_forward.1} parent=1 // pred_check
      _
    $region27: #{match_net_forward.1} parent=1 // pred_check_branch
      %26 = sbr.rel (0) target = $region29
    $region28: #{match_net_forward.1} parent=1 // pred_region
      _
    $region29: #{match_net_forward.1} parent=1 // pred_fallthru
      _
    %v27 = vld [vmem:[%s0] sm:$0xff]
    %v28 = vld [vmem:[%s0 + $0x8] sm:$0xff]
    %v29 = vld [vmem:[%s0 + $0x10] sm:$0xff]
    %v30 = vld [vmem:[%s0 + $0x18] sm:$0xff]
    %v31 = vld [vmem:[%s0 + $0x20] sm:$0xff]
    %v32 = vld [vmem:[%s0 + $0x28] sm:$0xff]
    %v33 = vld [vmem:[%s0 + $0x30] sm:$0xff]
    %v34 = vld [vmem:[%s0 + $0x38] sm:$0xff]
    %v35 = vld [vmem:[%s0 + $0x40] sm:$0xff]
    %v36 = vld [vmem:[%s0 + $0x48] sm:$0xff]
    %v37 = vld [vmem:[%s0 + $0x50] sm:$0xff]
    %v38 = vld [vmem:[%s0 + $0x58] sm:$0xff]
    %v39 = vld [vmem:[%s0 + $0x60] sm:$0xff]
    %v40 = vld [vmem:[%s0 + $0x68] sm:$0xff]
    %v41 = vld [vmem:[%s0 + $0x70] sm:$0xff]
    %v42 = vld [vmem:[%s0 + $0x78] sm:$0xff]
    %v43 = vld [vmem:[%s2] sm:$0xff]
    %v44 = vld [vmem:[%s2 + $0x8] sm:$0xff]
    %v45 = vld [vmem:[%s2 + $0x10] sm:$0xff]
    %v46 = vld [vmem:[%s2 + $0x18] sm:$0xff]
    %v47 = vld [vmem:[%s2 + $0x20] sm:$0xff]
    %v48 = vld [vmem:[%s2 + $0x28] sm:$0xff]
    %v49 = vld [vmem:[%s2 + $0x30] sm:$0xff]
    %v50 = vld [vmem:[%s2 + $0x38] sm:$0xff]
    %v51 = vld [vmem:[%s2 + $0x40] sm:$0xff]
    %v52 = vld [vmem:[%s2 + $0x48] sm:$0xff]
    %v53 = vld [vmem:[%s2 + $0x50] sm:$0xff]
    %v54 = vld [vmem:[%s2 + $0x58] sm:$0xff]
    %v55 = vld [vmem:[%s2 + $0x60] sm:$0xff]
    %v56 = vld [vmem:[%s2 + $0x68] sm:$0xff]
    %v57 = vld [vmem:[%s2 + $0x70] sm:$0xff]
    %v58 = vld [vmem:[%s2 + $0x78] sm:$0xff]
    %v59 = vld [vmem:[%s2 + $0x80] sm:$0xff]
    %v60 = vld [vmem:[%s2 + $0x88] sm:$0xff]
    %v61 = vld [vmem:[%s2 + $0x90] sm:$0xff]
    %v62 = vld [vmem:[%s2 + $0x98] sm:$0xff]
    %v63 = vld [vmem:[%s2 + $0xa0] sm:$0xff]
    %v64 = vld [vmem:[%s2 + $0xa8] sm:$0xff]
    %v65 = vld [vmem:[%s2 + $0xb0] sm:$0xff]
    %v66 = vld [vmem:[%s2 + $0xb8] sm:$0xff]
    %v67 = vld [vmem:[%s2 + $0xc0] sm:$0xff]
    %v68 = vld [vmem:[%s2 + $0xc8] sm:$0xff]
    %v69 = vld [vmem:[%s2 + $0xd0] sm:$0xff]
    %v70 = vld [vmem:[%s2 + $0xd8] sm:$0xff]
    %v71 = vld [vmem:[%s2 + $0xe0] sm:$0xff]
    %v72 = vld [vmem:[%s2 + $0xe8] sm:$0xff]
    %v73 = vld [vmem:[%s2 + $0xf0] sm:$0xff]
    %v74 = vld [vmem:[%s2 + $0xf8] sm:$0xff]
    %v75 = vld [vmem:[%s2 + $0x100] sm:$0xff]
    %v76 = vld [vmem:[%s2 + $0x108] sm:$0xff]
    %v77 = vld [vmem:[%s2 + $0x110] sm:$0xff]
    %v78 = vld [vmem:[%s2 + $0x118] sm:$0xff]
    %v79 = vld [vmem:[%s2 + $0x120] sm:$0xff]
    %v80 = vld [vmem:[%s2 + $0x128] sm:$0xff]
    %v81 = vld [vmem:[%s2 + $0x130] sm:$0xff]
    %v82 = vld [vmem:[%s2 + $0x138] sm:$0xff]
    %v83 = vld [vmem:[%s2 + $0x140] sm:$0xff]
    %v84 = vld [vmem:[%s2 + $0x148] sm:$0xff]
    %v85 = vld [vmem:[%s2 + $0x150] sm:$0xff]
    %v86 = vld [vmem:[%s2 + $0x158] sm:$0xff]
    %v87 = vld [vmem:[%s2 + $0x160] sm:$0xff]
    %v88 = vld [vmem:[%s2 + $0x168] sm:$0xff]
    %v89 = vld [vmem:[%s2 + $0x170] sm:$0xff]
    %v90 = vld [vmem:[%s2 + $0x178] sm:$0xff]
    %v91 = vld [vmem:[%s2 + $0x180] sm:$0xff]
    %v92 = vld [vmem:[%s2 + $0x188] sm:$0xff]
    %v93 = vld [vmem:[%s2 + $0x190] sm:$0xff]
    %v94 = vld [vmem:[%s2 + $0x198] sm:$0xff]
    %v95 = vld [vmem:[%s2 + $0x1a0] sm:$0xff]
    %v96 = vld [vmem:[%s2 + $0x1a8] sm:$0xff]
    %v97 = vld [vmem:[%s2 + $0x1b0] sm:$0xff]
    %v98 = vld [vmem:[%s2 + $0x1b8] sm:$0xff]
    %v99 = vld [vmem:[%s2 + $0x1c0] sm:$0xff]
    %v100 = vld [vmem:[%s2 + $0x1c8] sm:$0xff]
    %v101 = vld [vmem:[%s2 + $0x1d0] sm:$0xff]
    %v102 = vld [vmem:[%s2 + $0x1d8] sm:$0xff]
    %v103 = vld [vmem:[%s2 + $0x1e0] sm:$0xff]
    %v104 = vld [vmem:[%s2 + $0x1e8] sm:$0xff]
    %v105 = vld [vmem:[%s2 + $0x1f0] sm:$0xff]
    %v106 = vld [vmem:[%s2 + $0x1f8] sm:$0xff]
    %v107 = vld [vmem:[%s2 + $0x200] sm:$0xff]
    %v108 = vld [vmem:[%s2 + $0x208] sm:$0xff]
    %v109 = vld [vmem:[%s2 + $0x210] sm:$0xff]
    %v110 = vld [vmem:[%s2 + $0x218] sm:$0xff]
    %v111 = vld [vmem:[%s2 + $0x220] sm:$0xff]
    %v112 = vld [vmem:[%s2 + $0x228] sm:$0xff]
    %v113 = vld [vmem:[%s2 + $0x230] sm:$0xff]
    %v114 = vld [vmem:[%s2 + $0x238] sm:$0xff]
    %v115 = vld [vmem:[%s2 + $0x240] sm:$0xff]
    %v116 = vld [vmem:[%s2 + $0x248] sm:$0xff]
    %v117 = vld [vmem:[%s2 + $0x250] sm:$0xff]
    %v118 = vld [vmem:[%s2 + $0x258] sm:$0xff]
    %v119 = vld [vmem:[%s2 + $0x260] sm:$0xff]
    %v120 = vld [vmem:[%s2 + $0x268] sm:$0xff]
    %v121 = vld [vmem:[%s2 + $0x270] sm:$0xff]
    %v122 = vld [vmem:[%s2 + $0x278] sm:$0xff]
    %v123 = vld [vmem:[%s2 + $0x280] sm:$0xff]
    %v124 = vld [vmem:[%s2 + $0x288] sm:$0xff]
    %v125 = vld [vmem:[%s2 + $0x290] sm:$0xff]
    %v126 = vld [vmem:[%s2 + $0x298] sm:$0xff]
    %v127 = vld [vmem:[%s2 + $0x2a0] sm:$0xff]
    %v128 = vld [vmem:[%s2 + $0x2a8] sm:$0xff]
    %v129 = vld [vmem:[%s2 + $0x2b0] sm:$0xff]
    %v130 = vld [vmem:[%s2 + $0x2b8] sm:$0xff]
    %v131 = vld [vmem:[%s2 + $0x2c0] sm:$0xff]
    %v132 = vld [vmem:[%s2 + $0x2c8] sm:$0xff]
    %v133 = vld [vmem:[%s2 + $0x2d0] sm:$0xff]
    %v134 = vld [vmem:[%s2 + $0x2d8] sm:$0xff]
    %v135 = vld [vmem:[%s2 + $0x2e0] sm:$0xff]
    %v136 = vld [vmem:[%s2 + $0x2e8] sm:$0xff]
    %v137 = vld [vmem:[%s2 + $0x2f0] sm:$0xff]
    %v138 = vld [vmem:[%s2 + $0x2f8] sm:$0xff]
    %v139 = vld [vmem:[%s2 + $0x300] sm:$0xff]
    %v140 = vld [vmem:[%s2 + $0x308] sm:$0xff]
    %v141 = vld [vmem:[%s2 + $0x310] sm:$0xff]
    %v142 = vld [vmem:[%s2 + $0x318] sm:$0xff]
    %v143 = vld [vmem:[%s2 + $0x320] sm:$0xff]
    %v144 = vld [vmem:[%s2 + $0x328] sm:$0xff]
    %v145 = vld [vmem:[%s2 + $0x330] sm:$0xff]
    %v146 = vld [vmem:[%s2 + $0x338] sm:$0xff]
    %v147 = vld [vmem:[%s2 + $0x340] sm:$0xff]
    %v148 = vld [vmem:[%s2 + $0x348] sm:$0xff]
    %v149 = vld [vmem:[%s2 + $0x350] sm:$0xff]
    %v150 = vld [vmem:[%s2 + $0x358] sm:$0xff]
    %v151 = vld [vmem:[%s2 + $0x360] sm:$0xff]
    %v152 = vld [vmem:[%s2 + $0x368] sm:$0xff]
    %v153 = vld [vmem:[%s2 + $0x370] sm:$0xff]
    %v154 = vld [vmem:[%s2 + $0x378] sm:$0xff]
    %v155 = vld [vmem:[%s2 + $0x380] sm:$0xff]
    %v156 = vld [vmem:[%s2 + $0x388] sm:$0xff]
    %v157 = vld [vmem:[%s2 + $0x390] sm:$0xff]
    %v158 = vld [vmem:[%s2 + $0x398] sm:$0xff]
    %v159 = vld [vmem:[%s2 + $0x3a0] sm:$0xff]
    %v160 = vld [vmem:[%s2 + $0x3a8] sm:$0xff]
    %v161 = vld [vmem:[%s2 + $0x3b0] sm:$0xff]
    %v162 = vld [vmem:[%s2 + $0x3b8] sm:$0xff]
    %v163 = vld [vmem:[%s2 + $0x3c0] sm:$0xff]
    %v164 = vld [vmem:[%s2 + $0x3c8] sm:$0xff]
    %v165 = vld [vmem:[%s2 + $0x3d0] sm:$0xff]
    %v166 = vld [vmem:[%s2 + $0x3d8] sm:$0xff]
    %v167 = vld [vmem:[%s2 + $0x3e0] sm:$0xff]
    %v168 = vld [vmem:[%s2 + $0x3e8] sm:$0xff]
    %v169 = vld [vmem:[%s2 + $0x3f0] sm:$0xff]
    %v170 = vld [vmem:[%s2 + $0x3f8] sm:$0xff]
    %v171 = vld [vmem:[%s2 + $0x400] sm:$0xff]
    %v172 = vld [vmem:[%s2 + $0x408] sm:$0xff]
    %v173 = vld [vmem:[%s2 + $0x410] sm:$0xff]
    %v174 = vld [vmem:[%s2 + $0x418] sm:$0xff]
    %v175 = vld [vmem:[%s2 + $0x420] sm:$0xff]
    %v176 = vld [vmem:[%s2 + $0x428] sm:$0xff]
    %v177 = vld [vmem:[%s2 + $0x430] sm:$0xff]
    %v178 = vld [vmem:[%s2 + $0x438] sm:$0xff]
    %v179 = vld [vmem:[%s2 + $0x440] sm:$0xff]
    %v180 = vld [vmem:[%s2 + $0x448] sm:$0xff]
    %v181 = vld [vmem:[%s2 + $0x450] sm:$0xff]
    %v182 = vld [vmem:[%s2 + $0x458] sm:$0xff]
    %v183 = vld [vmem:[%s2 + $0x460] sm:$0xff]
    %v184 = vld [vmem:[%s2 + $0x468] sm:$0xff]
    %v185 = vld [vmem:[%s2 + $0x470] sm:$0xff]
    %v186 = vld [vmem:[%s2 + $0x478] sm:$0xff]
    %v187 = vld [vmem:[%s2 + $0x480] sm:$0xff]
    %v188 = vld [vmem:[%s2 + $0x488] sm:$0xff]
    %v189 = vld [vmem:[%s2 + $0x490] sm:$0xff]
    %v190 = vld [vmem:[%s2 + $0x498] sm:$0xff]
    %v191 = vld [vmem:[%s2 + $0x4a0] sm:$0xff]
    %v192 = vld [vmem:[%s2 + $0x4a8] sm:$0xff]
    %v193 = vld [vmem:[%s2 + $0x4b0] sm:$0xff]
    %v194 = vld [vmem:[%s2 + $0x4b8] sm:$0xff]
    %v195 = vld [vmem:[%s2 + $0x4c0] sm:$0xff]
    %v196 = vld [vmem:[%s2 + $0x4c8] sm:$0xff]
    %v197 = vld [vmem:[%s2 + $0x4d0] sm:$0xff]
    %v198 = vld [vmem:[%s2 + $0x4d8] sm:$0xff]
    %v199 = vld [vmem:[%s2 + $0x4e0] sm:$0xff]
    %v200 = vld [vmem:[%s2 + $0x4e8] sm:$0xff]
    %v201 = vld [vmem:[%s2 + $0x4f0] sm:$0xff]
    %v202 = vld [vmem:[%s2 + $0x4f8] sm:$0xff]
    %v203 = vld [vmem:[%s2 + $0x500] sm:$0xff]
    %v204 = vld [vmem:[%s2 + $0x508] sm:$0xff]
    %v205 = vld [vmem:[%s2 + $0x510] sm:$0xff]
    %v206 = vld [vmem:[%s2 + $0x518] sm:$0xff]
    %v207 = vld [vmem:[%s2 + $0x520] sm:$0xff]
    %v208 = vld [vmem:[%s2 + $0x528] sm:$0xff]
    %v209 = vld [vmem:[%s2 + $0x530] sm:$0xff]
    %v210 = vld [vmem:[%s2 + $0x538] sm:$0xff]
    %v211 = vld [vmem:[%s2 + $0x540] sm:$0xff]
    %v212 = vld [vmem:[%s2 + $0x548] sm:$0xff]
    %v213 = vld [vmem:[%s2 + $0x550] sm:$0xff]
    %v214 = vld [vmem:[%s2 + $0x558] sm:$0xff]
    %v215 = vld [vmem:[%s2 + $0x560] sm:$0xff]
    %v216 = vld [vmem:[%s2 + $0x568] sm:$0xff]
    %v217 = vld [vmem:[%s2 + $0x570] sm:$0xff]
    %v218 = vld [vmem:[%s2 + $0x578] sm:$0xff]
    %v219 = vld [vmem:[%s2 + $0x580] sm:$0xff]
    %v220 = vld [vmem:[%s2 + $0x588] sm:$0xff]
    %v221 = vld [vmem:[%s2 + $0x590] sm:$0xff]
    %v222 = vld [vmem:[%s2 + $0x598] sm:$0xff]
    %v223 = vld [vmem:[%s2 + $0x5a0] sm:$0xff]
    %v224 = vld [vmem:[%s2 + $0x5a8] sm:$0xff]
    %v225 = vld [vmem:[%s2 + $0x5b0] sm:$0xff]
    %v226 = vld [vmem:[%s2 + $0x5b8] sm:$0xff]
    %v227 = vld [vmem:[%s2 + $0x5c0] sm:$0xff]
    %v228 = vld [vmem:[%s2 + $0x5c8] sm:$0xff]
    %v229 = vld [vmem:[%s2 + $0x5d0] sm:$0xff]
    %v230 = vld [vmem:[%s2 + $0x5d8] sm:$0xff]
    %v231 = vld [vmem:[%s2 + $0x5e0] sm:$0xff]
    %v232 = vld [vmem:[%s2 + $0x5e8] sm:$0xff]
    %v233 = vld [vmem:[%s2 + $0x5f0] sm:$0xff]
    %v234 = vld [vmem:[%s2 + $0x5f8] sm:$0xff]
    %v235 = vld [vmem:[%s2 + $0x600] sm:$0xff]
    %v236 = vld [vmem:[%s2 + $0x608] sm:$0xff]
    %v237 = vld [vmem:[%s2 + $0x610] sm:$0xff]
    %v238 = vld [vmem:[%s2 + $0x618] sm:$0xff]
    %v239 = vld [vmem:[%s2 + $0x620] sm:$0xff]
    %v240 = vld [vmem:[%s2 + $0x628] sm:$0xff]
    %v241 = vld [vmem:[%s2 + $0x630] sm:$0xff]
    %v242 = vld [vmem:[%s2 + $0x638] sm:$0xff]
    %v243 = vld [vmem:[%s2 + $0x640] sm:$0xff]
    %v244 = vld [vmem:[%s2 + $0x648] sm:$0xff]
    %v245 = vld [vmem:[%s2 + $0x650] sm:$0xff]
    %v246 = vld [vmem:[%s2 + $0x658] sm:$0xff]
    %v247 = vld [vmem:[%s2 + $0x660] sm:$0xff]
    %v248 = vld [vmem:[%s2 + $0x668] sm:$0xff]
    %v249 = vld [vmem:[%s2 + $0x670] sm:$0xff]
    %v250 = vld [vmem:[%s2 + $0x678] sm:$0xff]
    %v251 = vld [vmem:[%s2 + $0x680] sm:$0xff]
    %v252 = vld [vmem:[%s2 + $0x688] sm:$0xff]
    %v253 = vld [vmem:[%s2 + $0x690] sm:$0xff]
    %v254 = vld [vmem:[%s2 + $0x698] sm:$0xff]
    %v255 = vld [vmem:[%s2 + $0x6a0] sm:$0xff]
    %v256 = vld [vmem:[%s2 + $0x6a8] sm:$0xff]
    %v257 = vld [vmem:[%s2 + $0x6b0] sm:$0xff]
    %v258 = vld [vmem:[%s2 + $0x6b8] sm:$0xff]
    %v259 = vld [vmem:[%s2 + $0x6c0] sm:$0xff]
    %v260 = vld [vmem:[%s2 + $0x6c8] sm:$0xff]
    %v261 = vld [vmem:[%s2 + $0x6d0] sm:$0xff]
    %v262 = vld [vmem:[%s2 + $0x6d8] sm:$0xff]
    %v263 = vld [vmem:[%s2 + $0x6e0] sm:$0xff]
    %v264 = vld [vmem:[%s2 + $0x6e8] sm:$0xff]
    %v265 = vld [vmem:[%s2 + $0x6f0] sm:$0xff]
    %v266 = vld [vmem:[%s2 + $0x6f8] sm:$0xff]
    %v267 = vld [vmem:[%s2 + $0x700] sm:$0xff]
    %v268 = vld [vmem:[%s2 + $0x708] sm:$0xff]
    %v269 = vld [vmem:[%s2 + $0x710] sm:$0xff]
    %v270 = vld [vmem:[%s2 + $0x718] sm:$0xff]
    %v271 = vld [vmem:[%s2 + $0x720] sm:$0xff]
    %v272 = vld [vmem:[%s2 + $0x728] sm:$0xff]
    %v273 = vld [vmem:[%s2 + $0x730] sm:$0xff]
    %v274 = vld [vmem:[%s2 + $0x738] sm:$0xff]
    %v275 = vld [vmem:[%s2 + $0x740] sm:$0xff]
    %v276 = vld [vmem:[%s2 + $0x748] sm:$0xff]
    %v277 = vld [vmem:[%s2 + $0x750] sm:$0xff]
    %v278 = vld [vmem:[%s2 + $0x758] sm:$0xff]
    %v279 = vld [vmem:[%s2 + $0x760] sm:$0xff]
    %v280 = vld [vmem:[%s2 + $0x768] sm:$0xff]
    %v281 = vld [vmem:[%s2 + $0x770] sm:$0xff]
    %v282 = vld [vmem:[%s2 + $0x778] sm:$0xff]
    %v283 = vld [vmem:[%s2 + $0x780] sm:$0xff]
    %v284 = vld [vmem:[%s2 + $0x788] sm:$0xff]
    %v285 = vld [vmem:[%s2 + $0x790] sm:$0xff]
    %v286 = vld [vmem:[%s2 + $0x798] sm:$0xff]
    %v287 = vld [vmem:[%s2 + $0x7a0] sm:$0xff]
    %v288 = vld [vmem:[%s2 + $0x7a8] sm:$0xff]
    %v289 = vld [vmem:[%s2 + $0x7b0] sm:$0xff]
    %v290 = vld [vmem:[%s2 + $0x7b8] sm:$0xff]
    %v291 = vld [vmem:[%s2 + $0x7c0] sm:$0xff]
    %v292 = vld [vmem:[%s2 + $0x7c8] sm:$0xff]
    %v293 = vld [vmem:[%s2 + $0x7d0] sm:$0xff]
    %v294 = vld [vmem:[%s2 + $0x7d8] sm:$0xff]
    %v295 = vld [vmem:[%s2 + $0x7e0] sm:$0xff]
    %v296 = vld [vmem:[%s2 + $0x7e8] sm:$0xff]
    %v297 = vld [vmem:[%s2 + $0x7f0] sm:$0xff]
    %v298 = vld [vmem:[%s2 + $0x7f8] sm:$0xff]
    %v299 = vld [vmem:[%s2 + $0x800] sm:$0xff]
    %v300 = vld [vmem:[%s2 + $0x808] sm:$0xff]
    %v301 = vld [vmem:[%s2 + $0x810] sm:$0xff]
    %v302 = vld [vmem:[%s2 + $0x818] sm:$0xff]
    %v303 = vld [vmem:[%s2 + $0x820] sm:$0xff]
    %v304 = vld [vmem:[%s2 + $0x828] sm:$0xff]
    %v305 = vld [vmem:[%s2 + $0x830] sm:$0xff]
    %v306 = vld [vmem:[%s2 + $0x838] sm:$0xff]
    %v307 = vld [vmem:[%s2 + $0x840] sm:$0xff]
    %v308 = vld [vmem:[%s2 + $0x848] sm:$0xff]
    %v309 = vld [vmem:[%s2 + $0x850] sm:$0xff]
    %v310 = vld [vmem:[%s2 + $0x858] sm:$0xff]
    %v311 = vld [vmem:[%s2 + $0x860] sm:$0xff]
    %v312 = vld [vmem:[%s2 + $0x868] sm:$0xff]
    %v313 = vld [vmem:[%s2 + $0x870] sm:$0xff]
    %v314 = vld [vmem:[%s2 + $0x878] sm:$0xff]
    %v315 = vld [vmem:[%s2 + $0x880] sm:$0xff]
    %v316 = vld [vmem:[%s2 + $0x888] sm:$0xff]
    %v317 = vld [vmem:[%s2 + $0x890] sm:$0xff]
    %v318 = vld [vmem:[%s2 + $0x898] sm:$0xff]
    %v319 = vld [vmem:[%s2 + $0x8a0] sm:$0xff]
    %v320 = vld [vmem:[%s2 + $0x8a8] sm:$0xff]
    %v321 = vld [vmem:[%s2 + $0x8b0] sm:$0xff]
    %v322 = vld [vmem:[%s2 + $0x8b8] sm:$0xff]
    %v323 = vld [vmem:[%s2 + $0x8c0] sm:$0xff]
    %v324 = vld [vmem:[%s2 + $0x8c8] sm:$0xff]
    %v325 = vld [vmem:[%s2 + $0x8d0] sm:$0xff]
    %v326 = vld [vmem:[%s2 + $0x8d8] sm:$0xff]
    %v327 = vld [vmem:[%s2 + $0x8e0] sm:$0xff]
    %v328 = vld [vmem:[%s2 + $0x8e8] sm:$0xff]
    %v329 = vld [vmem:[%s2 + $0x8f0] sm:$0xff]
    %v330 = vld [vmem:[%s2 + $0x8f8] sm:$0xff]
    %v331 = vld [vmem:[%s2 + $0x900] sm:$0xff]
    %v332 = vld [vmem:[%s2 + $0x908] sm:$0xff]
    %v333 = vld [vmem:[%s2 + $0x910] sm:$0xff]
    %v334 = vld [vmem:[%s2 + $0x918] sm:$0xff]
    %v335 = vld [vmem:[%s2 + $0x920] sm:$0xff]
    %v336 = vld [vmem:[%s2 + $0x928] sm:$0xff]
    %v337 = vld [vmem:[%s2 + $0x930] sm:$0xff]
    %v338 = vld [vmem:[%s2 + $0x938] sm:$0xff]
    %v339 = vld [vmem:[%s2 + $0x940] sm:$0xff]
    %v340 = vld [vmem:[%s2 + $0x948] sm:$0xff]
    %v341 = vld [vmem:[%s2 + $0x950] sm:$0xff]
    %v342 = vld [vmem:[%s2 + $0x958] sm:$0xff]
    %v343 = vld [vmem:[%s2 + $0x960] sm:$0xff]
    %v344 = vld [vmem:[%s2 + $0x968] sm:$0xff]
    %v345 = vld [vmem:[%s2 + $0x970] sm:$0xff]
    %v346 = vld [vmem:[%s2 + $0x978] sm:$0xff]
    %v347 = vld [vmem:[%s2 + $0x980] sm:$0xff]
    %v348 = vld [vmem:[%s2 + $0x988] sm:$0xff]
    %v349 = vld [vmem:[%s2 + $0x990] sm:$0xff]
    %v350 = vld [vmem:[%s2 + $0x998] sm:$0xff]
    %v351 = vld [vmem:[%s2 + $0x9a0] sm:$0xff]
    %v352 = vld [vmem:[%s2 + $0x9a8] sm:$0xff]
    %v353 = vld [vmem:[%s2 + $0x9b0] sm:$0xff]
    %v354 = vld [vmem:[%s2 + $0x9b8] sm:$0xff]
    %v355 = vld [vmem:[%s2 + $0x9c0] sm:$0xff]
    %v356 = vld [vmem:[%s2 + $0x9c8] sm:$0xff]
    %v357 = vld [vmem:[%s2 + $0x9d0] sm:$0xff]
    %v358 = vld [vmem:[%s2 + $0x9d8] sm:$0xff]
    %v359 = vld [vmem:[%s2 + $0x9e0] sm:$0xff]
    %v360 = vld [vmem:[%s2 + $0x9e8] sm:$0xff]
    %v361 = vld [vmem:[%s2 + $0x9f0] sm:$0xff]
    %v362 = vld [vmem:[%s2 + $0x9f8] sm:$0xff]
    %v363 = vld [vmem:[%s2 + $0xa00] sm:$0xff]
    %v364 = vld [vmem:[%s2 + $0xa08] sm:$0xff]
    %v365 = vld [vmem:[%s2 + $0xa10] sm:$0xff]
    %v366 = vld [vmem:[%s2 + $0xa18] sm:$0xff]
    %v367 = vld [vmem:[%s2 + $0xa20] sm:$0xff]
    %v368 = vld [vmem:[%s2 + $0xa28] sm:$0xff]
    %v369 = vld [vmem:[%s2 + $0xa30] sm:$0xff]
    %v370 = vld [vmem:[%s2 + $0xa38] sm:$0xff]
    %v371 = vld [vmem:[%s2 + $0xa40] sm:$0xff]
    %v372 = vld [vmem:[%s2 + $0xa48] sm:$0xff]
    %v373 = vld [vmem:[%s2 + $0xa50] sm:$0xff]
    %v374 = vld [vmem:[%s2 + $0xa58] sm:$0xff]
    %v375 = vld [vmem:[%s2 + $0xa60] sm:$0xff]
    %v376 = vld [vmem:[%s2 + $0xa68] sm:$0xff]
    %v377 = vld [vmem:[%s2 + $0xa70] sm:$0xff]
    %v378 = vld [vmem:[%s2 + $0xa78] sm:$0xff]
    %v379 = vld [vmem:[%s2 + $0xa80] sm:$0xff]
    %v380 = vld [vmem:[%s2 + $0xa88] sm:$0xff]
    %v381 = vld [vmem:[%s2 + $0xa90] sm:$0xff]
    %v382 = vld [vmem:[%s2 + $0xa98] sm:$0xff]
    %v383 = vld [vmem:[%s2 + $0xaa0] sm:$0xff]
    %v384 = vld [vmem:[%s2 + $0xaa8] sm:$0xff]
    %v385 = vld [vmem:[%s2 + $0xab0] sm:$0xff]
    %v386 = vld [vmem:[%s2 + $0xab8] sm:$0xff]
    %v387 = vld [vmem:[%s2 + $0xac0] sm:$0xff]
    %v388 = vld [vmem:[%s2 + $0xac8] sm:$0xff]
    %v389 = vld [vmem:[%s2 + $0xad0] sm:$0xff]
    %v390 = vld [vmem:[%s2 + $0xad8] sm:$0xff]
    %v391 = vld [vmem:[%s2 + $0xae0] sm:$0xff]
    %v392 = vld [vmem:[%s2 + $0xae8] sm:$0xff]
    %v393 = vld [vmem:[%s2 + $0xaf0] sm:$0xff]
    %v394 = vld [vmem:[%s2 + $0xaf8] sm:$0xff]
    %v395 = vld [vmem:[%s2 + $0xb00] sm:$0xff]
    %v396 = vld [vmem:[%s2 + $0xb08] sm:$0xff]
    %v397 = vld [vmem:[%s2 + $0xb10] sm:$0xff]
    %v398 = vld [vmem:[%s2 + $0xb18] sm:$0xff]
    %v399 = vld [vmem:[%s2 + $0xb20] sm:$0xff]
    %v400 = vld [vmem:[%s2 + $0xb28] sm:$0xff]
    %v401 = vld [vmem:[%s2 + $0xb30] sm:$0xff]
    %v402 = vld [vmem:[%s2 + $0xb38] sm:$0xff]
    %v403 = vld [vmem:[%s2 + $0xb40] sm:$0xff]
    %v404 = vld [vmem:[%s2 + $0xb48] sm:$0xff]
    %v405 = vld [vmem:[%s2 + $0xb50] sm:$0xff]
    %v406 = vld [vmem:[%s2 + $0xb58] sm:$0xff]
    %v407 = vld [vmem:[%s2 + $0xb60] sm:$0xff]
    %v408 = vld [vmem:[%s2 + $0xb68] sm:$0xff]
    %v409 = vld [vmem:[%s2 + $0xb70] sm:$0xff]
    %v410 = vld [vmem:[%s2 + $0xb78] sm:$0xff]
    %v411 = vld [vmem:[%s2 + $0xb80] sm:$0xff]
    %v412 = vld [vmem:[%s2 + $0xb88] sm:$0xff]
    %v413 = vld [vmem:[%s2 + $0xb90] sm:$0xff]
    %v414 = vld [vmem:[%s2 + $0xb98] sm:$0xff]
    %v415 = vld [vmem:[%s2 + $0xba0] sm:$0xff]
    %v416 = vld [vmem:[%s2 + $0xba8] sm:$0xff]
    %v417 = vld [vmem:[%s2 + $0xbb0] sm:$0xff]
    %v418 = vld [vmem:[%s2 + $0xbb8] sm:$0xff]
    %v419 = vld [vmem:[%s2 + $0xbc0] sm:$0xff]
    %v420 = vld [vmem:[%s2 + $0xbc8] sm:$0xff]
    %v421 = vld [vmem:[%s2 + $0xbd0] sm:$0xff]
    %v422 = vld [vmem:[%s2 + $0xbd8] sm:$0xff]
    %v423 = vld [vmem:[%s2 + $0xbe0] sm:$0xff]
    %v424 = vld [vmem:[%s2 + $0xbe8] sm:$0xff]
    %v425 = vld [vmem:[%s2 + $0xbf0] sm:$0xff]
    %v426 = vld [vmem:[%s2 + $0xbf8] sm:$0xff]
    %v427 = vld [vmem:[%s2 + $0xc00] sm:$0xff]
    %v428 = vld [vmem:[%s2 + $0xc08] sm:$0xff]
    %v429 = vld [vmem:[%s2 + $0xc10] sm:$0xff]
    %v430 = vld [vmem:[%s2 + $0xc18] sm:$0xff]
    %v431 = vld [vmem:[%s2 + $0xc20] sm:$0xff]
    %v432 = vld [vmem:[%s2 + $0xc28] sm:$0xff]
    %v433 = vld [vmem:[%s2 + $0xc30] sm:$0xff]
    %v434 = vld [vmem:[%s2 + $0xc38] sm:$0xff]
    %v435 = vld [vmem:[%s2 + $0xc40] sm:$0xff]
    %v436 = vld [vmem:[%s2 + $0xc48] sm:$0xff]
    %v437 = vld [vmem:[%s2 + $0xc50] sm:$0xff]
    %v438 = vld [vmem:[%s2 + $0xc58] sm:$0xff]
    %v439 = vld [vmem:[%s2 + $0xc60] sm:$0xff]
    %v440 = vld [vmem:[%s2 + $0xc68] sm:$0xff]
    %v441 = vld [vmem:[%s2 + $0xc70] sm:$0xff]
    %v442 = vld [vmem:[%s2 + $0xc78] sm:$0xff]
    %v443 = vld [vmem:[%s2 + $0xc80] sm:$0xff]
    %v444 = vld [vmem:[%s2 + $0xc88] sm:$0xff]
    %v445 = vld [vmem:[%s2 + $0xc90] sm:$0xff]
    %v446 = vld [vmem:[%s2 + $0xc98] sm:$0xff]
    %v447 = vld [vmem:[%s2 + $0xca0] sm:$0xff]
    %v448 = vld [vmem:[%s2 + $0xca8] sm:$0xff]
    %v449 = vld [vmem:[%s2 + $0xcb0] sm:$0xff]
    %v450 = vld [vmem:[%s2 + $0xcb8] sm:$0xff]
    %v451 = vld [vmem:[%s2 + $0xcc0] sm:$0xff]
    %v452 = vld [vmem:[%s2 + $0xcc8] sm:$0xff]
    %v453 = vld [vmem:[%s2 + $0xcd0] sm:$0xff]
    %v454 = vld [vmem:[%s2 + $0xcd8] sm:$0xff]
    %v455 = vld [vmem:[%s2 + $0xce0] sm:$0xff]
    %v456 = vld [vmem:[%s2 + $0xce8] sm:$0xff]
    %v457 = vld [vmem:[%s2 + $0xcf0] sm:$0xff]
    %v458 = vld [vmem:[%s2 + $0xcf8] sm:$0xff]
    %v459 = vld [vmem:[%s2 + $0xd00] sm:$0xff]
    %v460 = vld [vmem:[%s2 + $0xd08] sm:$0xff]
    %v461 = vld [vmem:[%s2 + $0xd10] sm:$0xff]
    %v462 = vld [vmem:[%s2 + $0xd18] sm:$0xff]
    %v463 = vld [vmem:[%s2 + $0xd20] sm:$0xff]
    %v464 = vld [vmem:[%s2 + $0xd28] sm:$0xff]
    %v465 = vld [vmem:[%s2 + $0xd30] sm:$0xff]
    %v466 = vld [vmem:[%s2 + $0xd38] sm:$0xff]
    %v467 = vld [vmem:[%s2 + $0xd40] sm:$0xff]
    %v468 = vld [vmem:[%s2 + $0xd48] sm:$0xff]
    %v469 = vld [vmem:[%s2 + $0xd50] sm:$0xff]
    %v470 = vld [vmem:[%s2 + $0xd58] sm:$0xff]
    %v471 = vld [vmem:[%s2 + $0xd60] sm:$0xff]
    %v472 = vld [vmem:[%s2 + $0xd68] sm:$0xff]
    %v473 = vld [vmem:[%s2 + $0xd70] sm:$0xff]
    %v474 = vld [vmem:[%s2 + $0xd78] sm:$0xff]
    %v475 = vld [vmem:[%s2 + $0xd80] sm:$0xff]
    %v476 = vld [vmem:[%s2 + $0xd88] sm:$0xff]
    %v477 = vld [vmem:[%s2 + $0xd90] sm:$0xff]
    %v478 = vld [vmem:[%s2 + $0xd98] sm:$0xff]
    %v479 = vld [vmem:[%s2 + $0xda0] sm:$0xff]
    %v480 = vld [vmem:[%s2 + $0xda8] sm:$0xff]
    %v481 = vld [vmem:[%s2 + $0xdb0] sm:$0xff]
    %v482 = vld [vmem:[%s2 + $0xdb8] sm:$0xff]
    %v483 = vld [vmem:[%s2 + $0xdc0] sm:$0xff]
    %v484 = vld [vmem:[%s2 + $0xdc8] sm:$0xff]
    %v485 = vld [vmem:[%s2 + $0xdd0] sm:$0xff]
    %v486 = vld [vmem:[%s2 + $0xdd8] sm:$0xff]
    %v487 = vld [vmem:[%s2 + $0xde0] sm:$0xff]
    %v488 = vld [vmem:[%s2 + $0xde8] sm:$0xff]
    %v489 = vld [vmem:[%s2 + $0xdf0] sm:$0xff]
    %v490 = vld [vmem:[%s2 + $0xdf8] sm:$0xff]
    %v491 = vld [vmem:[%s2 + $0xe00] sm:$0xff]
    %v492 = vld [vmem:[%s2 + $0xe08] sm:$0xff]
    %v493 = vld [vmem:[%s2 + $0xe10] sm:$0xff]
    %v494 = vld [vmem:[%s2 + $0xe18] sm:$0xff]
    %v495 = vld [vmem:[%s2 + $0xe20] sm:$0xff]
    %v496 = vld [vmem:[%s2 + $0xe28] sm:$0xff]
    %v497 = vld [vmem:[%s2 + $0xe30] sm:$0xff]
    %v498 = vld [vmem:[%s2 + $0xe38] sm:$0xff]
    %v499 = vld [vmem:[%s2 + $0xe40] sm:$0xff]
    %v500 = vld [vmem:[%s2 + $0xe48] sm:$0xff]
    %v501 = vld [vmem:[%s2 + $0xe50] sm:$0xff]
    %v502 = vld [vmem:[%s2 + $0xe58] sm:$0xff]
    %v503 = vld [vmem:[%s2 + $0xe60] sm:$0xff]
    %v504 = vld [vmem:[%s2 + $0xe68] sm:$0xff]
    %v505 = vld [vmem:[%s2 + $0xe70] sm:$0xff]
    %v506 = vld [vmem:[%s2 + $0xe78] sm:$0xff]
    %v507 = vld [vmem:[%s2 + $0xe80] sm:$0xff]
    %v508 = vld [vmem:[%s2 + $0xe88] sm:$0xff]
    %v509 = vld [vmem:[%s2 + $0xe90] sm:$0xff]
    %v510 = vld [vmem:[%s2 + $0xe98] sm:$0xff]
    %v511 = vld [vmem:[%s2 + $0xea0] sm:$0xff]
    %v512 = vld [vmem:[%s2 + $0xea8] sm:$0xff]
    %v513 = vld [vmem:[%s2 + $0xeb0] sm:$0xff]
    %v514 = vld [vmem:[%s2 + $0xeb8] sm:$0xff]
    %v515 = vld [vmem:[%s2 + $0xec0] sm:$0xff]
    %v516 = vld [vmem:[%s2 + $0xec8] sm:$0xff]
    %v517 = vld [vmem:[%s2 + $0xed0] sm:$0xff]
    %v518 = vld [vmem:[%s2 + $0xed8] sm:$0xff]
    %v519 = vld [vmem:[%s2 + $0xee0] sm:$0xff]
    %v520 = vld [vmem:[%s2 + $0xee8] sm:$0xff]
    %v521 = vld [vmem:[%s2 + $0xef0] sm:$0xff]
    %v522 = vld [vmem:[%s2 + $0xef8] sm:$0xff]
    %v523 = vld [vmem:[%s2 + $0xf00] sm:$0xff]
    %v524 = vld [vmem:[%s2 + $0xf08] sm:$0xff]
    %v525 = vld [vmem:[%s2 + $0xf10] sm:$0xff]
    %v526 = vld [vmem:[%s2 + $0xf18] sm:$0xff]
    %v527 = vld [vmem:[%s2 + $0xf20] sm:$0xff]
    %v528 = vld [vmem:[%s2 + $0xf28] sm:$0xff]
    %v529 = vld [vmem:[%s2 + $0xf30] sm:$0xff]
    %v530 = vld [vmem:[%s2 + $0xf38] sm:$0xff]
    %v531 = vld [vmem:[%s2 + $0xf40] sm:$0xff]
    %v532 = vld [vmem:[%s2 + $0xf48] sm:$0xff]
    %v533 = vld [vmem:[%s2 + $0xf50] sm:$0xff]
    %v534 = vld [vmem:[%s2 + $0xf58] sm:$0xff]
    %v535 = vld [vmem:[%s2 + $0xf60] sm:$0xff]
    %v536 = vld [vmem:[%s2 + $0xf68] sm:$0xff]
    %v537 = vld [vmem:[%s2 + $0xf70] sm:$0xff]
    %v538 = vld [vmem:[%s2 + $0xf78] sm:$0xff]
    %v539 = vld [vmem:[%s2 + $0xf80] sm:$0xff]
    %v540 = vld [vmem:[%s2 + $0xf88] sm:$0xff]
    %v541 = vld [vmem:[%s2 + $0xf90] sm:$0xff]
    %v542 = vld [vmem:[%s2 + $0xf98] sm:$0xff]
    %v543 = vld [vmem:[%s2 + $0xfa0] sm:$0xff]
    %v544 = vld [vmem:[%s2 + $0xfa8] sm:$0xff]
    %v545 = vld [vmem:[%s2 + $0xfb0] sm:$0xff]
    %v546 = vld [vmem:[%s2 + $0xfb8] sm:$0xff]
    %v547 = vld [vmem:[%s2 + $0xfc0] sm:$0xff]
    %v548 = vld [vmem:[%s2 + $0xfc8] sm:$0xff]
    %v549 = vld [vmem:[%s2 + $0xfd0] sm:$0xff]
    %v550 = vld [vmem:[%s2 + $0xfd8] sm:$0xff]
    %v551 = vld [vmem:[%s2 + $0xfe0] sm:$0xff]
    %v552 = vld [vmem:[%s2 + $0xfe8] sm:$0xff]
    %v553 = vld [vmem:[%s2 + $0xff0] sm:$0xff]
    %v554 = vld [vmem:[%s2 + $0xff8] sm:$0xff]
    %v555 = vld [vmem:[%s2 + $0x1000] sm:$0xff]
    %v556 = vld [vmem:[%s2 + $0x1008] sm:$0xff]
    %v557 = vld [vmem:[%s2 + $0x1010] sm:$0xff]
    %v558 = vld [vmem:[%s2 + $0x1018] sm:$0xff]
    %v559 = vld [vmem:[%s2 + $0x1020] sm:$0xff]
    %v560 = vld [vmem:[%s2 + $0x1028] sm:$0xff]
    %v561 = vld [vmem:[%s2 + $0x1030] sm:$0xff]
    %v562 = vld [vmem:[%s2 + $0x1038] sm:$0xff]
    %v563 = vld [vmem:[%s2 + $0x1040] sm:$0xff]
    %v564 = vld [vmem:[%s2 + $0x1048] sm:$0xff]
    %v565 = vld [vmem:[%s2 + $0x1050] sm:$0xff]
    %v566 = vld [vmem:[%s2 + $0x1058] sm:$0xff]
    %v567 = vld [vmem:[%s2 + $0x1060] sm:$0xff]
    %v568 = vld [vmem:[%s2 + $0x1068] sm:$0xff]
    %v569 = vld [vmem:[%s2 + $0x1070] sm:$0xff]
    %v570 = vld [vmem:[%s2 + $0x1078] sm:$0xff]
    %v571 = vld [vmem:[%s2 + $0x1080] sm:$0xff]
    %v572 = vld [vmem:[%s2 + $0x1088] sm:$0xff]
    %v573 = vld [vmem:[%s2 + $0x1090] sm:$0xff]
    %v574 = vld [vmem:[%s2 + $0x1098] sm:$0xff]
    %v575 = vld [vmem:[%s2 + $0x10a0] sm:$0xff]
    %v576 = vld [vmem:[%s2 + $0x10a8] sm:$0xff]
    %v577 = vld [vmem:[%s2 + $0x10b0] sm:$0xff]
    %v578 = vld [vmem:[%s2 + $0x10b8] sm:$0xff]
    %v579 = vld [vmem:[%s2 + $0x10c0] sm:$0xff]
    %v580 = vld [vmem:[%s2 + $0x10c8] sm:$0xff]
    %v581 = vld [vmem:[%s2 + $0x10d0] sm:$0xff]
    %v582 = vld [vmem:[%s2 + $0x10d8] sm:$0xff]
    %v583 = vld [vmem:[%s2 + $0x10e0] sm:$0xff]
    %v584 = vld [vmem:[%s2 + $0x10e8] sm:$0xff]
    %v585 = vld [vmem:[%s2 + $0x10f0] sm:$0xff]
    %v586 = vld [vmem:[%s2 + $0x10f8] sm:$0xff]
    %v587 = vld [vmem:[%s2 + $0x1100] sm:$0xff]
    %v588 = vld [vmem:[%s2 + $0x1108] sm:$0xff]
    %v589 = vld [vmem:[%s2 + $0x1110] sm:$0xff]
    %v590 = vld [vmem:[%s2 + $0x1118] sm:$0xff]
    %v591 = vld [vmem:[%s2 + $0x1120] sm:$0xff]
    %v592 = vld [vmem:[%s2 + $0x1128] sm:$0xff]
    %v593 = vld [vmem:[%s2 + $0x1130] sm:$0xff]
    %v594 = vld [vmem:[%s2 + $0x1138] sm:$0xff]
    %v595 = vld [vmem:[%s2 + $0x1140] sm:$0xff]
    %v596 = vld [vmem:[%s2 + $0x1148] sm:$0xff]
    %v597 = vld [vmem:[%s2 + $0x1150] sm:$0xff]
    %v598 = vld [vmem:[%s2 + $0x1158] sm:$0xff]
    %v599 = vld [vmem:[%s2 + $0x1160] sm:$0xff]
    %v600 = vld [vmem:[%s2 + $0x1168] sm:$0xff]
    %v601 = vld [vmem:[%s2 + $0x1170] sm:$0xff]
    %v602 = vld [vmem:[%s2 + $0x1178] sm:$0xff]
    %v603 = vld [vmem:[%s2 + $0x1180] sm:$0xff]
    %v604 = vld [vmem:[%s2 + $0x1188] sm:$0xff]
    %v605 = vld [vmem:[%s2 + $0x1190] sm:$0xff]
    %v606 = vld [vmem:[%s2 + $0x1198] sm:$0xff]
    %v607 = vld [vmem:[%s2 + $0x11a0] sm:$0xff]
    %v608 = vld [vmem:[%s2 + $0x11a8] sm:$0xff]
    %v609 = vld [vmem:[%s2 + $0x11b0] sm:$0xff]
    %v610 = vld [vmem:[%s2 + $0x11b8] sm:$0xff]
    %v611 = vld [vmem:[%s2 + $0x11c0] sm:$0xff]
    %v612 = vld [vmem:[%s2 + $0x11c8] sm:$0xff]
    %v613 = vld [vmem:[%s2 + $0x11d0] sm:$0xff]
    %v614 = vld [vmem:[%s2 + $0x11d8] sm:$0xff]
    %v615 = vld [vmem:[%s2 + $0x11e0] sm:$0xff]
    %v616 = vld [vmem:[%s2 + $0x11e8] sm:$0xff]
    %v617 = vld [vmem:[%s2 + $0x11f0] sm:$0xff]
    %v618 = vld [vmem:[%s2 + $0x11f8] sm:$0xff]
    %v619 = vld [vmem:[%s2 + $0x1200] sm:$0xff]
    %v620 = vld [vmem:[%s2 + $0x1208] sm:$0xff]
    %v621 = vld [vmem:[%s2 + $0x1210] sm:$0xff]
    %v622 = vld [vmem:[%s2 + $0x1218] sm:$0xff]
    %v623 = vld [vmem:[%s2 + $0x1220] sm:$0xff]
    %v624 = vld [vmem:[%s2 + $0x1228] sm:$0xff]
    %v625 = vld [vmem:[%s2 + $0x1230] sm:$0xff]
    %v626 = vld [vmem:[%s2 + $0x1238] sm:$0xff]
    %v627 = vld [vmem:[%s2 + $0x1240] sm:$0xff]
    %v628 = vld [vmem:[%s2 + $0x1248] sm:$0xff]
    %v629 = vld [vmem:[%s2 + $0x1250] sm:$0xff]
    %v630 = vld [vmem:[%s2 + $0x1258] sm:$0xff]
    %v631 = vld [vmem:[%s2 + $0x1260] sm:$0xff]
    %v632 = vld [vmem:[%s2 + $0x1268] sm:$0xff]
    %v633 = vld [vmem:[%s2 + $0x1270] sm:$0xff]
    %v634 = vld [vmem:[%s2 + $0x1278] sm:$0xff]
    %v635 = vld [vmem:[%s2 + $0x1280] sm:$0xff]
    %v636 = vld [vmem:[%s2 + $0x1288] sm:$0xff]
    %v637 = vld [vmem:[%s2 + $0x1290] sm:$0xff]
    %v638 = vld [vmem:[%s2 + $0x1298] sm:$0xff]
    %v639 = vld [vmem:[%s2 + $0x12a0] sm:$0xff]
    %v640 = vld [vmem:[%s2 + $0x12a8] sm:$0xff]
    %v641 = vld [vmem:[%s2 + $0x12b0] sm:$0xff]
    %v642 = vld [vmem:[%s2 + $0x12b8] sm:$0xff]
    %v643 = vld [vmem:[%s2 + $0x12c0] sm:$0xff]
    %v644 = vld [vmem:[%s2 + $0x12c8] sm:$0xff]
    %v645 = vld [vmem:[%s2 + $0x12d0] sm:$0xff]
    %v646 = vld [vmem:[%s2 + $0x12d8] sm:$0xff]
    %v647 = vld [vmem:[%s2 + $0x12e0] sm:$0xff]
    %v648 = vld [vmem:[%s2 + $0x12e8] sm:$0xff]
    %v649 = vld [vmem:[%s2 + $0x12f0] sm:$0xff]
    %v650 = vld [vmem:[%s2 + $0x12f8] sm:$0xff]
    %v651 = vld [vmem:[%s2 + $0x1300] sm:$0xff]
    %v652 = vld [vmem:[%s2 + $0x1308] sm:$0xff]
    %v653 = vld [vmem:[%s2 + $0x1310] sm:$0xff]
    %v654 = vld [vmem:[%s2 + $0x1318] sm:$0xff]
    %v655 = vld [vmem:[%s2 + $0x1320] sm:$0xff]
    %v656 = vld [vmem:[%s2 + $0x1328] sm:$0xff]
    %v657 = vld [vmem:[%s2 + $0x1330] sm:$0xff]
    %v658 = vld [vmem:[%s2 + $0x1338] sm:$0xff]
    %v659 = vld [vmem:[%s2 + $0x1340] sm:$0xff]
    %v660 = vld [vmem:[%s2 + $0x1348] sm:$0xff]
    %v661 = vld [vmem:[%s2 + $0x1350] sm:$0xff]
    %v662 = vld [vmem:[%s2 + $0x1358] sm:$0xff]
    %v663 = vld [vmem:[%s2 + $0x1360] sm:$0xff]
    %v664 = vld [vmem:[%s2 + $0x1368] sm:$0xff]
    %v665 = vld [vmem:[%s2 + $0x1370] sm:$0xff]
    %v666 = vld [vmem:[%s2 + $0x1378] sm:$0xff]
    %v667 = vld [vmem:[%s2 + $0x1380] sm:$0xff]
    %v668 = vld [vmem:[%s2 + $0x1388] sm:$0xff]
    %v669 = vld [vmem:[%s2 + $0x1390] sm:$0xff]
    %v670 = vld [vmem:[%s2 + $0x1398] sm:$0xff]
    %v671 = vld [vmem:[%s2 + $0x13a0] sm:$0xff]
    %v672 = vld [vmem:[%s2 + $0x13a8] sm:$0xff]
    %v673 = vld [vmem:[%s2 + $0x13b0] sm:$0xff]
    %v674 = vld [vmem:[%s2 + $0x13b8] sm:$0xff]
    %v675 = vld [vmem:[%s2 + $0x13c0] sm:$0xff]
    %v676 = vld [vmem:[%s2 + $0x13c8] sm:$0xff]
    %v677 = vld [vmem:[%s2 + $0x13d0] sm:$0xff]
    %v678 = vld [vmem:[%s2 + $0x13d8] sm:$0xff]
    %v679 = vld [vmem:[%s2 + $0x13e0] sm:$0xff]
    %v680 = vld [vmem:[%s2 + $0x13e8] sm:$0xff]
    %v681 = vld [vmem:[%s2 + $0x13f0] sm:$0xff]
    %v682 = vld [vmem:[%s2 + $0x13f8] sm:$0xff]
    %v683 = vld [vmem:[%s2 + $0x1400] sm:$0xff]
    %v684 = vld [vmem:[%s2 + $0x1408] sm:$0xff]
    %v685 = vld [vmem:[%s2 + $0x1410] sm:$0xff]
    %v686 = vld [vmem:[%s2 + $0x1418] sm:$0xff]
    %v687 = vld [vmem:[%s2 + $0x1420] sm:$0xff]
    %v688 = vld [vmem:[%s2 + $0x1428] sm:$0xff]
    %v689 = vld [vmem:[%s2 + $0x1430] sm:$0xff]
    %v690 = vld [vmem:[%s2 + $0x1438] sm:$0xff]
    %v691 = vld [vmem:[%s2 + $0x1440] sm:$0xff]
    %v692 = vld [vmem:[%s2 + $0x1448] sm:$0xff]
    %v693 = vld [vmem:[%s2 + $0x1450] sm:$0xff]
    %v694 = vld [vmem:[%s2 + $0x1458] sm:$0xff]
    %v695 = vld [vmem:[%s2 + $0x1460] sm:$0xff]
    %v696 = vld [vmem:[%s2 + $0x1468] sm:$0xff]
    %v697 = vld [vmem:[%s2 + $0x1470] sm:$0xff]
    %v698 = vld [vmem:[%s2 + $0x1478] sm:$0xff]
    %v699 = vld [vmem:[%s2 + $0x1480] sm:$0xff]
    %v700 = vld [vmem:[%s2 + $0x1488] sm:$0xff]
    %v701 = vld [vmem:[%s2 + $0x1490] sm:$0xff]
    %v702 = vld [vmem:[%s2 + $0x1498] sm:$0xff]
    %v703 = vld [vmem:[%s2 + $0x14a0] sm:$0xff]
    %v704 = vld [vmem:[%s2 + $0x14a8] sm:$0xff]
    %v705 = vld [vmem:[%s2 + $0x14b0] sm:$0xff]
    %v706 = vld [vmem:[%s2 + $0x14b8] sm:$0xff]
    %v707 = vld [vmem:[%s2 + $0x14c0] sm:$0xff]
    %v708 = vld [vmem:[%s2 + $0x14c8] sm:$0xff]
    %v709 = vld [vmem:[%s2 + $0x14d0] sm:$0xff]
    %v710 = vld [vmem:[%s2 + $0x14d8] sm:$0xff]
    %v711 = vld [vmem:[%s2 + $0x14e0] sm:$0xff]
    %v712 = vld [vmem:[%s2 + $0x14e8] sm:$0xff]
    %v713 = vld [vmem:[%s2 + $0x14f0] sm:$0xff]
    %v714 = vld [vmem:[%s2 + $0x14f8] sm:$0xff]
    %v715 = vld [vmem:[%s2 + $0x1500] sm:$0xff]
    %v716 = vld [vmem:[%s2 + $0x1508] sm:$0xff]
    %v717 = vld [vmem:[%s2 + $0x1510] sm:$0xff]
    %v718 = vld [vmem:[%s2 + $0x1518] sm:$0xff]
    %v719 = vld [vmem:[%s2 + $0x1520] sm:$0xff]
    %v720 = vld [vmem:[%s2 + $0x1528] sm:$0xff]
    %v721 = vld [vmem:[%s2 + $0x1530] sm:$0xff]
    %v722 = vld [vmem:[%s2 + $0x1538] sm:$0xff]
    %v723 = vld [vmem:[%s2 + $0x1540] sm:$0xff]
    %v724 = vld [vmem:[%s2 + $0x1548] sm:$0xff]
    %v725 = vld [vmem:[%s2 + $0x1550] sm:$0xff]
    %v726 = vld [vmem:[%s2 + $0x1558] sm:$0xff]
    %v727 = vld [vmem:[%s2 + $0x1560] sm:$0xff]
    %v728 = vld [vmem:[%s2 + $0x1568] sm:$0xff]
    %v729 = vld [vmem:[%s2 + $0x1570] sm:$0xff]
    %v730 = vld [vmem:[%s2 + $0x1578] sm:$0xff]
    %v731 = vld [vmem:[%s2 + $0x1580] sm:$0xff]
    %v732 = vld [vmem:[%s2 + $0x1588] sm:$0xff]
    %v733 = vld [vmem:[%s2 + $0x1590] sm:$0xff]
    %v734 = vld [vmem:[%s2 + $0x1598] sm:$0xff]
    %v735 = vld [vmem:[%s2 + $0x15a0] sm:$0xff]
    %v736 = vld [vmem:[%s2 + $0x15a8] sm:$0xff]
    %v737 = vld [vmem:[%s2 + $0x15b0] sm:$0xff]
    %v738 = vld [vmem:[%s2 + $0x15b8] sm:$0xff]
    %v739 = vld [vmem:[%s2 + $0x15c0] sm:$0xff]
    %v740 = vld [vmem:[%s2 + $0x15c8] sm:$0xff]
    %v741 = vld [vmem:[%s2 + $0x15d0] sm:$0xff]
    %v742 = vld [vmem:[%s2 + $0x15d8] sm:$0xff]
    %v743 = vld [vmem:[%s2 + $0x15e0] sm:$0xff]
    %v744 = vld [vmem:[%s2 + $0x15e8] sm:$0xff]
    %v745 = vld [vmem:[%s2 + $0x15f0] sm:$0xff]
    %v746 = vld [vmem:[%s2 + $0x15f8] sm:$0xff]
    %v747 = vld [vmem:[%s2 + $0x1600] sm:$0xff]
    %v748 = vld [vmem:[%s2 + $0x1608] sm:$0xff]
    %v749 = vld [vmem:[%s2 + $0x1610] sm:$0xff]
    %v750 = vld [vmem:[%s2 + $0x1618] sm:$0xff]
    %v751 = vld [vmem:[%s2 + $0x1620] sm:$0xff]
    %v752 = vld [vmem:[%s2 + $0x1628] sm:$0xff]
    %v753 = vld [vmem:[%s2 + $0x1630] sm:$0xff]
    %v754 = vld [vmem:[%s2 + $0x1638] sm:$0xff]
    %v755 = vld [vmem:[%s2 + $0x1640] sm:$0xff]
    %v756 = vld [vmem:[%s2 + $0x1648] sm:$0xff]
    %v757 = vld [vmem:[%s2 + $0x1650] sm:$0xff]
    %v758 = vld [vmem:[%s2 + $0x1658] sm:$0xff]
    %v759 = vld [vmem:[%s2 + $0x1660] sm:$0xff]
    %v760 = vld [vmem:[%s2 + $0x1668] sm:$0xff]
    %v761 = vld [vmem:[%s2 + $0x1670] sm:$0xff]
    %v762 = vld [vmem:[%s2 + $0x1678] sm:$0xff]
    %v763 = vld [vmem:[%s2 + $0x1680] sm:$0xff]
    %v764 = vld [vmem:[%s2 + $0x1688] sm:$0xff]
    %v765 = vld [vmem:[%s2 + $0x1690] sm:$0xff]
    %v766 = vld [vmem:[%s2 + $0x1698] sm:$0xff]
    %v767 = vld [vmem:[%s2 + $0x16a0] sm:$0xff]
    %v768 = vld [vmem:[%s2 + $0x16a8] sm:$0xff]
    %v769 = vld [vmem:[%s2 + $0x16b0] sm:$0xff]
    %v770 = vld [vmem:[%s2 + $0x16b8] sm:$0xff]
    %v771 = vld [vmem:[%s2 + $0x16c0] sm:$0xff]
    %v772 = vld [vmem:[%s2 + $0x16c8] sm:$0xff]
    %v773 = vld [vmem:[%s2 + $0x16d0] sm:$0xff]
    %v774 = vld [vmem:[%s2 + $0x16d8] sm:$0xff]
    %v775 = vld [vmem:[%s2 + $0x16e0] sm:$0xff]
    %v776 = vld [vmem:[%s2 + $0x16e8] sm:$0xff]
    %v777 = vld [vmem:[%s2 + $0x16f0] sm:$0xff]
    %v778 = vld [vmem:[%s2 + $0x16f8] sm:$0xff]
    %v779 = vld [vmem:[%s2 + $0x1700] sm:$0xff]
    %v780 = vld [vmem:[%s2 + $0x1708] sm:$0xff]
    %v781 = vld [vmem:[%s2 + $0x1710] sm:$0xff]
    %v782 = vld [vmem:[%s2 + $0x1718] sm:$0xff]
    %v783 = vld [vmem:[%s2 + $0x1720] sm:$0xff]
    %v784 = vld [vmem:[%s2 + $0x1728] sm:$0xff]
    %v785 = vld [vmem:[%s2 + $0x1730] sm:$0xff]
    %v786 = vld [vmem:[%s2 + $0x1738] sm:$0xff]
    %v787 = vld [vmem:[%s2 + $0x1740] sm:$0xff]
    %v788 = vld [vmem:[%s2 + $0x1748] sm:$0xff]
    %v789 = vld [vmem:[%s2 + $0x1750] sm:$0xff]
    %v790 = vld [vmem:[%s2 + $0x1758] sm:$0xff]
    %v791 = vld [vmem:[%s2 + $0x1760] sm:$0xff]
    %v792 = vld [vmem:[%s2 + $0x1768] sm:$0xff]
    %v793 = vld [vmem:[%s2 + $0x1770] sm:$0xff]
    %v794 = vld [vmem:[%s2 + $0x1778] sm:$0xff]
    %v795 = vld [vmem:[%s2 + $0x1780] sm:$0xff]
    %v796 = vld [vmem:[%s2 + $0x1788] sm:$0xff]
    %v797 = vld [vmem:[%s2 + $0x1790] sm:$0xff]
    %v798 = vld [vmem:[%s2 + $0x1798] sm:$0xff]
    %v799 = vld [vmem:[%s2 + $0x17a0] sm:$0xff]
    %v800 = vld [vmem:[%s2 + $0x17a8] sm:$0xff]
    %v801 = vld [vmem:[%s2 + $0x17b0] sm:$0xff]
    %v802 = vld [vmem:[%s2 + $0x17b8] sm:$0xff]
    %v803 = vld [vmem:[%s2 + $0x17c0] sm:$0xff]
    %v804 = vld [vmem:[%s2 + $0x17c8] sm:$0xff]
    %v805 = vld [vmem:[%s2 + $0x17d0] sm:$0xff]
    %v806 = vld [vmem:[%s2 + $0x17d8] sm:$0xff]
    %v807 = vld [vmem:[%s2 + $0x17e0] sm:$0xff]
    %v808 = vld [vmem:[%s2 + $0x17e8] sm:$0xff]
    %v809 = vld [vmem:[%s2 + $0x17f0] sm:$0xff]
    %v810 = vld [vmem:[%s2 + $0x17f8] sm:$0xff]
    %v811 = vld [vmem:[%s2 + $0x1800] sm:$0xff]
    %v812 = vld [vmem:[%s2 + $0x1808] sm:$0xff]
    %v813 = vld [vmem:[%s2 + $0x1810] sm:$0xff]
    %v814 = vld [vmem:[%s2 + $0x1818] sm:$0xff]
    %v815 = vld [vmem:[%s2 + $0x1820] sm:$0xff]
    %v816 = vld [vmem:[%s2 + $0x1828] sm:$0xff]
    %v817 = vld [vmem:[%s2 + $0x1830] sm:$0xff]
    %v818 = vld [vmem:[%s2 + $0x1838] sm:$0xff]
    %v819 = vld [vmem:[%s2 + $0x1840] sm:$0xff]
    %v820 = vld [vmem:[%s2 + $0x1848] sm:$0xff]
    %v821 = vld [vmem:[%s2 + $0x1850] sm:$0xff]
    %v822 = vld [vmem:[%s2 + $0x1858] sm:$0xff]
    %v823 = vld [vmem:[%s2 + $0x1860] sm:$0xff]
    %v824 = vld [vmem:[%s2 + $0x1868] sm:$0xff]
    %v825 = vld [vmem:[%s2 + $0x1870] sm:$0xff]
    %v826 = vld [vmem:[%s2 + $0x1878] sm:$0xff]
    %v827 = vld [vmem:[%s2 + $0x1880] sm:$0xff]
    %v828 = vld [vmem:[%s2 + $0x1888] sm:$0xff]
    %v829 = vld [vmem:[%s2 + $0x1890] sm:$0xff]
    %v830 = vld [vmem:[%s2 + $0x1898] sm:$0xff]
    %v831 = vld [vmem:[%s2 + $0x18a0] sm:$0xff]
    %v832 = vld [vmem:[%s2 + $0x18a8] sm:$0xff]
    %v833 = vld [vmem:[%s2 + $0x18b0] sm:$0xff]
    %v834 = vld [vmem:[%s2 + $0x18b8] sm:$0xff]
    %v835 = vld [vmem:[%s2 + $0x18c0] sm:$0xff]
    %v836 = vld [vmem:[%s2 + $0x18c8] sm:$0xff]
    %v837 = vld [vmem:[%s2 + $0x18d0] sm:$0xff]
    %v838 = vld [vmem:[%s2 + $0x18d8] sm:$0xff]
    %v839 = vld [vmem:[%s2 + $0x18e0] sm:$0xff]
    %v840 = vld [vmem:[%s2 + $0x18e8] sm:$0xff]
    %v841 = vld [vmem:[%s2 + $0x18f0] sm:$0xff]
    %v842 = vld [vmem:[%s2 + $0x18f8] sm:$0xff]
    %v843 = vld [vmem:[%s2 + $0x1900] sm:$0xff]
    %v844 = vld [vmem:[%s2 + $0x1908] sm:$0xff]
    %v845 = vld [vmem:[%s2 + $0x1910] sm:$0xff]
    %v846 = vld [vmem:[%s2 + $0x1918] sm:$0xff]
    %v847 = vld [vmem:[%s2 + $0x1920] sm:$0xff]
    %v848 = vld [vmem:[%s2 + $0x1928] sm:$0xff]
    %v849 = vld [vmem:[%s2 + $0x1930] sm:$0xff]
    %v850 = vld [vmem:[%s2 + $0x1938] sm:$0xff]
    %v851 = vld [vmem:[%s2 + $0x1940] sm:$0xff]
    %v852 = vld [vmem:[%s2 + $0x1948] sm:$0xff]
    %v853 = vld [vmem:[%s2 + $0x1950] sm:$0xff]
    %v854 = vld [vmem:[%s2 + $0x1958] sm:$0xff]
    %v855 = vld [vmem:[%s2 + $0x1960] sm:$0xff]
    %v856 = vld [vmem:[%s2 + $0x1968] sm:$0xff]
    %v857 = vld [vmem:[%s2 + $0x1970] sm:$0xff]
    %v858 = vld [vmem:[%s2 + $0x1978] sm:$0xff]
    %v859 = vld [vmem:[%s2 + $0x1980] sm:$0xff]
    %v860 = vld [vmem:[%s2 + $0x1988] sm:$0xff]
    %v861 = vld [vmem:[%s2 + $0x1990] sm:$0xff]
    %v862 = vld [vmem:[%s2 + $0x1998] sm:$0xff]
    %v863 = vld [vmem:[%s2 + $0x19a0] sm:$0xff]
    %v864 = vld [vmem:[%s2 + $0x19a8] sm:$0xff]
    %v865 = vld [vmem:[%s2 + $0x19b0] sm:$0xff]
    %v866 = vld [vmem:[%s2 + $0x19b8] sm:$0xff]
    %v867 = vld [vmem:[%s2 + $0x19c0] sm:$0xff]
    %v868 = vld [vmem:[%s2 + $0x19c8] sm:$0xff]
    %v869 = vld [vmem:[%s2 + $0x19d0] sm:$0xff]
    %v870 = vld [vmem:[%s2 + $0x19d8] sm:$0xff]
    %v871 = vld [vmem:[%s2 + $0x19e0] sm:$0xff]
    %v872 = vld [vmem:[%s2 + $0x19e8] sm:$0xff]
    %v873 = vld [vmem:[%s2 + $0x19f0] sm:$0xff]
    %v874 = vld [vmem:[%s2 + $0x19f8] sm:$0xff]
    %v875 = vld [vmem:[%s2 + $0x1a00] sm:$0xff]
    %v876 = vld [vmem:[%s2 + $0x1a08] sm:$0xff]
    %v877 = vld [vmem:[%s2 + $0x1a10] sm:$0xff]
    %v878 = vld [vmem:[%s2 + $0x1a18] sm:$0xff]
    %v879 = vld [vmem:[%s2 + $0x1a20] sm:$0xff]
    %v880 = vld [vmem:[%s2 + $0x1a28] sm:$0xff]
    %v881 = vld [vmem:[%s2 + $0x1a30] sm:$0xff]
    %v882 = vld [vmem:[%s2 + $0x1a38] sm:$0xff]
    %v883 = vld [vmem:[%s2 + $0x1a40] sm:$0xff]
    %v884 = vld [vmem:[%s2 + $0x1a48] sm:$0xff]
    %v885 = vld [vmem:[%s2 + $0x1a50] sm:$0xff]
    %v886 = vld [vmem:[%s2 + $0x1a58] sm:$0xff]
    %v887 = vld [vmem:[%s2 + $0x1a60] sm:$0xff]
    %v888 = vld [vmem:[%s2 + $0x1a68] sm:$0xff]
    %v889 = vld [vmem:[%s2 + $0x1a70] sm:$0xff]
    %v890 = vld [vmem:[%s2 + $0x1a78] sm:$0xff]
    %v891 = vld [vmem:[%s2 + $0x1a80] sm:$0xff]
    %v892 = vld [vmem:[%s2 + $0x1a88] sm:$0xff]
    %v893 = vld [vmem:[%s2 + $0x1a90] sm:$0xff]
    %v894 = vld [vmem:[%s2 + $0x1a98] sm:$0xff]
    %v895 = vld [vmem:[%s2 + $0x1aa0] sm:$0xff]
    %v896 = vld [vmem:[%s2 + $0x1aa8] sm:$0xff]
    %v897 = vld [vmem:[%s2 + $0x1ab0] sm:$0xff]
    %v898 = vld [vmem:[%s2 + $0x1ab8] sm:$0xff]
    %v899 = vld [vmem:[%s2 + $0x1ac0] sm:$0xff]
    %v900 = vld [vmem:[%s2 + $0x1ac8] sm:$0xff]
    %v901 = vld [vmem:[%s2 + $0x1ad0] sm:$0xff]
    %v902 = vld [vmem:[%s2 + $0x1ad8] sm:$0xff]
    %v903 = vld [vmem:[%s2 + $0x1ae0] sm:$0xff]
    %v904 = vld [vmem:[%s2 + $0x1ae8] sm:$0xff]
    %v905 = vld [vmem:[%s2 + $0x1af0] sm:$0xff]
    %v906 = vld [vmem:[%s2 + $0x1af8] sm:$0xff]
    %v907 = vld [vmem:[%s2 + $0x1b00] sm:$0xff]
    %v908 = vld [vmem:[%s2 + $0x1b08] sm:$0xff]
    %v909 = vld [vmem:[%s2 + $0x1b10] sm:$0xff]
    %v910 = vld [vmem:[%s2 + $0x1b18] sm:$0xff]
    %v911 = vld [vmem:[%s2 + $0x1b20] sm:$0xff]
    %v912 = vld [vmem:[%s2 + $0x1b28] sm:$0xff]
    %v913 = vld [vmem:[%s2 + $0x1b30] sm:$0xff]
    %v914 = vld [vmem:[%s2 + $0x1b38] sm:$0xff]
    %v915 = vld [vmem:[%s2 + $0x1b40] sm:$0xff]
    %v916 = vld [vmem:[%s2 + $0x1b48] sm:$0xff]
    %v917 = vld [vmem:[%s2 + $0x1b50] sm:$0xff]
    %v918 = vld [vmem:[%s2 + $0x1b58] sm:$0xff]
    %v919 = vld [vmem:[%s2 + $0x1b60] sm:$0xff]
    %v920 = vld [vmem:[%s2 + $0x1b68] sm:$0xff]
    %v921 = vld [vmem:[%s2 + $0x1b70] sm:$0xff]
    %v922 = vld [vmem:[%s2 + $0x1b78] sm:$0xff]
    %v923 = vld [vmem:[%s2 + $0x1b80] sm:$0xff]
    %v924 = vld [vmem:[%s2 + $0x1b88] sm:$0xff]
    %v925 = vld [vmem:[%s2 + $0x1b90] sm:$0xff]
    %v926 = vld [vmem:[%s2 + $0x1b98] sm:$0xff]
    %v927 = vld [vmem:[%s2 + $0x1ba0] sm:$0xff]
    %v928 = vld [vmem:[%s2 + $0x1ba8] sm:$0xff]
    %v929 = vld [vmem:[%s2 + $0x1bb0] sm:$0xff]
    %v930 = vld [vmem:[%s2 + $0x1bb8] sm:$0xff]
    %v931 = vld [vmem:[%s2 + $0x1bc0] sm:$0xff]
    %v932 = vld [vmem:[%s2 + $0x1bc8] sm:$0xff]
    %v933 = vld [vmem:[%s2 + $0x1bd0] sm:$0xff]
    %v934 = vld [vmem:[%s2 + $0x1bd8] sm:$0xff]
    %v935 = vld [vmem:[%s2 + $0x1be0] sm:$0xff]
    %v936 = vld [vmem:[%s2 + $0x1be8] sm:$0xff]
    %v937 = vld [vmem:[%s2 + $0x1bf0] sm:$0xff]
    %v938 = vld [vmem:[%s2 + $0x1bf8] sm:$0xff]
    %v939 = vld [vmem:[%s2 + $0x1c00] sm:$0xff]
    %v940 = vld [vmem:[%s2 + $0x1c08] sm:$0xff]
    %v941 = vld [vmem:[%s2 + $0x1c10] sm:$0xff]
    %v942 = vld [vmem:[%s2 + $0x1c18] sm:$0xff]
    %v943 = vld [vmem:[%s2 + $0x1c20] sm:$0xff]
    %v944 = vld [vmem:[%s2 + $0x1c28] sm:$0xff]
    %v945 = vld [vmem:[%s2 + $0x1c30] sm:$0xff]
    %v946 = vld [vmem:[%s2 + $0x1c38] sm:$0xff]
    %v947 = vld [vmem:[%s2 + $0x1c40] sm:$0xff]
    %v948 = vld [vmem:[%s2 + $0x1c48] sm:$0xff]
    %v949 = vld [vmem:[%s2 + $0x1c50] sm:$0xff]
    %v950 = vld [vmem:[%s2 + $0x1c58] sm:$0xff]
    %v951 = vld [vmem:[%s2 + $0x1c60] sm:$0xff]
    %v952 = vld [vmem:[%s2 + $0x1c68] sm:$0xff]
    %v953 = vld [vmem:[%s2 + $0x1c70] sm:$0xff]
    %v954 = vld [vmem:[%s2 + $0x1c78] sm:$0xff]
    %v955 = vld [vmem:[%s2 + $0x1c80] sm:$0xff]
    %v956 = vld [vmem:[%s2 + $0x1c88] sm:$0xff]
    %v957 = vld [vmem:[%s2 + $0x1c90] sm:$0xff]
    %v958 = vld [vmem:[%s2 + $0x1c98] sm:$0xff]
    %v959 = vld [vmem:[%s2 + $0x1ca0] sm:$0xff]
    %v960 = vld [vmem:[%s2 + $0x1ca8] sm:$0xff]
    %v961 = vld [vmem:[%s2 + $0x1cb0] sm:$0xff]
    %v962 = vld [vmem:[%s2 + $0x1cb8] sm:$0xff]
    %v963 = vld [vmem:[%s2 + $0x1cc0] sm:$0xff]
    %v964 = vld [vmem:[%s2 + $0x1cc8] sm:$0xff]
    %v965 = vld [vmem:[%s2 + $0x1cd0] sm:$0xff]
    %v966 = vld [vmem:[%s2 + $0x1cd8] sm:$0xff]
    %v967 = vld [vmem:[%s2 + $0x1ce0] sm:$0xff]
    %v968 = vld [vmem:[%s2 + $0x1ce8] sm:$0xff]
    %v969 = vld [vmem:[%s2 + $0x1cf0] sm:$0xff]
    %v970 = vld [vmem:[%s2 + $0x1cf8] sm:$0xff]
    %v971 = vld [vmem:[%s2 + $0x1d00] sm:$0xff]
    %v972 = vld [vmem:[%s2 + $0x1d08] sm:$0xff]
    %v973 = vld [vmem:[%s2 + $0x1d10] sm:$0xff]
    %v974 = vld [vmem:[%s2 + $0x1d18] sm:$0xff]
    %v975 = vld [vmem:[%s2 + $0x1d20] sm:$0xff]
    %v976 = vld [vmem:[%s2 + $0x1d28] sm:$0xff]
    %v977 = vld [vmem:[%s2 + $0x1d30] sm:$0xff]
    %v978 = vld [vmem:[%s2 + $0x1d38] sm:$0xff]
    %v979 = vld [vmem:[%s2 + $0x1d40] sm:$0xff]
    %v980 = vld [vmem:[%s2 + $0x1d48] sm:$0xff]
    %v981 = vld [vmem:[%s2 + $0x1d50] sm:$0xff]
    %v982 = vld [vmem:[%s2 + $0x1d58] sm:$0xff]
    %v983 = vld [vmem:[%s2 + $0x1d60] sm:$0xff]
    %v984 = vld [vmem:[%s2 + $0x1d68] sm:$0xff]
    %v985 = vld [vmem:[%s2 + $0x1d70] sm:$0xff]
    %v986 = vld [vmem:[%s2 + $0x1d78] sm:$0xff]
    %v987 = vld [vmem:[%s2 + $0x1d80] sm:$0xff]
    %v988 = vld [vmem:[%s2 + $0x1d88] sm:$0xff]
    %v989 = vld [vmem:[%s2 + $0x1d90] sm:$0xff]
    %v990 = vld [vmem:[%s2 + $0x1d98] sm:$0xff]
    %v991 = vld [vmem:[%s2 + $0x1da0] sm:$0xff]
    %v992 = vld [vmem:[%s2 + $0x1da8] sm:$0xff]
    %v993 = vld [vmem:[%s2 + $0x1db0] sm:$0xff]
    %v994 = vld [vmem:[%s2 + $0x1db8] sm:$0xff]
    %v995 = vld [vmem:[%s2 + $0x1dc0] sm:$0xff]
    %v996 = vld [vmem:[%s2 + $0x1dc8] sm:$0xff]
    %v997 = vld [vmem:[%s2 + $0x1dd0] sm:$0xff]
    %v998 = vld [vmem:[%s2 + $0x1dd8] sm:$0xff]
    %v999 = vld [vmem:[%s2 + $0x1de0] sm:$0xff]
    %v1000 = vld [vmem:[%s2 + $0x1de8] sm:$0xff]
    %v1001 = vld [vmem:[%s2 + $0x1df0] sm:$0xff]
    %v1002 = vld [vmem:[%s2 + $0x1df8] sm:$0xff]
    %v1003 = vld [vmem:[%s2 + $0x1e00] sm:$0xff]
    %v1004 = vld [vmem:[%s2 + $0x1e08] sm:$0xff]
    %v1005 = vld [vmem:[%s2 + $0x1e10] sm:$0xff]
    %v1006 = vld [vmem:[%s2 + $0x1e18] sm:$0xff]
    %v1007 = vld [vmem:[%s2 + $0x1e20] sm:$0xff]
    %v1008 = vld [vmem:[%s2 + $0x1e28] sm:$0xff]
    %v1009 = vld [vmem:[%s2 + $0x1e30] sm:$0xff]
    %v1010 = vld [vmem:[%s2 + $0x1e38] sm:$0xff]
    %v1011 = vld [vmem:[%s2 + $0x1e40] sm:$0xff]
    %v1012 = vld [vmem:[%s2 + $0x1e48] sm:$0xff]
    %v1013 = vld [vmem:[%s2 + $0x1e50] sm:$0xff]
    %v1014 = vld [vmem:[%s2 + $0x1e58] sm:$0xff]
    %v1015 = vld [vmem:[%s2 + $0x1e60] sm:$0xff]
    %v1016 = vld [vmem:[%s2 + $0x1e68] sm:$0xff]
    %v1017 = vld [vmem:[%s2 + $0x1e70] sm:$0xff]
    %v1018 = vld [vmem:[%s2 + $0x1e78] sm:$0xff]
    %v1019 = vld [vmem:[%s2 + $0x1e80] sm:$0xff]
    %v1020 = vld [vmem:[%s2 + $0x1e88] sm:$0xff]
    %v1021 = vld [vmem:[%s2 + $0x1e90] sm:$0xff]
    %v1022 = vld [vmem:[%s2 + $0x1e98] sm:$0xff]
    %v1023 = vld [vmem:[%s2 + $0x1ea0] sm:$0xff]
    %v1024 = vld [vmem:[%s2 + $0x1ea8] sm:$0xff]
    %v1025 = vld [vmem:[%s2 + $0x1eb0] sm:$0xff]
    %v1026 = vld [vmem:[%s2 + $0x1eb8] sm:$0xff]
    %v1027 = vld [vmem:[%s2 + $0x1ec0] sm:$0xff]
    %v1028 = vld [vmem:[%s2 + $0x1ec8] sm:$0xff]
    %v1029 = vld [vmem:[%s2 + $0x1ed0] sm:$0xff]
    %v1030 = vld [vmem:[%s2 + $0x1ed8] sm:$0xff]
    %v1031 = vld [vmem:[%s2 + $0x1ee0] sm:$0xff]
    %v1032 = vld [vmem:[%s2 + $0x1ee8] sm:$0xff]
    %v1033 = vld [vmem:[%s2 + $0x1ef0] sm:$0xff]
    %v1034 = vld [vmem:[%s2 + $0x1ef8] sm:$0xff]
    %v1035 = vld [vmem:[%s2 + $0x1f00] sm:$0xff]
    %v1036 = vld [vmem:[%s2 + $0x1f08] sm:$0xff]
    %v1037 = vld [vmem:[%s2 + $0x1f10] sm:$0xff]
    %v1038 = vld [vmem:[%s2 + $0x1f18] sm:$0xff]
    %v1039 = vld [vmem:[%s2 + $0x1f20] sm:$0xff]
    %v1040 = vld [vmem:[%s2 + $0x1f28] sm:$0xff]
    %v1041 = vld [vmem:[%s2 + $0x1f30] sm:$0xff]
    %v1042 = vld [vmem:[%s2 + $0x1f38] sm:$0xff]
    %v1043 = vld [vmem:[%s2 + $0x1f40] sm:$0xff]
    %v1044 = vld [vmem:[%s2 + $0x1f48] sm:$0xff]
    %v1045 = vld [vmem:[%s2 + $0x1f50] sm:$0xff]
    %v1046 = vld [vmem:[%s2 + $0x1f58] sm:$0xff]
    %v1047 = vld [vmem:[%s2 + $0x1f60] sm:$0xff]
    %v1048 = vld [vmem:[%s2 + $0x1f68] sm:$0xff]
    %v1049 = vld [vmem:[%s2 + $0x1f70] sm:$0xff]
    %v1050 = vld [vmem:[%s2 + $0x1f78] sm:$0xff]
    %v1051 = vld [vmem:[%s2 + $0x1f80] sm:$0xff]
    %v1052 = vld [vmem:[%s2 + $0x1f88] sm:$0xff]
    %v1053 = vld [vmem:[%s2 + $0x1f90] sm:$0xff]
    %v1054 = vld [vmem:[%s2 + $0x1f98] sm:$0xff]
    %v1055 = vld [vmem:[%s2 + $0x1fa0] sm:$0xff]
    %v1056 = vld [vmem:[%s2 + $0x1fa8] sm:$0xff]
    %v1057 = vld [vmem:[%s2 + $0x1fb0] sm:$0xff]
    %v1058 = vld [vmem:[%s2 + $0x1fb8] sm:$0xff]
    %v1059 = vld [vmem:[%s2 + $0x1fc0] sm:$0xff]
    %v1060 = vld [vmem:[%s2 + $0x1fc8] sm:$0xff]
    %v1061 = vld [vmem:[%s2 + $0x1fd0] sm:$0xff]
    %v1062 = vld [vmem:[%s2 + $0x1fd8] sm:$0xff]
    %v1063 = vld [vmem:[%s2 + $0x1fe0] sm:$0xff]
    %v1064 = vld [vmem:[%s2 + $0x1fe8] sm:$0xff]
    %v1065 = vld [vmem:[%s2 + $0x1ff0] sm:$0xff]
    %v1066 = vld [vmem:[%s2 + $0x1ff8] sm:$0xff]
    %v1067 = vld [vmem:[%s1] sm:$0xff]
    %v1068 = vld [vmem:[%s1 + $0x8] sm:$0xff]
    %v1069 = vld [vmem:[%s1 + $0x10] sm:$0xff]
    %v1070 = vld [vmem:[%s1 + $0x18] sm:$0xff]
    %v1071 = vld [vmem:[%s1 + $0x20] sm:$0xff]
    %v1072 = vld [vmem:[%s1 + $0x28] sm:$0xff]
    %v1073 = vld [vmem:[%s1 + $0x30] sm:$0xff]
    %v1074 = vld [vmem:[%s1 + $0x38] sm:$0xff]
    %v1075 = vld [vmem:[%s1 + $0x40] sm:$0xff]
    %v1076 = vld [vmem:[%s1 + $0x48] sm:$0xff]
    %v1077 = vld [vmem:[%s1 + $0x50] sm:$0xff]
    %v1078 = vld [vmem:[%s1 + $0x58] sm:$0xff]
    %v1079 = vld [vmem:[%s1 + $0x60] sm:$0xff]
    %v1080 = vld [vmem:[%s1 + $0x68] sm:$0xff]
    %v1081 = vld [vmem:[%s1 + $0x70] sm:$0xff]
    %v1082 = vld [vmem:[%s1 + $0x78] sm:$0xff]
    %v1083 = vld [vmem:[%s3] sm:$0xff]
    %v1084 = vld [vmem:[%s3 + $0x8] sm:$0xff]
    %v1085 = vld [vmem:[%s3 + $0x10] sm:$0xff]
    %v1086 = vld [vmem:[%s3 + $0x18] sm:$0xff]
    %v1087 = vld [vmem:[%s3 + $0x20] sm:$0xff]
    %v1088 = vld [vmem:[%s3 + $0x28] sm:$0xff]
    %v1089 = vld [vmem:[%s3 + $0x30] sm:$0xff]
    %v1090 = vld [vmem:[%s3 + $0x38] sm:$0xff]
    %v1091 = vld [vmem:[%s3 + $0x40] sm:$0xff]
    %v1092 = vld [vmem:[%s3 + $0x48] sm:$0xff]
    %v1093 = vld [vmem:[%s3 + $0x50] sm:$0xff]
    %v1094 = vld [vmem:[%s3 + $0x58] sm:$0xff]
    %v1095 = vld [vmem:[%s3 + $0x60] sm:$0xff]
    %v1096 = vld [vmem:[%s3 + $0x68] sm:$0xff]
    %v1097 = vld [vmem:[%s3 + $0x70] sm:$0xff]
    %v1098 = vld [vmem:[%s3 + $0x78] sm:$0xff]
    %v1099 = vld [vmem:[%s3 + $0x80] sm:$0xff]
    %v1100 = vld [vmem:[%s3 + $0x88] sm:$0xff]
    %v1101 = vld [vmem:[%s3 + $0x90] sm:$0xff]
    %v1102 = vld [vmem:[%s3 + $0x98] sm:$0xff]
    %v1103 = vld [vmem:[%s3 + $0xa0] sm:$0xff]
    %v1104 = vld [vmem:[%s3 + $0xa8] sm:$0xff]
    %v1105 = vld [vmem:[%s3 + $0xb0] sm:$0xff]
    %v1106 = vld [vmem:[%s3 + $0xb8] sm:$0xff]
    %v1107 = vld [vmem:[%s3 + $0xc0] sm:$0xff]
    %v1108 = vld [vmem:[%s3 + $0xc8] sm:$0xff]
    %v1109 = vld [vmem:[%s3 + $0xd0] sm:$0xff]
    %v1110 = vld [vmem:[%s3 + $0xd8] sm:$0xff]
    %v1111 = vld [vmem:[%s3 + $0xe0] sm:$0xff]
    %v1112 = vld [vmem:[%s3 + $0xe8] sm:$0xff]
    %v1113 = vld [vmem:[%s3 + $0xf0] sm:$0xff]
    %v1114 = vld [vmem:[%s3 + $0xf8] sm:$0xff]
    %v1115 = vld [vmem:[%s3 + $0x100] sm:$0xff]
    %v1116 = vld [vmem:[%s3 + $0x108] sm:$0xff]
    %v1117 = vld [vmem:[%s3 + $0x110] sm:$0xff]
    %v1118 = vld [vmem:[%s3 + $0x118] sm:$0xff]
    %v1119 = vld [vmem:[%s3 + $0x120] sm:$0xff]
    %v1120 = vld [vmem:[%s3 + $0x128] sm:$0xff]
    %v1121 = vld [vmem:[%s3 + $0x130] sm:$0xff]
    %v1122 = vld [vmem:[%s3 + $0x138] sm:$0xff]
    %v1123 = vld [vmem:[%s3 + $0x140] sm:$0xff]
    %v1124 = vld [vmem:[%s3 + $0x148] sm:$0xff]
    %v1125 = vld [vmem:[%s3 + $0x150] sm:$0xff]
    %v1126 = vld [vmem:[%s3 + $0x158] sm:$0xff]
    %v1127 = vld [vmem:[%s3 + $0x160] sm:$0xff]
    %v1128 = vld [vmem:[%s3 + $0x168] sm:$0xff]
    %v1129 = vld [vmem:[%s3 + $0x170] sm:$0xff]
    %v1130 = vld [vmem:[%s3 + $0x178] sm:$0xff]
    %v1131 = vld [vmem:[%s3 + $0x180] sm:$0xff]
    %v1132 = vld [vmem:[%s3 + $0x188] sm:$0xff]
    %v1133 = vld [vmem:[%s3 + $0x190] sm:$0xff]
    %v1134 = vld [vmem:[%s3 + $0x198] sm:$0xff]
    %v1135 = vld [vmem:[%s3 + $0x1a0] sm:$0xff]
    %v1136 = vld [vmem:[%s3 + $0x1a8] sm:$0xff]
    %v1137 = vld [vmem:[%s3 + $0x1b0] sm:$0xff]
    %v1138 = vld [vmem:[%s3 + $0x1b8] sm:$0xff]
    %v1139 = vld [vmem:[%s3 + $0x1c0] sm:$0xff]
    %v1140 = vld [vmem:[%s3 + $0x1c8] sm:$0xff]
    %v1141 = vld [vmem:[%s3 + $0x1d0] sm:$0xff]
    %v1142 = vld [vmem:[%s3 + $0x1d8] sm:$0xff]
    %v1143 = vld [vmem:[%s3 + $0x1e0] sm:$0xff]
    %v1144 = vld [vmem:[%s3 + $0x1e8] sm:$0xff]
    %v1145 = vld [vmem:[%s3 + $0x1f0] sm:$0xff]
    %v1146 = vld [vmem:[%s3 + $0x1f8] sm:$0xff]
    %v1147 = vld [vmem:[%s3 + $0x200] sm:$0xff]
    %v1148 = vld [vmem:[%s3 + $0x208] sm:$0xff]
    %v1149 = vld [vmem:[%s3 + $0x210] sm:$0xff]
    %v1150 = vld [vmem:[%s3 + $0x218] sm:$0xff]
    %v1151 = vld [vmem:[%s3 + $0x220] sm:$0xff]
    %v1152 = vld [vmem:[%s3 + $0x228] sm:$0xff]
    %v1153 = vld [vmem:[%s3 + $0x230] sm:$0xff]
    %v1154 = vld [vmem:[%s3 + $0x238] sm:$0xff]
    %v1155 = vld [vmem:[%s3 + $0x240] sm:$0xff]
    %v1156 = vld [vmem:[%s3 + $0x248] sm:$0xff]
    %v1157 = vld [vmem:[%s3 + $0x250] sm:$0xff]
    %v1158 = vld [vmem:[%s3 + $0x258] sm:$0xff]
    %v1159 = vld [vmem:[%s3 + $0x260] sm:$0xff]
    %v1160 = vld [vmem:[%s3 + $0x268] sm:$0xff]
    %v1161 = vld [vmem:[%s3 + $0x270] sm:$0xff]
    %v1162 = vld [vmem:[%s3 + $0x278] sm:$0xff]
    %v1163 = vld [vmem:[%s3 + $0x280] sm:$0xff]
    %v1164 = vld [vmem:[%s3 + $0x288] sm:$0xff]
    %v1165 = vld [vmem:[%s3 + $0x290] sm:$0xff]
    %v1166 = vld [vmem:[%s3 + $0x298] sm:$0xff]
    %v1167 = vld [vmem:[%s3 + $0x2a0] sm:$0xff]
    %v1168 = vld [vmem:[%s3 + $0x2a8] sm:$0xff]
    %v1169 = vld [vmem:[%s3 + $0x2b0] sm:$0xff]
    %v1170 = vld [vmem:[%s3 + $0x2b8] sm:$0xff]
    %v1171 = vld [vmem:[%s3 + $0x2c0] sm:$0xff]
    %v1172 = vld [vmem:[%s3 + $0x2c8] sm:$0xff]
    %v1173 = vld [vmem:[%s3 + $0x2d0] sm:$0xff]
    %v1174 = vld [vmem:[%s3 + $0x2d8] sm:$0xff]
    %v1175 = vld [vmem:[%s3 + $0x2e0] sm:$0xff]
    %v1176 = vld [vmem:[%s3 + $0x2e8] sm:$0xff]
    %v1177 = vld [vmem:[%s3 + $0x2f0] sm:$0xff]
    %v1178 = vld [vmem:[%s3 + $0x2f8] sm:$0xff]
    %v1179 = vld [vmem:[%s3 + $0x300] sm:$0xff]
    %v1180 = vld [vmem:[%s3 + $0x308] sm:$0xff]
    %v1181 = vld [vmem:[%s3 + $0x310] sm:$0xff]
    %v1182 = vld [vmem:[%s3 + $0x318] sm:$0xff]
    %v1183 = vld [vmem:[%s3 + $0x320] sm:$0xff]
    %v1184 = vld [vmem:[%s3 + $0x328] sm:$0xff]
    %v1185 = vld [vmem:[%s3 + $0x330] sm:$0xff]
    %v1186 = vld [vmem:[%s3 + $0x338] sm:$0xff]
    %v1187 = vld [vmem:[%s3 + $0x340] sm:$0xff]
    %v1188 = vld [vmem:[%s3 + $0x348] sm:$0xff]
    %v1189 = vld [vmem:[%s3 + $0x350] sm:$0xff]
    %v1190 = vld [vmem:[%s3 + $0x358] sm:$0xff]
    %v1191 = vld [vmem:[%s3 + $0x360] sm:$0xff]
    %v1192 = vld [vmem:[%s3 + $0x368] sm:$0xff]
    %v1193 = vld [vmem:[%s3 + $0x370] sm:$0xff]
    %v1194 = vld [vmem:[%s3 + $0x378] sm:$0xff]
    %v1195 = vld [vmem:[%s3 + $0x380] sm:$0xff]
    %v1196 = vld [vmem:[%s3 + $0x388] sm:$0xff]
    %v1197 = vld [vmem:[%s3 + $0x390] sm:$0xff]
    %v1198 = vld [vmem:[%s3 + $0x398] sm:$0xff]
    %v1199 = vld [vmem:[%s3 + $0x3a0] sm:$0xff]
    %v1200 = vld [vmem:[%s3 + $0x3a8] sm:$0xff]
    %v1201 = vld [vmem:[%s3 + $0x3b0] sm:$0xff]
    %v1202 = vld [vmem:[%s3 + $0x3b8] sm:$0xff]
    %v1203 = vld [vmem:[%s3 + $0x3c0] sm:$0xff]
    %v1204 = vld [vmem:[%s3 + $0x3c8] sm:$0xff]
    %v1205 = vld [vmem:[%s3 + $0x3d0] sm:$0xff]
    %v1206 = vld [vmem:[%s3 + $0x3d8] sm:$0xff]
    %v1207 = vld [vmem:[%s3 + $0x3e0] sm:$0xff]
    %v1208 = vld [vmem:[%s3 + $0x3e8] sm:$0xff]
    %v1209 = vld [vmem:[%s3 + $0x3f0] sm:$0xff]
    %v1210 = vld [vmem:[%s3 + $0x3f8] sm:$0xff]
    %v1211 = vld [vmem:[%s3 + $0x400] sm:$0xff]
    %v1212 = vld [vmem:[%s3 + $0x408] sm:$0xff]
    %v1213 = vld [vmem:[%s3 + $0x410] sm:$0xff]
    %v1214 = vld [vmem:[%s3 + $0x418] sm:$0xff]
    %v1215 = vld [vmem:[%s3 + $0x420] sm:$0xff]
    %v1216 = vld [vmem:[%s3 + $0x428] sm:$0xff]
    %v1217 = vld [vmem:[%s3 + $0x430] sm:$0xff]
    %v1218 = vld [vmem:[%s3 + $0x438] sm:$0xff]
    %v1219 = vld [vmem:[%s3 + $0x440] sm:$0xff]
    %v1220 = vld [vmem:[%s3 + $0x448] sm:$0xff]
    %v1221 = vld [vmem:[%s3 + $0x450] sm:$0xff]
    %v1222 = vld [vmem:[%s3 + $0x458] sm:$0xff]
    %v1223 = vld [vmem:[%s3 + $0x460] sm:$0xff]
    %v1224 = vld [vmem:[%s3 + $0x468] sm:$0xff]
    %v1225 = vld [vmem:[%s3 + $0x470] sm:$0xff]
    %v1226 = vld [vmem:[%s3 + $0x478] sm:$0xff]
    %v1227 = vld [vmem:[%s3 + $0x480] sm:$0xff]
    %v1228 = vld [vmem:[%s3 + $0x488] sm:$0xff]
    %v1229 = vld [vmem:[%s3 + $0x490] sm:$0xff]
    %v1230 = vld [vmem:[%s3 + $0x498] sm:$0xff]
    %v1231 = vld [vmem:[%s3 + $0x4a0] sm:$0xff]
    %v1232 = vld [vmem:[%s3 + $0x4a8] sm:$0xff]
    %v1233 = vld [vmem:[%s3 + $0x4b0] sm:$0xff]
    %v1234 = vld [vmem:[%s3 + $0x4b8] sm:$0xff]
    %v1235 = vld [vmem:[%s3 + $0x4c0] sm:$0xff]
    %v1236 = vld [vmem:[%s3 + $0x4c8] sm:$0xff]
    %v1237 = vld [vmem:[%s3 + $0x4d0] sm:$0xff]
    %v1238 = vld [vmem:[%s3 + $0x4d8] sm:$0xff]
    %v1239 = vld [vmem:[%s3 + $0x4e0] sm:$0xff]
    %v1240 = vld [vmem:[%s3 + $0x4e8] sm:$0xff]
    %v1241 = vld [vmem:[%s3 + $0x4f0] sm:$0xff]
    %v1242 = vld [vmem:[%s3 + $0x4f8] sm:$0xff]
    %v1243 = vld [vmem:[%s3 + $0x500] sm:$0xff]
    %v1244 = vld [vmem:[%s3 + $0x508] sm:$0xff]
    %v1245 = vld [vmem:[%s3 + $0x510] sm:$0xff]
    %v1246 = vld [vmem:[%s3 + $0x518] sm:$0xff]
    %v1247 = vld [vmem:[%s3 + $0x520] sm:$0xff]
    %v1248 = vld [vmem:[%s3 + $0x528] sm:$0xff]
    %v1249 = vld [vmem:[%s3 + $0x530] sm:$0xff]
    %v1250 = vld [vmem:[%s3 + $0x538] sm:$0xff]
    %v1251 = vld [vmem:[%s3 + $0x540] sm:$0xff]
    %v1252 = vld [vmem:[%s3 + $0x548] sm:$0xff]
    %v1253 = vld [vmem:[%s3 + $0x550] sm:$0xff]
    %v1254 = vld [vmem:[%s3 + $0x558] sm:$0xff]
    %v1255 = vld [vmem:[%s3 + $0x560] sm:$0xff]
    %v1256 = vld [vmem:[%s3 + $0x568] sm:$0xff]
    %v1257 = vld [vmem:[%s3 + $0x570] sm:$0xff]
    %v1258 = vld [vmem:[%s3 + $0x578] sm:$0xff]
    %v1259 = vld [vmem:[%s3 + $0x580] sm:$0xff]
    %v1260 = vld [vmem:[%s3 + $0x588] sm:$0xff]
    %v1261 = vld [vmem:[%s3 + $0x590] sm:$0xff]
    %v1262 = vld [vmem:[%s3 + $0x598] sm:$0xff]
    %v1263 = vld [vmem:[%s3 + $0x5a0] sm:$0xff]
    %v1264 = vld [vmem:[%s3 + $0x5a8] sm:$0xff]
    %v1265 = vld [vmem:[%s3 + $0x5b0] sm:$0xff]
    %v1266 = vld [vmem:[%s3 + $0x5b8] sm:$0xff]
    %v1267 = vld [vmem:[%s3 + $0x5c0] sm:$0xff]
    %v1268 = vld [vmem:[%s3 + $0x5c8] sm:$0xff]
    %v1269 = vld [vmem:[%s3 + $0x5d0] sm:$0xff]
    %v1270 = vld [vmem:[%s3 + $0x5d8] sm:$0xff]
    %v1271 = vld [vmem:[%s3 + $0x5e0] sm:$0xff]
    %v1272 = vld [vmem:[%s3 + $0x5e8] sm:$0xff]
    %v1273 = vld [vmem:[%s3 + $0x5f0] sm:$0xff]
    %v1274 = vld [vmem:[%s3 + $0x5f8] sm:$0xff]
    %v1275 = vld [vmem:[%s3 + $0x600] sm:$0xff]
    %v1276 = vld [vmem:[%s3 + $0x608] sm:$0xff]
    %v1277 = vld [vmem:[%s3 + $0x610] sm:$0xff]
    %v1278 = vld [vmem:[%s3 + $0x618] sm:$0xff]
    %v1279 = vld [vmem:[%s3 + $0x620] sm:$0xff]
    %v1280 = vld [vmem:[%s3 + $0x628] sm:$0xff]
    %v1281 = vld [vmem:[%s3 + $0x630] sm:$0xff]
    %v1282 = vld [vmem:[%s3 + $0x638] sm:$0xff]
    %v1283 = vld [vmem:[%s3 + $0x640] sm:$0xff]
    %v1284 = vld [vmem:[%s3 + $0x648] sm:$0xff]
    %v1285 = vld [vmem:[%s3 + $0x650] sm:$0xff]
    %v1286 = vld [vmem:[%s3 + $0x658] sm:$0xff]
    %v1287 = vld [vmem:[%s3 + $0x660] sm:$0xff]
    %v1288 = vld [vmem:[%s3 + $0x668] sm:$0xff]
    %v1289 = vld [vmem:[%s3 + $0x670] sm:$0xff]
    %v1290 = vld [vmem:[%s3 + $0x678] sm:$0xff]
    %v1291 = vld [vmem:[%s3 + $0x680] sm:$0xff]
    %v1292 = vld [vmem:[%s3 + $0x688] sm:$0xff]
    %v1293 = vld [vmem:[%s3 + $0x690] sm:$0xff]
    %v1294 = vld [vmem:[%s3 + $0x698] sm:$0xff]
    %v1295 = vld [vmem:[%s3 + $0x6a0] sm:$0xff]
    %v1296 = vld [vmem:[%s3 + $0x6a8] sm:$0xff]
    %v1297 = vld [vmem:[%s3 + $0x6b0] sm:$0xff]
    %v1298 = vld [vmem:[%s3 + $0x6b8] sm:$0xff]
    %v1299 = vld [vmem:[%s3 + $0x6c0] sm:$0xff]
    %v1300 = vld [vmem:[%s3 + $0x6c8] sm:$0xff]
    %v1301 = vld [vmem:[%s3 + $0x6d0] sm:$0xff]
    %v1302 = vld [vmem:[%s3 + $0x6d8] sm:$0xff]
    %v1303 = vld [vmem:[%s3 + $0x6e0] sm:$0xff]
    %v1304 = vld [vmem:[%s3 + $0x6e8] sm:$0xff]
    %v1305 = vld [vmem:[%s3 + $0x6f0] sm:$0xff]
    %v1306 = vld [vmem:[%s3 + $0x6f8] sm:$0xff]
    %v1307 = vld [vmem:[%s3 + $0x700] sm:$0xff]
    %v1308 = vld [vmem:[%s3 + $0x708] sm:$0xff]
    %v1309 = vld [vmem:[%s3 + $0x710] sm:$0xff]
    %v1310 = vld [vmem:[%s3 + $0x718] sm:$0xff]
    %v1311 = vld [vmem:[%s3 + $0x720] sm:$0xff]
    %v1312 = vld [vmem:[%s3 + $0x728] sm:$0xff]
    %v1313 = vld [vmem:[%s3 + $0x730] sm:$0xff]
    %v1314 = vld [vmem:[%s3 + $0x738] sm:$0xff]
    %v1315 = vld [vmem:[%s3 + $0x740] sm:$0xff]
    %v1316 = vld [vmem:[%s3 + $0x748] sm:$0xff]
    %v1317 = vld [vmem:[%s3 + $0x750] sm:$0xff]
    %v1318 = vld [vmem:[%s3 + $0x758] sm:$0xff]
    %v1319 = vld [vmem:[%s3 + $0x760] sm:$0xff]
    %v1320 = vld [vmem:[%s3 + $0x768] sm:$0xff]
    %v1321 = vld [vmem:[%s3 + $0x770] sm:$0xff]
    %v1322 = vld [vmem:[%s3 + $0x778] sm:$0xff]
    %v1323 = vld [vmem:[%s3 + $0x780] sm:$0xff]
    %v1324 = vld [vmem:[%s3 + $0x788] sm:$0xff]
    %v1325 = vld [vmem:[%s3 + $0x790] sm:$0xff]
    %v1326 = vld [vmem:[%s3 + $0x798] sm:$0xff]
    %v1327 = vld [vmem:[%s3 + $0x7a0] sm:$0xff]
    %v1328 = vld [vmem:[%s3 + $0x7a8] sm:$0xff]
    %v1329 = vld [vmem:[%s3 + $0x7b0] sm:$0xff]
    %v1330 = vld [vmem:[%s3 + $0x7b8] sm:$0xff]
    %v1331 = vld [vmem:[%s3 + $0x7c0] sm:$0xff]
    %v1332 = vld [vmem:[%s3 + $0x7c8] sm:$0xff]
    %v1333 = vld [vmem:[%s3 + $0x7d0] sm:$0xff]
    %v1334 = vld [vmem:[%s3 + $0x7d8] sm:$0xff]
    %v1335 = vld [vmem:[%s3 + $0x7e0] sm:$0xff]
    %v1336 = vld [vmem:[%s3 + $0x7e8] sm:$0xff]
    %v1337 = vld [vmem:[%s3 + $0x7f0] sm:$0xff]
    %v1338 = vld [vmem:[%s3 + $0x7f8] sm:$0xff]
    %v1339 = vld [vmem:[%s3 + $0x800] sm:$0xff]
    %v1340 = vld [vmem:[%s3 + $0x808] sm:$0xff]
    %v1341 = vld [vmem:[%s3 + $0x810] sm:$0xff]
    %v1342 = vld [vmem:[%s3 + $0x818] sm:$0xff]
    %v1343 = vld [vmem:[%s3 + $0x820] sm:$0xff]
    %v1344 = vld [vmem:[%s3 + $0x828] sm:$0xff]
    %v1345 = vld [vmem:[%s3 + $0x830] sm:$0xff]
    %v1346 = vld [vmem:[%s3 + $0x838] sm:$0xff]
    %v1347 = vld [vmem:[%s3 + $0x840] sm:$0xff]
    %v1348 = vld [vmem:[%s3 + $0x848] sm:$0xff]
    %v1349 = vld [vmem:[%s3 + $0x850] sm:$0xff]
    %v1350 = vld [vmem:[%s3 + $0x858] sm:$0xff]
    %v1351 = vld [vmem:[%s3 + $0x860] sm:$0xff]
    %v1352 = vld [vmem:[%s3 + $0x868] sm:$0xff]
    %v1353 = vld [vmem:[%s3 + $0x870] sm:$0xff]
    %v1354 = vld [vmem:[%s3 + $0x878] sm:$0xff]
    %v1355 = vld [vmem:[%s3 + $0x880] sm:$0xff]
    %v1356 = vld [vmem:[%s3 + $0x888] sm:$0xff]
    %v1357 = vld [vmem:[%s3 + $0x890] sm:$0xff]
    %v1358 = vld [vmem:[%s3 + $0x898] sm:$0xff]
    %v1359 = vld [vmem:[%s3 + $0x8a0] sm:$0xff]
    %v1360 = vld [vmem:[%s3 + $0x8a8] sm:$0xff]
    %v1361 = vld [vmem:[%s3 + $0x8b0] sm:$0xff]
    %v1362 = vld [vmem:[%s3 + $0x8b8] sm:$0xff]
    %v1363 = vld [vmem:[%s3 + $0x8c0] sm:$0xff]
    %v1364 = vld [vmem:[%s3 + $0x8c8] sm:$0xff]
    %v1365 = vld [vmem:[%s3 + $0x8d0] sm:$0xff]
    %v1366 = vld [vmem:[%s3 + $0x8d8] sm:$0xff]
    %v1367 = vld [vmem:[%s3 + $0x8e0] sm:$0xff]
    %v1368 = vld [vmem:[%s3 + $0x8e8] sm:$0xff]
    %v1369 = vld [vmem:[%s3 + $0x8f0] sm:$0xff]
    %v1370 = vld [vmem:[%s3 + $0x8f8] sm:$0xff]
    %v1371 = vld [vmem:[%s3 + $0x900] sm:$0xff]
    %v1372 = vld [vmem:[%s3 + $0x908] sm:$0xff]
    %v1373 = vld [vmem:[%s3 + $0x910] sm:$0xff]
    %v1374 = vld [vmem:[%s3 + $0x918] sm:$0xff]
    %v1375 = vld [vmem:[%s3 + $0x920] sm:$0xff]
    %v1376 = vld [vmem:[%s3 + $0x928] sm:$0xff]
    %v1377 = vld [vmem:[%s3 + $0x930] sm:$0xff]
    %v1378 = vld [vmem:[%s3 + $0x938] sm:$0xff]
    %v1379 = vld [vmem:[%s3 + $0x940] sm:$0xff]
    %v1380 = vld [vmem:[%s3 + $0x948] sm:$0xff]
    %v1381 = vld [vmem:[%s3 + $0x950] sm:$0xff]
    %v1382 = vld [vmem:[%s3 + $0x958] sm:$0xff]
    %v1383 = vld [vmem:[%s3 + $0x960] sm:$0xff]
    %v1384 = vld [vmem:[%s3 + $0x968] sm:$0xff]
    %v1385 = vld [vmem:[%s3 + $0x970] sm:$0xff]
    %v1386 = vld [vmem:[%s3 + $0x978] sm:$0xff]
    %v1387 = vld [vmem:[%s3 + $0x980] sm:$0xff]
    %v1388 = vld [vmem:[%s3 + $0x988] sm:$0xff]
    %v1389 = vld [vmem:[%s3 + $0x990] sm:$0xff]
    %v1390 = vld [vmem:[%s3 + $0x998] sm:$0xff]
    %v1391 = vld [vmem:[%s3 + $0x9a0] sm:$0xff]
    %v1392 = vld [vmem:[%s3 + $0x9a8] sm:$0xff]
    %v1393 = vld [vmem:[%s3 + $0x9b0] sm:$0xff]
    %v1394 = vld [vmem:[%s3 + $0x9b8] sm:$0xff]
    %v1395 = vld [vmem:[%s3 + $0x9c0] sm:$0xff]
    %v1396 = vld [vmem:[%s3 + $0x9c8] sm:$0xff]
    %v1397 = vld [vmem:[%s3 + $0x9d0] sm:$0xff]
    %v1398 = vld [vmem:[%s3 + $0x9d8] sm:$0xff]
    %v1399 = vld [vmem:[%s3 + $0x9e0] sm:$0xff]
    %v1400 = vld [vmem:[%s3 + $0x9e8] sm:$0xff]
    %v1401 = vld [vmem:[%s3 + $0x9f0] sm:$0xff]
    %v1402 = vld [vmem:[%s3 + $0x9f8] sm:$0xff]
    %v1403 = vld [vmem:[%s3 + $0xa00] sm:$0xff]
    %v1404 = vld [vmem:[%s3 + $0xa08] sm:$0xff]
    %v1405 = vld [vmem:[%s3 + $0xa10] sm:$0xff]
    %v1406 = vld [vmem:[%s3 + $0xa18] sm:$0xff]
    %v1407 = vld [vmem:[%s3 + $0xa20] sm:$0xff]
    %v1408 = vld [vmem:[%s3 + $0xa28] sm:$0xff]
    %v1409 = vld [vmem:[%s3 + $0xa30] sm:$0xff]
    %v1410 = vld [vmem:[%s3 + $0xa38] sm:$0xff]
    %v1411 = vld [vmem:[%s3 + $0xa40] sm:$0xff]
    %v1412 = vld [vmem:[%s3 + $0xa48] sm:$0xff]
    %v1413 = vld [vmem:[%s3 + $0xa50] sm:$0xff]
    %v1414 = vld [vmem:[%s3 + $0xa58] sm:$0xff]
    %v1415 = vld [vmem:[%s3 + $0xa60] sm:$0xff]
    %v1416 = vld [vmem:[%s3 + $0xa68] sm:$0xff]
    %v1417 = vld [vmem:[%s3 + $0xa70] sm:$0xff]
    %v1418 = vld [vmem:[%s3 + $0xa78] sm:$0xff]
    %v1419 = vld [vmem:[%s3 + $0xa80] sm:$0xff]
    %v1420 = vld [vmem:[%s3 + $0xa88] sm:$0xff]
    %v1421 = vld [vmem:[%s3 + $0xa90] sm:$0xff]
    %v1422 = vld [vmem:[%s3 + $0xa98] sm:$0xff]
    %v1423 = vld [vmem:[%s3 + $0xaa0] sm:$0xff]
    %v1424 = vld [vmem:[%s3 + $0xaa8] sm:$0xff]
    %v1425 = vld [vmem:[%s3 + $0xab0] sm:$0xff]
    %v1426 = vld [vmem:[%s3 + $0xab8] sm:$0xff]
    %v1427 = vld [vmem:[%s3 + $0xac0] sm:$0xff]
    %v1428 = vld [vmem:[%s3 + $0xac8] sm:$0xff]
    %v1429 = vld [vmem:[%s3 + $0xad0] sm:$0xff]
    %v1430 = vld [vmem:[%s3 + $0xad8] sm:$0xff]
    %v1431 = vld [vmem:[%s3 + $0xae0] sm:$0xff]
    %v1432 = vld [vmem:[%s3 + $0xae8] sm:$0xff]
    %v1433 = vld [vmem:[%s3 + $0xaf0] sm:$0xff]
    %v1434 = vld [vmem:[%s3 + $0xaf8] sm:$0xff]
    %v1435 = vld [vmem:[%s3 + $0xb00] sm:$0xff]
    %v1436 = vld [vmem:[%s3 + $0xb08] sm:$0xff]
    %v1437 = vld [vmem:[%s3 + $0xb10] sm:$0xff]
    %v1438 = vld [vmem:[%s3 + $0xb18] sm:$0xff]
    %v1439 = vld [vmem:[%s3 + $0xb20] sm:$0xff]
    %v1440 = vld [vmem:[%s3 + $0xb28] sm:$0xff]
    %v1441 = vld [vmem:[%s3 + $0xb30] sm:$0xff]
    %v1442 = vld [vmem:[%s3 + $0xb38] sm:$0xff]
    %v1443 = vld [vmem:[%s3 + $0xb40] sm:$0xff]
    %v1444 = vld [vmem:[%s3 + $0xb48] sm:$0xff]
    %v1445 = vld [vmem:[%s3 + $0xb50] sm:$0xff]
    %v1446 = vld [vmem:[%s3 + $0xb58] sm:$0xff]
    %v1447 = vld [vmem:[%s3 + $0xb60] sm:$0xff]
    %v1448 = vld [vmem:[%s3 + $0xb68] sm:$0xff]
    %v1449 = vld [vmem:[%s3 + $0xb70] sm:$0xff]
    %v1450 = vld [vmem:[%s3 + $0xb78] sm:$0xff]
    %v1451 = vld [vmem:[%s3 + $0xb80] sm:$0xff]
    %v1452 = vld [vmem:[%s3 + $0xb88] sm:$0xff]
    %v1453 = vld [vmem:[%s3 + $0xb90] sm:$0xff]
    %v1454 = vld [vmem:[%s3 + $0xb98] sm:$0xff]
    %v1455 = vld [vmem:[%s3 + $0xba0] sm:$0xff]
    %v1456 = vld [vmem:[%s3 + $0xba8] sm:$0xff]
    %v1457 = vld [vmem:[%s3 + $0xbb0] sm:$0xff]
    %v1458 = vld [vmem:[%s3 + $0xbb8] sm:$0xff]
    %v1459 = vld [vmem:[%s3 + $0xbc0] sm:$0xff]
    %v1460 = vld [vmem:[%s3 + $0xbc8] sm:$0xff]
    %v1461 = vld [vmem:[%s3 + $0xbd0] sm:$0xff]
    %v1462 = vld [vmem:[%s3 + $0xbd8] sm:$0xff]
    %v1463 = vld [vmem:[%s3 + $0xbe0] sm:$0xff]
    %v1464 = vld [vmem:[%s3 + $0xbe8] sm:$0xff]
    %v1465 = vld [vmem:[%s3 + $0xbf0] sm:$0xff]
    %v1466 = vld [vmem:[%s3 + $0xbf8] sm:$0xff]
    %v1467 = vld [vmem:[%s3 + $0xc00] sm:$0xff]
    %v1468 = vld [vmem:[%s3 + $0xc08] sm:$0xff]
    %v1469 = vld [vmem:[%s3 + $0xc10] sm:$0xff]
    %v1470 = vld [vmem:[%s3 + $0xc18] sm:$0xff]
    %v1471 = vld [vmem:[%s3 + $0xc20] sm:$0xff]
    %v1472 = vld [vmem:[%s3 + $0xc28] sm:$0xff]
    %v1473 = vld [vmem:[%s3 + $0xc30] sm:$0xff]
    %v1474 = vld [vmem:[%s3 + $0xc38] sm:$0xff]
    %v1475 = vld [vmem:[%s3 + $0xc40] sm:$0xff]
    %v1476 = vld [vmem:[%s3 + $0xc48] sm:$0xff]
    %v1477 = vld [vmem:[%s3 + $0xc50] sm:$0xff]
    %v1478 = vld [vmem:[%s3 + $0xc58] sm:$0xff]
    %v1479 = vld [vmem:[%s3 + $0xc60] sm:$0xff]
    %v1480 = vld [vmem:[%s3 + $0xc68] sm:$0xff]
    %v1481 = vld [vmem:[%s3 + $0xc70] sm:$0xff]
    %v1482 = vld [vmem:[%s3 + $0xc78] sm:$0xff]
    %v1483 = vld [vmem:[%s3 + $0xc80] sm:$0xff]
    %v1484 = vld [vmem:[%s3 + $0xc88] sm:$0xff]
    %v1485 = vld [vmem:[%s3 + $0xc90] sm:$0xff]
    %v1486 = vld [vmem:[%s3 + $0xc98] sm:$0xff]
    %v1487 = vld [vmem:[%s3 + $0xca0] sm:$0xff]
    %v1488 = vld [vmem:[%s3 + $0xca8] sm:$0xff]
    %v1489 = vld [vmem:[%s3 + $0xcb0] sm:$0xff]
    %v1490 = vld [vmem:[%s3 + $0xcb8] sm:$0xff]
    %v1491 = vld [vmem:[%s3 + $0xcc0] sm:$0xff]
    %v1492 = vld [vmem:[%s3 + $0xcc8] sm:$0xff]
    %v1493 = vld [vmem:[%s3 + $0xcd0] sm:$0xff]
    %v1494 = vld [vmem:[%s3 + $0xcd8] sm:$0xff]
    %v1495 = vld [vmem:[%s3 + $0xce0] sm:$0xff]
    %v1496 = vld [vmem:[%s3 + $0xce8] sm:$0xff]
    %v1497 = vld [vmem:[%s3 + $0xcf0] sm:$0xff]
    %v1498 = vld [vmem:[%s3 + $0xcf8] sm:$0xff]
    %v1499 = vld [vmem:[%s3 + $0xd00] sm:$0xff]
    %v1500 = vld [vmem:[%s3 + $0xd08] sm:$0xff]
    %v1501 = vld [vmem:[%s3 + $0xd10] sm:$0xff]
    %v1502 = vld [vmem:[%s3 + $0xd18] sm:$0xff]
    %v1503 = vld [vmem:[%s3 + $0xd20] sm:$0xff]
    %v1504 = vld [vmem:[%s3 + $0xd28] sm:$0xff]
    %v1505 = vld [vmem:[%s3 + $0xd30] sm:$0xff]
    %v1506 = vld [vmem:[%s3 + $0xd38] sm:$0xff]
    %v1507 = vld [vmem:[%s3 + $0xd40] sm:$0xff]
    %v1508 = vld [vmem:[%s3 + $0xd48] sm:$0xff]
    %v1509 = vld [vmem:[%s3 + $0xd50] sm:$0xff]
    %v1510 = vld [vmem:[%s3 + $0xd58] sm:$0xff]
    %v1511 = vld [vmem:[%s3 + $0xd60] sm:$0xff]
    %v1512 = vld [vmem:[%s3 + $0xd68] sm:$0xff]
    %v1513 = vld [vmem:[%s3 + $0xd70] sm:$0xff]
    %v1514 = vld [vmem:[%s3 + $0xd78] sm:$0xff]
    %v1515 = vld [vmem:[%s3 + $0xd80] sm:$0xff]
    %v1516 = vld [vmem:[%s3 + $0xd88] sm:$0xff]
    %v1517 = vld [vmem:[%s3 + $0xd90] sm:$0xff]
    %v1518 = vld [vmem:[%s3 + $0xd98] sm:$0xff]
    %v1519 = vld [vmem:[%s3 + $0xda0] sm:$0xff]
    %v1520 = vld [vmem:[%s3 + $0xda8] sm:$0xff]
    %v1521 = vld [vmem:[%s3 + $0xdb0] sm:$0xff]
    %v1522 = vld [vmem:[%s3 + $0xdb8] sm:$0xff]
    %v1523 = vld [vmem:[%s3 + $0xdc0] sm:$0xff]
    %v1524 = vld [vmem:[%s3 + $0xdc8] sm:$0xff]
    %v1525 = vld [vmem:[%s3 + $0xdd0] sm:$0xff]
    %v1526 = vld [vmem:[%s3 + $0xdd8] sm:$0xff]
    %v1527 = vld [vmem:[%s3 + $0xde0] sm:$0xff]
    %v1528 = vld [vmem:[%s3 + $0xde8] sm:$0xff]
    %v1529 = vld [vmem:[%s3 + $0xdf0] sm:$0xff]
    %v1530 = vld [vmem:[%s3 + $0xdf8] sm:$0xff]
    %v1531 = vld [vmem:[%s3 + $0xe00] sm:$0xff]
    %v1532 = vld [vmem:[%s3 + $0xe08] sm:$0xff]
    %v1533 = vld [vmem:[%s3 + $0xe10] sm:$0xff]
    %v1534 = vld [vmem:[%s3 + $0xe18] sm:$0xff]
    %v1535 = vld [vmem:[%s3 + $0xe20] sm:$0xff]
    %v1536 = vld [vmem:[%s3 + $0xe28] sm:$0xff]
    %v1537 = vld [vmem:[%s3 + $0xe30] sm:$0xff]
    %v1538 = vld [vmem:[%s3 + $0xe38] sm:$0xff]
    %v1539 = vld [vmem:[%s3 + $0xe40] sm:$0xff]
    %v1540 = vld [vmem:[%s3 + $0xe48] sm:$0xff]
    %v1541 = vld [vmem:[%s3 + $0xe50] sm:$0xff]
    %v1542 = vld [vmem:[%s3 + $0xe58] sm:$0xff]
    %v1543 = vld [vmem:[%s3 + $0xe60] sm:$0xff]
    %v1544 = vld [vmem:[%s3 + $0xe68] sm:$0xff]
    %v1545 = vld [vmem:[%s3 + $0xe70] sm:$0xff]
    %v1546 = vld [vmem:[%s3 + $0xe78] sm:$0xff]
    %v1547 = vld [vmem:[%s3 + $0xe80] sm:$0xff]
    %v1548 = vld [vmem:[%s3 + $0xe88] sm:$0xff]
    %v1549 = vld [vmem:[%s3 + $0xe90] sm:$0xff]
    %v1550 = vld [vmem:[%s3 + $0xe98] sm:$0xff]
    %v1551 = vld [vmem:[%s3 + $0xea0] sm:$0xff]
    %v1552 = vld [vmem:[%s3 + $0xea8] sm:$0xff]
    %v1553 = vld [vmem:[%s3 + $0xeb0] sm:$0xff]
    %v1554 = vld [vmem:[%s3 + $0xeb8] sm:$0xff]
    %v1555 = vld [vmem:[%s3 + $0xec0] sm:$0xff]
    %v1556 = vld [vmem:[%s3 + $0xec8] sm:$0xff]
    %v1557 = vld [vmem:[%s3 + $0xed0] sm:$0xff]
    %v1558 = vld [vmem:[%s3 + $0xed8] sm:$0xff]
    %v1559 = vld [vmem:[%s3 + $0xee0] sm:$0xff]
    %v1560 = vld [vmem:[%s3 + $0xee8] sm:$0xff]
    %v1561 = vld [vmem:[%s3 + $0xef0] sm:$0xff]
    %v1562 = vld [vmem:[%s3 + $0xef8] sm:$0xff]
    %v1563 = vld [vmem:[%s3 + $0xf00] sm:$0xff]
    %v1564 = vld [vmem:[%s3 + $0xf08] sm:$0xff]
    %v1565 = vld [vmem:[%s3 + $0xf10] sm:$0xff]
    %v1566 = vld [vmem:[%s3 + $0xf18] sm:$0xff]
    %v1567 = vld [vmem:[%s3 + $0xf20] sm:$0xff]
    %v1568 = vld [vmem:[%s3 + $0xf28] sm:$0xff]
    %v1569 = vld [vmem:[%s3 + $0xf30] sm:$0xff]
    %v1570 = vld [vmem:[%s3 + $0xf38] sm:$0xff]
    %v1571 = vld [vmem:[%s3 + $0xf40] sm:$0xff]
    %v1572 = vld [vmem:[%s3 + $0xf48] sm:$0xff]
    %v1573 = vld [vmem:[%s3 + $0xf50] sm:$0xff]
    %v1574 = vld [vmem:[%s3 + $0xf58] sm:$0xff]
    %v1575 = vld [vmem:[%s3 + $0xf60] sm:$0xff]
    %v1576 = vld [vmem:[%s3 + $0xf68] sm:$0xff]
    %v1577 = vld [vmem:[%s3 + $0xf70] sm:$0xff]
    %v1578 = vld [vmem:[%s3 + $0xf78] sm:$0xff]
    %v1579 = vld [vmem:[%s3 + $0xf80] sm:$0xff]
    %v1580 = vld [vmem:[%s3 + $0xf88] sm:$0xff]
    %v1581 = vld [vmem:[%s3 + $0xf90] sm:$0xff]
    %v1582 = vld [vmem:[%s3 + $0xf98] sm:$0xff]
    %v1583 = vld [vmem:[%s3 + $0xfa0] sm:$0xff]
    %v1584 = vld [vmem:[%s3 + $0xfa8] sm:$0xff]
    %v1585 = vld [vmem:[%s3 + $0xfb0] sm:$0xff]
    %v1586 = vld [vmem:[%s3 + $0xfb8] sm:$0xff]
    %v1587 = vld [vmem:[%s3 + $0xfc0] sm:$0xff]
    %v1588 = vld [vmem:[%s3 + $0xfc8] sm:$0xff]
    %v1589 = vld [vmem:[%s3 + $0xfd0] sm:$0xff]
    %v1590 = vld [vmem:[%s3 + $0xfd8] sm:$0xff]
    %v1591 = vld [vmem:[%s3 + $0xfe0] sm:$0xff]
    %v1592 = vld [vmem:[%s3 + $0xfe8] sm:$0xff]
    %v1593 = vld [vmem:[%s3 + $0xff0] sm:$0xff]
    %v1594 = vld [vmem:[%s3 + $0xff8] sm:$0xff]
    %v1595 = vld [vmem:[%s3 + $0x1000] sm:$0xff]
    %v1596 = vld [vmem:[%s3 + $0x1008] sm:$0xff]
    %v1597 = vld [vmem:[%s3 + $0x1010] sm:$0xff]
    %v1598 = vld [vmem:[%s3 + $0x1018] sm:$0xff]
    %v1599 = vld [vmem:[%s3 + $0x1020] sm:$0xff]
    %v1600 = vld [vmem:[%s3 + $0x1028] sm:$0xff]
    %v1601 = vld [vmem:[%s3 + $0x1030] sm:$0xff]
    %v1602 = vld [vmem:[%s3 + $0x1038] sm:$0xff]
    %v1603 = vld [vmem:[%s3 + $0x1040] sm:$0xff]
    %v1604 = vld [vmem:[%s3 + $0x1048] sm:$0xff]
    %v1605 = vld [vmem:[%s3 + $0x1050] sm:$0xff]
    %v1606 = vld [vmem:[%s3 + $0x1058] sm:$0xff]
    %v1607 = vld [vmem:[%s3 + $0x1060] sm:$0xff]
    %v1608 = vld [vmem:[%s3 + $0x1068] sm:$0xff]
    %v1609 = vld [vmem:[%s3 + $0x1070] sm:$0xff]
    %v1610 = vld [vmem:[%s3 + $0x1078] sm:$0xff]
    %v1611 = vld [vmem:[%s3 + $0x1080] sm:$0xff]
    %v1612 = vld [vmem:[%s3 + $0x1088] sm:$0xff]
    %v1613 = vld [vmem:[%s3 + $0x1090] sm:$0xff]
    %v1614 = vld [vmem:[%s3 + $0x1098] sm:$0xff]
    %v1615 = vld [vmem:[%s3 + $0x10a0] sm:$0xff]
    %v1616 = vld [vmem:[%s3 + $0x10a8] sm:$0xff]
    %v1617 = vld [vmem:[%s3 + $0x10b0] sm:$0xff]
    %v1618 = vld [vmem:[%s3 + $0x10b8] sm:$0xff]
    %v1619 = vld [vmem:[%s3 + $0x10c0] sm:$0xff]
    %v1620 = vld [vmem:[%s3 + $0x10c8] sm:$0xff]
    %v1621 = vld [vmem:[%s3 + $0x10d0] sm:$0xff]
    %v1622 = vld [vmem:[%s3 + $0x10d8] sm:$0xff]
    %v1623 = vld [vmem:[%s3 + $0x10e0] sm:$0xff]
    %v1624 = vld [vmem:[%s3 + $0x10e8] sm:$0xff]
    %v1625 = vld [vmem:[%s3 + $0x10f0] sm:$0xff]
    %v1626 = vld [vmem:[%s3 + $0x10f8] sm:$0xff]
    %v1627 = vld [vmem:[%s3 + $0x1100] sm:$0xff]
    %v1628 = vld [vmem:[%s3 + $0x1108] sm:$0xff]
    %v1629 = vld [vmem:[%s3 + $0x1110] sm:$0xff]
    %v1630 = vld [vmem:[%s3 + $0x1118] sm:$0xff]
    %v1631 = vld [vmem:[%s3 + $0x1120] sm:$0xff]
    %v1632 = vld [vmem:[%s3 + $0x1128] sm:$0xff]
    %v1633 = vld [vmem:[%s3 + $0x1130] sm:$0xff]
    %v1634 = vld [vmem:[%s3 + $0x1138] sm:$0xff]
    %v1635 = vld [vmem:[%s3 + $0x1140] sm:$0xff]
    %v1636 = vld [vmem:[%s3 + $0x1148] sm:$0xff]
    %v1637 = vld [vmem:[%s3 + $0x1150] sm:$0xff]
    %v1638 = vld [vmem:[%s3 + $0x1158] sm:$0xff]
    %v1639 = vld [vmem:[%s3 + $0x1160] sm:$0xff]
    %v1640 = vld [vmem:[%s3 + $0x1168] sm:$0xff]
    %v1641 = vld [vmem:[%s3 + $0x1170] sm:$0xff]
    %v1642 = vld [vmem:[%s3 + $0x1178] sm:$0xff]
    %v1643 = vld [vmem:[%s3 + $0x1180] sm:$0xff]
    %v1644 = vld [vmem:[%s3 + $0x1188] sm:$0xff]
    %v1645 = vld [vmem:[%s3 + $0x1190] sm:$0xff]
    %v1646 = vld [vmem:[%s3 + $0x1198] sm:$0xff]
    %v1647 = vld [vmem:[%s3 + $0x11a0] sm:$0xff]
    %v1648 = vld [vmem:[%s3 + $0x11a8] sm:$0xff]
    %v1649 = vld [vmem:[%s3 + $0x11b0] sm:$0xff]
    %v1650 = vld [vmem:[%s3 + $0x11b8] sm:$0xff]
    %v1651 = vld [vmem:[%s3 + $0x11c0] sm:$0xff]
    %v1652 = vld [vmem:[%s3 + $0x11c8] sm:$0xff]
    %v1653 = vld [vmem:[%s3 + $0x11d0] sm:$0xff]
    %v1654 = vld [vmem:[%s3 + $0x11d8] sm:$0xff]
    %v1655 = vld [vmem:[%s3 + $0x11e0] sm:$0xff]
    %v1656 = vld [vmem:[%s3 + $0x11e8] sm:$0xff]
    %v1657 = vld [vmem:[%s3 + $0x11f0] sm:$0xff]
    %v1658 = vld [vmem:[%s3 + $0x11f8] sm:$0xff]
    %v1659 = vld [vmem:[%s3 + $0x1200] sm:$0xff]
    %v1660 = vld [vmem:[%s3 + $0x1208] sm:$0xff]
    %v1661 = vld [vmem:[%s3 + $0x1210] sm:$0xff]
    %v1662 = vld [vmem:[%s3 + $0x1218] sm:$0xff]
    %v1663 = vld [vmem:[%s3 + $0x1220] sm:$0xff]
    %v1664 = vld [vmem:[%s3 + $0x1228] sm:$0xff]
    %v1665 = vld [vmem:[%s3 + $0x1230] sm:$0xff]
    %v1666 = vld [vmem:[%s3 + $0x1238] sm:$0xff]
    %v1667 = vld [vmem:[%s3 + $0x1240] sm:$0xff]
    %v1668 = vld [vmem:[%s3 + $0x1248] sm:$0xff]
    %v1669 = vld [vmem:[%s3 + $0x1250] sm:$0xff]
    %v1670 = vld [vmem:[%s3 + $0x1258] sm:$0xff]
    %v1671 = vld [vmem:[%s3 + $0x1260] sm:$0xff]
    %v1672 = vld [vmem:[%s3 + $0x1268] sm:$0xff]
    %v1673 = vld [vmem:[%s3 + $0x1270] sm:$0xff]
    %v1674 = vld [vmem:[%s3 + $0x1278] sm:$0xff]
    %v1675 = vld [vmem:[%s3 + $0x1280] sm:$0xff]
    %v1676 = vld [vmem:[%s3 + $0x1288] sm:$0xff]
    %v1677 = vld [vmem:[%s3 + $0x1290] sm:$0xff]
    %v1678 = vld [vmem:[%s3 + $0x1298] sm:$0xff]
    %v1679 = vld [vmem:[%s3 + $0x12a0] sm:$0xff]
    %v1680 = vld [vmem:[%s3 + $0x12a8] sm:$0xff]
    %v1681 = vld [vmem:[%s3 + $0x12b0] sm:$0xff]
    %v1682 = vld [vmem:[%s3 + $0x12b8] sm:$0xff]
    %v1683 = vld [vmem:[%s3 + $0x12c0] sm:$0xff]
    %v1684 = vld [vmem:[%s3 + $0x12c8] sm:$0xff]
    %v1685 = vld [vmem:[%s3 + $0x12d0] sm:$0xff]
    %v1686 = vld [vmem:[%s3 + $0x12d8] sm:$0xff]
    %v1687 = vld [vmem:[%s3 + $0x12e0] sm:$0xff]
    %v1688 = vld [vmem:[%s3 + $0x12e8] sm:$0xff]
    %v1689 = vld [vmem:[%s3 + $0x12f0] sm:$0xff]
    %v1690 = vld [vmem:[%s3 + $0x12f8] sm:$0xff]
    %v1691 = vld [vmem:[%s3 + $0x1300] sm:$0xff]
    %v1692 = vld [vmem:[%s3 + $0x1308] sm:$0xff]
    %v1693 = vld [vmem:[%s3 + $0x1310] sm:$0xff]
    %v1694 = vld [vmem:[%s3 + $0x1318] sm:$0xff]
    %v1695 = vld [vmem:[%s3 + $0x1320] sm:$0xff]
    %v1696 = vld [vmem:[%s3 + $0x1328] sm:$0xff]
    %v1697 = vld [vmem:[%s3 + $0x1330] sm:$0xff]
    %v1698 = vld [vmem:[%s3 + $0x1338] sm:$0xff]
    %v1699 = vld [vmem:[%s3 + $0x1340] sm:$0xff]
    %v1700 = vld [vmem:[%s3 + $0x1348] sm:$0xff]
    %v1701 = vld [vmem:[%s3 + $0x1350] sm:$0xff]
    %v1702 = vld [vmem:[%s3 + $0x1358] sm:$0xff]
    %v1703 = vld [vmem:[%s3 + $0x1360] sm:$0xff]
    %v1704 = vld [vmem:[%s3 + $0x1368] sm:$0xff]
    %v1705 = vld [vmem:[%s3 + $0x1370] sm:$0xff]
    %v1706 = vld [vmem:[%s3 + $0x1378] sm:$0xff]
    %v1707 = vld [vmem:[%s3 + $0x1380] sm:$0xff]
    %v1708 = vld [vmem:[%s3 + $0x1388] sm:$0xff]
    %v1709 = vld [vmem:[%s3 + $0x1390] sm:$0xff]
    %v1710 = vld [vmem:[%s3 + $0x1398] sm:$0xff]
    %v1711 = vld [vmem:[%s3 + $0x13a0] sm:$0xff]
    %v1712 = vld [vmem:[%s3 + $0x13a8] sm:$0xff]
    %v1713 = vld [vmem:[%s3 + $0x13b0] sm:$0xff]
    %v1714 = vld [vmem:[%s3 + $0x13b8] sm:$0xff]
    %v1715 = vld [vmem:[%s3 + $0x13c0] sm:$0xff]
    %v1716 = vld [vmem:[%s3 + $0x13c8] sm:$0xff]
    %v1717 = vld [vmem:[%s3 + $0x13d0] sm:$0xff]
    %v1718 = vld [vmem:[%s3 + $0x13d8] sm:$0xff]
    %v1719 = vld [vmem:[%s3 + $0x13e0] sm:$0xff]
    %v1720 = vld [vmem:[%s3 + $0x13e8] sm:$0xff]
    %v1721 = vld [vmem:[%s3 + $0x13f0] sm:$0xff]
    %v1722 = vld [vmem:[%s3 + $0x13f8] sm:$0xff]
    %v1723 = vld [vmem:[%s3 + $0x1400] sm:$0xff]
    %v1724 = vld [vmem:[%s3 + $0x1408] sm:$0xff]
    %v1725 = vld [vmem:[%s3 + $0x1410] sm:$0xff]
    %v1726 = vld [vmem:[%s3 + $0x1418] sm:$0xff]
    %v1727 = vld [vmem:[%s3 + $0x1420] sm:$0xff]
    %v1728 = vld [vmem:[%s3 + $0x1428] sm:$0xff]
    %v1729 = vld [vmem:[%s3 + $0x1430] sm:$0xff]
    %v1730 = vld [vmem:[%s3 + $0x1438] sm:$0xff]
    %v1731 = vld [vmem:[%s3 + $0x1440] sm:$0xff]
    %v1732 = vld [vmem:[%s3 + $0x1448] sm:$0xff]
    %v1733 = vld [vmem:[%s3 + $0x1450] sm:$0xff]
    %v1734 = vld [vmem:[%s3 + $0x1458] sm:$0xff]
    %v1735 = vld [vmem:[%s3 + $0x1460] sm:$0xff]
    %v1736 = vld [vmem:[%s3 + $0x1468] sm:$0xff]
    %v1737 = vld [vmem:[%s3 + $0x1470] sm:$0xff]
    %v1738 = vld [vmem:[%s3 + $0x1478] sm:$0xff]
    %v1739 = vld [vmem:[%s3 + $0x1480] sm:$0xff]
    %v1740 = vld [vmem:[%s3 + $0x1488] sm:$0xff]
    %v1741 = vld [vmem:[%s3 + $0x1490] sm:$0xff]
    %v1742 = vld [vmem:[%s3 + $0x1498] sm:$0xff]
    %v1743 = vld [vmem:[%s3 + $0x14a0] sm:$0xff]
    %v1744 = vld [vmem:[%s3 + $0x14a8] sm:$0xff]
    %v1745 = vld [vmem:[%s3 + $0x14b0] sm:$0xff]
    %v1746 = vld [vmem:[%s3 + $0x14b8] sm:$0xff]
    %v1747 = vld [vmem:[%s3 + $0x14c0] sm:$0xff]
    %v1748 = vld [vmem:[%s3 + $0x14c8] sm:$0xff]
    %v1749 = vld [vmem:[%s3 + $0x14d0] sm:$0xff]
    %v1750 = vld [vmem:[%s3 + $0x14d8] sm:$0xff]
    %v1751 = vld [vmem:[%s3 + $0x14e0] sm:$0xff]
    %v1752 = vld [vmem:[%s3 + $0x14e8] sm:$0xff]
    %v1753 = vld [vmem:[%s3 + $0x14f0] sm:$0xff]
    %v1754 = vld [vmem:[%s3 + $0x14f8] sm:$0xff]
    %v1755 = vld [vmem:[%s3 + $0x1500] sm:$0xff]
    %v1756 = vld [vmem:[%s3 + $0x1508] sm:$0xff]
    %v1757 = vld [vmem:[%s3 + $0x1510] sm:$0xff]
    %v1758 = vld [vmem:[%s3 + $0x1518] sm:$0xff]
    %v1759 = vld [vmem:[%s3 + $0x1520] sm:$0xff]
    %v1760 = vld [vmem:[%s3 + $0x1528] sm:$0xff]
    %v1761 = vld [vmem:[%s3 + $0x1530] sm:$0xff]
    %v1762 = vld [vmem:[%s3 + $0x1538] sm:$0xff]
    %v1763 = vld [vmem:[%s3 + $0x1540] sm:$0xff]
    %v1764 = vld [vmem:[%s3 + $0x1548] sm:$0xff]
    %v1765 = vld [vmem:[%s3 + $0x1550] sm:$0xff]
    %v1766 = vld [vmem:[%s3 + $0x1558] sm:$0xff]
    %v1767 = vld [vmem:[%s3 + $0x1560] sm:$0xff]
    %v1768 = vld [vmem:[%s3 + $0x1568] sm:$0xff]
    %v1769 = vld [vmem:[%s3 + $0x1570] sm:$0xff]
    %v1770 = vld [vmem:[%s3 + $0x1578] sm:$0xff]
    %v1771 = vld [vmem:[%s3 + $0x1580] sm:$0xff]
    %v1772 = vld [vmem:[%s3 + $0x1588] sm:$0xff]
    %v1773 = vld [vmem:[%s3 + $0x1590] sm:$0xff]
    %v1774 = vld [vmem:[%s3 + $0x1598] sm:$0xff]
    %v1775 = vld [vmem:[%s3 + $0x15a0] sm:$0xff]
    %v1776 = vld [vmem:[%s3 + $0x15a8] sm:$0xff]
    %v1777 = vld [vmem:[%s3 + $0x15b0] sm:$0xff]
    %v1778 = vld [vmem:[%s3 + $0x15b8] sm:$0xff]
    %v1779 = vld [vmem:[%s3 + $0x15c0] sm:$0xff]
    %v1780 = vld [vmem:[%s3 + $0x15c8] sm:$0xff]
    %v1781 = vld [vmem:[%s3 + $0x15d0] sm:$0xff]
    %v1782 = vld [vmem:[%s3 + $0x15d8] sm:$0xff]
    %v1783 = vld [vmem:[%s3 + $0x15e0] sm:$0xff]
    %v1784 = vld [vmem:[%s3 + $0x15e8] sm:$0xff]
    %v1785 = vld [vmem:[%s3 + $0x15f0] sm:$0xff]
    %v1786 = vld [vmem:[%s3 + $0x15f8] sm:$0xff]
    %v1787 = vld [vmem:[%s3 + $0x1600] sm:$0xff]
    %v1788 = vld [vmem:[%s3 + $0x1608] sm:$0xff]
    %v1789 = vld [vmem:[%s3 + $0x1610] sm:$0xff]
    %v1790 = vld [vmem:[%s3 + $0x1618] sm:$0xff]
    %v1791 = vld [vmem:[%s3 + $0x1620] sm:$0xff]
    %v1792 = vld [vmem:[%s3 + $0x1628] sm:$0xff]
    %v1793 = vld [vmem:[%s3 + $0x1630] sm:$0xff]
    %v1794 = vld [vmem:[%s3 + $0x1638] sm:$0xff]
    %v1795 = vld [vmem:[%s3 + $0x1640] sm:$0xff]
    %v1796 = vld [vmem:[%s3 + $0x1648] sm:$0xff]
    %v1797 = vld [vmem:[%s3 + $0x1650] sm:$0xff]
    %v1798 = vld [vmem:[%s3 + $0x1658] sm:$0xff]
    %v1799 = vld [vmem:[%s3 + $0x1660] sm:$0xff]
    %v1800 = vld [vmem:[%s3 + $0x1668] sm:$0xff]
    %v1801 = vld [vmem:[%s3 + $0x1670] sm:$0xff]
    %v1802 = vld [vmem:[%s3 + $0x1678] sm:$0xff]
    %v1803 = vld [vmem:[%s3 + $0x1680] sm:$0xff]
    %v1804 = vld [vmem:[%s3 + $0x1688] sm:$0xff]
    %v1805 = vld [vmem:[%s3 + $0x1690] sm:$0xff]
    %v1806 = vld [vmem:[%s3 + $0x1698] sm:$0xff]
    %v1807 = vld [vmem:[%s3 + $0x16a0] sm:$0xff]
    %v1808 = vld [vmem:[%s3 + $0x16a8] sm:$0xff]
    %v1809 = vld [vmem:[%s3 + $0x16b0] sm:$0xff]
    %v1810 = vld [vmem:[%s3 + $0x16b8] sm:$0xff]
    %v1811 = vld [vmem:[%s3 + $0x16c0] sm:$0xff]
    %v1812 = vld [vmem:[%s3 + $0x16c8] sm:$0xff]
    %v1813 = vld [vmem:[%s3 + $0x16d0] sm:$0xff]
    %v1814 = vld [vmem:[%s3 + $0x16d8] sm:$0xff]
    %v1815 = vld [vmem:[%s3 + $0x16e0] sm:$0xff]
    %v1816 = vld [vmem:[%s3 + $0x16e8] sm:$0xff]
    %v1817 = vld [vmem:[%s3 + $0x16f0] sm:$0xff]
    %v1818 = vld [vmem:[%s3 + $0x16f8] sm:$0xff]
    %v1819 = vld [vmem:[%s3 + $0x1700] sm:$0xff]
    %v1820 = vld [vmem:[%s3 + $0x1708] sm:$0xff]
    %v1821 = vld [vmem:[%s3 + $0x1710] sm:$0xff]
    %v1822 = vld [vmem:[%s3 + $0x1718] sm:$0xff]
    %v1823 = vld [vmem:[%s3 + $0x1720] sm:$0xff]
    %v1824 = vld [vmem:[%s3 + $0x1728] sm:$0xff]
    %v1825 = vld [vmem:[%s3 + $0x1730] sm:$0xff]
    %v1826 = vld [vmem:[%s3 + $0x1738] sm:$0xff]
    %v1827 = vld [vmem:[%s3 + $0x1740] sm:$0xff]
    %v1828 = vld [vmem:[%s3 + $0x1748] sm:$0xff]
    %v1829 = vld [vmem:[%s3 + $0x1750] sm:$0xff]
    %v1830 = vld [vmem:[%s3 + $0x1758] sm:$0xff]
    %v1831 = vld [vmem:[%s3 + $0x1760] sm:$0xff]
    %v1832 = vld [vmem:[%s3 + $0x1768] sm:$0xff]
    %v1833 = vld [vmem:[%s3 + $0x1770] sm:$0xff]
    %v1834 = vld [vmem:[%s3 + $0x1778] sm:$0xff]
    %v1835 = vld [vmem:[%s3 + $0x1780] sm:$0xff]
    %v1836 = vld [vmem:[%s3 + $0x1788] sm:$0xff]
    %v1837 = vld [vmem:[%s3 + $0x1790] sm:$0xff]
    %v1838 = vld [vmem:[%s3 + $0x1798] sm:$0xff]
    %v1839 = vld [vmem:[%s3 + $0x17a0] sm:$0xff]
    %v1840 = vld [vmem:[%s3 + $0x17a8] sm:$0xff]
    %v1841 = vld [vmem:[%s3 + $0x17b0] sm:$0xff]
    %v1842 = vld [vmem:[%s3 + $0x17b8] sm:$0xff]
    %v1843 = vld [vmem:[%s3 + $0x17c0] sm:$0xff]
    %v1844 = vld [vmem:[%s3 + $0x17c8] sm:$0xff]
    %v1845 = vld [vmem:[%s3 + $0x17d0] sm:$0xff]
    %v1846 = vld [vmem:[%s3 + $0x17d8] sm:$0xff]
    %v1847 = vld [vmem:[%s3 + $0x17e0] sm:$0xff]
    %v1848 = vld [vmem:[%s3 + $0x17e8] sm:$0xff]
    %v1849 = vld [vmem:[%s3 + $0x17f0] sm:$0xff]
    %v1850 = vld [vmem:[%s3 + $0x17f8] sm:$0xff]
    %v1851 = vld [vmem:[%s3 + $0x1800] sm:$0xff]
    %v1852 = vld [vmem:[%s3 + $0x1808] sm:$0xff]
    %v1853 = vld [vmem:[%s3 + $0x1810] sm:$0xff]
    %v1854 = vld [vmem:[%s3 + $0x1818] sm:$0xff]
    %v1855 = vld [vmem:[%s3 + $0x1820] sm:$0xff]
    %v1856 = vld [vmem:[%s3 + $0x1828] sm:$0xff]
    %v1857 = vld [vmem:[%s3 + $0x1830] sm:$0xff]
    %v1858 = vld [vmem:[%s3 + $0x1838] sm:$0xff]
    %v1859 = vld [vmem:[%s3 + $0x1840] sm:$0xff]
    %v1860 = vld [vmem:[%s3 + $0x1848] sm:$0xff]
    %v1861 = vld [vmem:[%s3 + $0x1850] sm:$0xff]
    %v1862 = vld [vmem:[%s3 + $0x1858] sm:$0xff]
    %v1863 = vld [vmem:[%s3 + $0x1860] sm:$0xff]
    %v1864 = vld [vmem:[%s3 + $0x1868] sm:$0xff]
    %v1865 = vld [vmem:[%s3 + $0x1870] sm:$0xff]
    %v1866 = vld [vmem:[%s3 + $0x1878] sm:$0xff]
    %v1867 = vld [vmem:[%s3 + $0x1880] sm:$0xff]
    %v1868 = vld [vmem:[%s3 + $0x1888] sm:$0xff]
    %v1869 = vld [vmem:[%s3 + $0x1890] sm:$0xff]
    %v1870 = vld [vmem:[%s3 + $0x1898] sm:$0xff]
    %v1871 = vld [vmem:[%s3 + $0x18a0] sm:$0xff]
    %v1872 = vld [vmem:[%s3 + $0x18a8] sm:$0xff]
    %v1873 = vld [vmem:[%s3 + $0x18b0] sm:$0xff]
    %v1874 = vld [vmem:[%s3 + $0x18b8] sm:$0xff]
    %v1875 = vld [vmem:[%s3 + $0x18c0] sm:$0xff]
    %v1876 = vld [vmem:[%s3 + $0x18c8] sm:$0xff]
    %v1877 = vld [vmem:[%s3 + $0x18d0] sm:$0xff]
    %v1878 = vld [vmem:[%s3 + $0x18d8] sm:$0xff]
    %v1879 = vld [vmem:[%s3 + $0x18e0] sm:$0xff]
    %v1880 = vld [vmem:[%s3 + $0x18e8] sm:$0xff]
    %v1881 = vld [vmem:[%s3 + $0x18f0] sm:$0xff]
    %v1882 = vld [vmem:[%s3 + $0x18f8] sm:$0xff]
    %v1883 = vld [vmem:[%s3 + $0x1900] sm:$0xff]
    %v1884 = vld [vmem:[%s3 + $0x1908] sm:$0xff]
    %v1885 = vld [vmem:[%s3 + $0x1910] sm:$0xff]
    %v1886 = vld [vmem:[%s3 + $0x1918] sm:$0xff]
    %v1887 = vld [vmem:[%s3 + $0x1920] sm:$0xff]
    %v1888 = vld [vmem:[%s3 + $0x1928] sm:$0xff]
    %v1889 = vld [vmem:[%s3 + $0x1930] sm:$0xff]
    %v1890 = vld [vmem:[%s3 + $0x1938] sm:$0xff]
    %v1891 = vld [vmem:[%s3 + $0x1940] sm:$0xff]
    %v1892 = vld [vmem:[%s3 + $0x1948] sm:$0xff]
    %v1893 = vld [vmem:[%s3 + $0x1950] sm:$0xff]
    %v1894 = vld [vmem:[%s3 + $0x1958] sm:$0xff]
    %v1895 = vld [vmem:[%s3 + $0x1960] sm:$0xff]
    %v1896 = vld [vmem:[%s3 + $0x1968] sm:$0xff]
    %v1897 = vld [vmem:[%s3 + $0x1970] sm:$0xff]
    %v1898 = vld [vmem:[%s3 + $0x1978] sm:$0xff]
    %v1899 = vld [vmem:[%s3 + $0x1980] sm:$0xff]
    %v1900 = vld [vmem:[%s3 + $0x1988] sm:$0xff]
    %v1901 = vld [vmem:[%s3 + $0x1990] sm:$0xff]
    %v1902 = vld [vmem:[%s3 + $0x1998] sm:$0xff]
    %v1903 = vld [vmem:[%s3 + $0x19a0] sm:$0xff]
    %v1904 = vld [vmem:[%s3 + $0x19a8] sm:$0xff]
    %v1905 = vld [vmem:[%s3 + $0x19b0] sm:$0xff]
    %v1906 = vld [vmem:[%s3 + $0x19b8] sm:$0xff]
    %v1907 = vld [vmem:[%s3 + $0x19c0] sm:$0xff]
    %v1908 = vld [vmem:[%s3 + $0x19c8] sm:$0xff]
    %v1909 = vld [vmem:[%s3 + $0x19d0] sm:$0xff]
    %v1910 = vld [vmem:[%s3 + $0x19d8] sm:$0xff]
    %v1911 = vld [vmem:[%s3 + $0x19e0] sm:$0xff]
    %v1912 = vld [vmem:[%s3 + $0x19e8] sm:$0xff]
    %v1913 = vld [vmem:[%s3 + $0x19f0] sm:$0xff]
    %v1914 = vld [vmem:[%s3 + $0x19f8] sm:$0xff]
    %v1915 = vld [vmem:[%s3 + $0x1a00] sm:$0xff]
    %v1916 = vld [vmem:[%s3 + $0x1a08] sm:$0xff]
    %v1917 = vld [vmem:[%s3 + $0x1a10] sm:$0xff]
    %v1918 = vld [vmem:[%s3 + $0x1a18] sm:$0xff]
    %v1919 = vld [vmem:[%s3 + $0x1a20] sm:$0xff]
    %v1920 = vld [vmem:[%s3 + $0x1a28] sm:$0xff]
    %v1921 = vld [vmem:[%s3 + $0x1a30] sm:$0xff]
    %v1922 = vld [vmem:[%s3 + $0x1a38] sm:$0xff]
    %v1923 = vld [vmem:[%s3 + $0x1a40] sm:$0xff]
    %v1924 = vld [vmem:[%s3 + $0x1a48] sm:$0xff]
    %v1925 = vld [vmem:[%s3 + $0x1a50] sm:$0xff]
    %v1926 = vld [vmem:[%s3 + $0x1a58] sm:$0xff]
    %v1927 = vld [vmem:[%s3 + $0x1a60] sm:$0xff]
    %v1928 = vld [vmem:[%s3 + $0x1a68] sm:$0xff]
    %v1929 = vld [vmem:[%s3 + $0x1a70] sm:$0xff]
    %v1930 = vld [vmem:[%s3 + $0x1a78] sm:$0xff]
    %v1931 = vld [vmem:[%s3 + $0x1a80] sm:$0xff]
    %v1932 = vld [vmem:[%s3 + $0x1a88] sm:$0xff]
    %v1933 = vld [vmem:[%s3 + $0x1a90] sm:$0xff]
    %v1934 = vld [vmem:[%s3 + $0x1a98] sm:$0xff]
    %v1935 = vld [vmem:[%s3 + $0x1aa0] sm:$0xff]
    %v1936 = vld [vmem:[%s3 + $0x1aa8] sm:$0xff]
    %v1937 = vld [vmem:[%s3 + $0x1ab0] sm:$0xff]
    %v1938 = vld [vmem:[%s3 + $0x1ab8] sm:$0xff]
    %v1939 = vld [vmem:[%s3 + $0x1ac0] sm:$0xff]
    %v1940 = vld [vmem:[%s3 + $0x1ac8] sm:$0xff]
    %v1941 = vld [vmem:[%s3 + $0x1ad0] sm:$0xff]
    %v1942 = vld [vmem:[%s3 + $0x1ad8] sm:$0xff]
    %v1943 = vld [vmem:[%s3 + $0x1ae0] sm:$0xff]
    %v1944 = vld [vmem:[%s3 + $0x1ae8] sm:$0xff]
    %v1945 = vld [vmem:[%s3 + $0x1af0] sm:$0xff]
    %v1946 = vld [vmem:[%s3 + $0x1af8] sm:$0xff]
    %v1947 = vld [vmem:[%s3 + $0x1b00] sm:$0xff]
    %v1948 = vld [vmem:[%s3 + $0x1b08] sm:$0xff]
    %v1949 = vld [vmem:[%s3 + $0x1b10] sm:$0xff]
    %v1950 = vld [vmem:[%s3 + $0x1b18] sm:$0xff]
    %v1951 = vld [vmem:[%s3 + $0x1b20] sm:$0xff]
    %v1952 = vld [vmem:[%s3 + $0x1b28] sm:$0xff]
    %v1953 = vld [vmem:[%s3 + $0x1b30] sm:$0xff]
    %v1954 = vld [vmem:[%s3 + $0x1b38] sm:$0xff]
    %v1955 = vld [vmem:[%s3 + $0x1b40] sm:$0xff]
    %v1956 = vld [vmem:[%s3 + $0x1b48] sm:$0xff]
    %v1957 = vld [vmem:[%s3 + $0x1b50] sm:$0xff]
    %v1958 = vld [vmem:[%s3 + $0x1b58] sm:$0xff]
    %v1959 = vld [vmem:[%s3 + $0x1b60] sm:$0xff]
    %v1960 = vld [vmem:[%s3 + $0x1b68] sm:$0xff]
    %v1961 = vld [vmem:[%s3 + $0x1b70] sm:$0xff]
    %v1962 = vld [vmem:[%s3 + $0x1b78] sm:$0xff]
    %v1963 = vld [vmem:[%s3 + $0x1b80] sm:$0xff]
    %v1964 = vld [vmem:[%s3 + $0x1b88] sm:$0xff]
    %v1965 = vld [vmem:[%s3 + $0x1b90] sm:$0xff]
    %v1966 = vld [vmem:[%s3 + $0x1b98] sm:$0xff]
    %v1967 = vld [vmem:[%s3 + $0x1ba0] sm:$0xff]
    %v1968 = vld [vmem:[%s3 + $0x1ba8] sm:$0xff]
    %v1969 = vld [vmem:[%s3 + $0x1bb0] sm:$0xff]
    %v1970 = vld [vmem:[%s3 + $0x1bb8] sm:$0xff]
    %v1971 = vld [vmem:[%s3 + $0x1bc0] sm:$0xff]
    %v1972 = vld [vmem:[%s3 + $0x1bc8] sm:$0xff]
    %v1973 = vld [vmem:[%s3 + $0x1bd0] sm:$0xff]
    %v1974 = vld [vmem:[%s3 + $0x1bd8] sm:$0xff]
    %v1975 = vld [vmem:[%s3 + $0x1be0] sm:$0xff]
    %v1976 = vld [vmem:[%s3 + $0x1be8] sm:$0xff]
    %v1977 = vld [vmem:[%s3 + $0x1bf0] sm:$0xff]
    %v1978 = vld [vmem:[%s3 + $0x1bf8] sm:$0xff]
    %v1979 = vld [vmem:[%s3 + $0x1c00] sm:$0xff]
    %v1980 = vld [vmem:[%s3 + $0x1c08] sm:$0xff]
    %v1981 = vld [vmem:[%s3 + $0x1c10] sm:$0xff]
    %v1982 = vld [vmem:[%s3 + $0x1c18] sm:$0xff]
    %v1983 = vld [vmem:[%s3 + $0x1c20] sm:$0xff]
    %v1984 = vld [vmem:[%s3 + $0x1c28] sm:$0xff]
    %v1985 = vld [vmem:[%s3 + $0x1c30] sm:$0xff]
    %v1986 = vld [vmem:[%s3 + $0x1c38] sm:$0xff]
    %v1987 = vld [vmem:[%s3 + $0x1c40] sm:$0xff]
    %v1988 = vld [vmem:[%s3 + $0x1c48] sm:$0xff]
    %v1989 = vld [vmem:[%s3 + $0x1c50] sm:$0xff]
    %v1990 = vld [vmem:[%s3 + $0x1c58] sm:$0xff]
    %v1991 = vld [vmem:[%s3 + $0x1c60] sm:$0xff]
    %v1992 = vld [vmem:[%s3 + $0x1c68] sm:$0xff]
    %v1993 = vld [vmem:[%s3 + $0x1c70] sm:$0xff]
    %v1994 = vld [vmem:[%s3 + $0x1c78] sm:$0xff]
    %v1995 = vld [vmem:[%s3 + $0x1c80] sm:$0xff]
    %v1996 = vld [vmem:[%s3 + $0x1c88] sm:$0xff]
    %v1997 = vld [vmem:[%s3 + $0x1c90] sm:$0xff]
    %v1998 = vld [vmem:[%s3 + $0x1c98] sm:$0xff]
    %v1999 = vld [vmem:[%s3 + $0x1ca0] sm:$0xff]
    %v2000 = vld [vmem:[%s3 + $0x1ca8] sm:$0xff]
    %v2001 = vld [vmem:[%s3 + $0x1cb0] sm:$0xff]
    %v2002 = vld [vmem:[%s3 + $0x1cb8] sm:$0xff]
    %v2003 = vld [vmem:[%s3 + $0x1cc0] sm:$0xff]
    %v2004 = vld [vmem:[%s3 + $0x1cc8] sm:$0xff]
    %v2005 = vld [vmem:[%s3 + $0x1cd0] sm:$0xff]
    %v2006 = vld [vmem:[%s3 + $0x1cd8] sm:$0xff]
    %v2007 = vld [vmem:[%s3 + $0x1ce0] sm:$0xff]
    %v2008 = vld [vmem:[%s3 + $0x1ce8] sm:$0xff]
    %v2009 = vld [vmem:[%s3 + $0x1cf0] sm:$0xff]
    %v2010 = vld [vmem:[%s3 + $0x1cf8] sm:$0xff]
    %v2011 = vld [vmem:[%s3 + $0x1d00] sm:$0xff]
    %v2012 = vld [vmem:[%s3 + $0x1d08] sm:$0xff]
    %v2013 = vld [vmem:[%s3 + $0x1d10] sm:$0xff]
    %v2014 = vld [vmem:[%s3 + $0x1d18] sm:$0xff]
    %v2015 = vld [vmem:[%s3 + $0x1d20] sm:$0xff]
    %v2016 = vld [vmem:[%s3 + $0x1d28] sm:$0xff]
    %v2017 = vld [vmem:[%s3 + $0x1d30] sm:$0xff]
    %v2018 = vld [vmem:[%s3 + $0x1d38] sm:$0xff]
    %v2019 = vld [vmem:[%s3 + $0x1d40] sm:$0xff]
    %v2020 = vld [vmem:[%s3 + $0x1d48] sm:$0xff]
    %v2021 = vld [vmem:[%s3 + $0x1d50] sm:$0xff]
    %v2022 = vld [vmem:[%s3 + $0x1d58] sm:$0xff]
    %v2023 = vld [vmem:[%s3 + $0x1d60] sm:$0xff]
    %v2024 = vld [vmem:[%s3 + $0x1d68] sm:$0xff]
    %v2025 = vld [vmem:[%s3 + $0x1d70] sm:$0xff]
    %v2026 = vld [vmem:[%s3 + $0x1d78] sm:$0xff]
    %v2027 = vld [vmem:[%s3 + $0x1d80] sm:$0xff]
    %v2028 = vld [vmem:[%s3 + $0x1d88] sm:$0xff]
    %v2029 = vld [vmem:[%s3 + $0x1d90] sm:$0xff]
    %v2030 = vld [vmem:[%s3 + $0x1d98] sm:$0xff]
    %v2031 = vld [vmem:[%s3 + $0x1da0] sm:$0xff]
    %v2032 = vld [vmem:[%s3 + $0x1da8] sm:$0xff]
    %v2033 = vld [vmem:[%s3 + $0x1db0] sm:$0xff]
    %v2034 = vld [vmem:[%s3 + $0x1db8] sm:$0xff]
    %v2035 = vld [vmem:[%s3 + $0x1dc0] sm:$0xff]
    %v2036 = vld [vmem:[%s3 + $0x1dc8] sm:$0xff]
    %v2037 = vld [vmem:[%s3 + $0x1dd0] sm:$0xff]
    %v2038 = vld [vmem:[%s3 + $0x1dd8] sm:$0xff]
    %v2039 = vld [vmem:[%s3 + $0x1de0] sm:$0xff]
    %v2040 = vld [vmem:[%s3 + $0x1de8] sm:$0xff]
    %v2041 = vld [vmem:[%s3 + $0x1df0] sm:$0xff]
    %v2042 = vld [vmem:[%s3 + $0x1df8] sm:$0xff]
    %v2043 = vld [vmem:[%s3 + $0x1e00] sm:$0xff]
    %v2044 = vld [vmem:[%s3 + $0x1e08] sm:$0xff]
    %v2045 = vld [vmem:[%s3 + $0x1e10] sm:$0xff]
    %v2046 = vld [vmem:[%s3 + $0x1e18] sm:$0xff]
    %v2047 = vld [vmem:[%s3 + $0x1e20] sm:$0xff]
    %v2048 = vld [vmem:[%s3 + $0x1e28] sm:$0xff]
    %v2049 = vld [vmem:[%s3 + $0x1e30] sm:$0xff]
    %v2050 = vld [vmem:[%s3 + $0x1e38] sm:$0xff]
    %v2051 = vld [vmem:[%s3 + $0x1e40] sm:$0xff]
    %v2052 = vld [vmem:[%s3 + $0x1e48] sm:$0xff]
    %v2053 = vld [vmem:[%s3 + $0x1e50] sm:$0xff]
    %v2054 = vld [vmem:[%s3 + $0x1e58] sm:$0xff]
    %v2055 = vld [vmem:[%s3 + $0x1e60] sm:$0xff]
    %v2056 = vld [vmem:[%s3 + $0x1e68] sm:$0xff]
    %v2057 = vld [vmem:[%s3 + $0x1e70] sm:$0xff]
    %v2058 = vld [vmem:[%s3 + $0x1e78] sm:$0xff]
    %v2059 = vld [vmem:[%s3 + $0x1e80] sm:$0xff]
    %v2060 = vld [vmem:[%s3 + $0x1e88] sm:$0xff]
    %v2061 = vld [vmem:[%s3 + $0x1e90] sm:$0xff]
    %v2062 = vld [vmem:[%s3 + $0x1e98] sm:$0xff]
    %v2063 = vld [vmem:[%s3 + $0x1ea0] sm:$0xff]
    %v2064 = vld [vmem:[%s3 + $0x1ea8] sm:$0xff]
    %v2065 = vld [vmem:[%s3 + $0x1eb0] sm:$0xff]
    %v2066 = vld [vmem:[%s3 + $0x1eb8] sm:$0xff]
    %v2067 = vld [vmem:[%s3 + $0x1ec0] sm:$0xff]
    %v2068 = vld [vmem:[%s3 + $0x1ec8] sm:$0xff]
    %v2069 = vld [vmem:[%s3 + $0x1ed0] sm:$0xff]
    %v2070 = vld [vmem:[%s3 + $0x1ed8] sm:$0xff]
    %v2071 = vld [vmem:[%s3 + $0x1ee0] sm:$0xff]
    %v2072 = vld [vmem:[%s3 + $0x1ee8] sm:$0xff]
    %v2073 = vld [vmem:[%s3 + $0x1ef0] sm:$0xff]
    %v2074 = vld [vmem:[%s3 + $0x1ef8] sm:$0xff]
    %v2075 = vld [vmem:[%s3 + $0x1f00] sm:$0xff]
    %v2076 = vld [vmem:[%s3 + $0x1f08] sm:$0xff]
    %v2077 = vld [vmem:[%s3 + $0x1f10] sm:$0xff]
    %v2078 = vld [vmem:[%s3 + $0x1f18] sm:$0xff]
    %v2079 = vld [vmem:[%s3 + $0x1f20] sm:$0xff]
    %v2080 = vld [vmem:[%s3 + $0x1f28] sm:$0xff]
    %v2081 = vld [vmem:[%s3 + $0x1f30] sm:$0xff]
    %v2082 = vld [vmem:[%s3 + $0x1f38] sm:$0xff]
    %v2083 = vld [vmem:[%s3 + $0x1f40] sm:$0xff]
    %v2084 = vld [vmem:[%s3 + $0x1f48] sm:$0xff]
    %v2085 = vld [vmem:[%s3 + $0x1f50] sm:$0xff]
    %v2086 = vld [vmem:[%s3 + $0x1f58] sm:$0xff]
    %v2087 = vld [vmem:[%s3 + $0x1f60] sm:$0xff]
    %v2088 = vld [vmem:[%s3 + $0x1f68] sm:$0xff]
    %v2089 = vld [vmem:[%s3 + $0x1f70] sm:$0xff]
    %v2090 = vld [vmem:[%s3 + $0x1f78] sm:$0xff]
    %v2091 = vld [vmem:[%s3 + $0x1f80] sm:$0xff]
    %v2092 = vld [vmem:[%s3 + $0x1f88] sm:$0xff]
    %v2093 = vld [vmem:[%s3 + $0x1f90] sm:$0xff]
    %v2094 = vld [vmem:[%s3 + $0x1f98] sm:$0xff]
    %v2095 = vld [vmem:[%s3 + $0x1fa0] sm:$0xff]
    %v2096 = vld [vmem:[%s3 + $0x1fa8] sm:$0xff]
    %v2097 = vld [vmem:[%s3 + $0x1fb0] sm:$0xff]
    %v2098 = vld [vmem:[%s3 + $0x1fb8] sm:$0xff]
    %v2099 = vld [vmem:[%s3 + $0x1fc0] sm:$0xff]
    %v2100 = vld [vmem:[%s3 + $0x1fc8] sm:$0xff]
    %v2101 = vld [vmem:[%s3 + $0x1fd0] sm:$0xff]
    %v2102 = vld [vmem:[%s3 + $0x1fd8] sm:$0xff]
    %v2103 = vld [vmem:[%s3 + $0x1fe0] sm:$0xff]
    %v2104 = vld [vmem:[%s3 + $0x1fe8] sm:$0xff]
    %v2105 = vld [vmem:[%s3 + $0x1ff0] sm:$0xff]
    %v2106 = vld [vmem:[%s3 + $0x1ff8] sm:$0xff]
    %2123 = vst [vmem:[#allocation1] ss:$4 sm:$0xff] %v1067
    %s2124 = scalar_lea.vmem [#allocation1], 32
    %2125 = vst [vmem:[%s2124] ss:$4 sm:$0xff] %v1068
    %v2126 = vld.sshfl [vmem:[#allocation1] sm:$0xff pattern:$0x73625140]
    %v2127 = vld.sshfl [vmem:[#allocation1 + $0x8] sm:$0xff pattern:$0x73625140]
    %v2128 = vld.sshfl [vmem:[#allocation1 + $0x10] sm:$0xff pattern:$0x73625140]
    %v2129 = vld.sshfl [vmem:[#allocation1 + $0x18] sm:$0xff pattern:$0x73625140]
    %v2130 = vld.sshfl [vmem:[#allocation1 + $0x20] sm:$0xff pattern:$0x73625140]
    %v2131 = vld.sshfl [vmem:[#allocation1 + $0x28] sm:$0xff pattern:$0x73625140]
    %v2132 = vld.sshfl [vmem:[#allocation1 + $0x30] sm:$0xff pattern:$0x73625140]
    %v2133 = vld.sshfl [vmem:[#allocation1 + $0x38] sm:$0xff pattern:$0x73625140]
    %2134 = vst [vmem:[#allocation1] ss:$4 sm:$0xff] %v1069
    %2135 = vst [vmem:[%s2124] ss:$4 sm:$0xff] %v1070
    %v2136 = vld.sshfl [vmem:[#allocation1] sm:$0xff pattern:$0x73625140]
    %v2137 = vld.sshfl [vmem:[#allocation1 + $0x8] sm:$0xff pattern:$0x73625140]
    %v2138 = vld.sshfl [vmem:[#allocation1 + $0x10] sm:$0xff pattern:$0x73625140]
    %v2139 = vld.sshfl [vmem:[#allocation1 + $0x18] sm:$0xff pattern:$0x73625140]
    %v2140 = vld.sshfl [vmem:[#allocation1 + $0x20] sm:$0xff pattern:$0x73625140]
    %v2141 = vld.sshfl [vmem:[#allocation1 + $0x28] sm:$0xff pattern:$0x73625140]
    %v2142 = vld.sshfl [vmem:[#allocation1 + $0x30] sm:$0xff pattern:$0x73625140]
    %v2143 = vld.sshfl [vmem:[#allocation1 + $0x38] sm:$0xff pattern:$0x73625140]
    %2144 = vst [vmem:[#allocation1] ss:$4 sm:$0xff] %v1071
    %2145 = vst [vmem:[%s2124] ss:$4 sm:$0xff] %v1072
    %v2146 = vld.sshfl [vmem:[#allocation1] sm:$0xff pattern:$0x73625140]
    %v2147 = vld.sshfl [vmem:[#allocation1 + $0x8] sm:$0xff pattern:$0x73625140]
    %v2148 = vld.sshfl [vmem:[#allocation1 + $0x10] sm:$0xff pattern:$0x73625140]
    %v2149 = vld.sshfl [vmem:[#allocation1 + $0x18] sm:$0xff pattern:$0x73625140]
    %v2150 = vld.sshfl [vmem:[#allocation1 + $0x20] sm:$0xff pattern:$0x73625140]
    %v2151 = vld.sshfl [vmem:[#allocation1 + $0x28] sm:$0xff pattern:$0x73625140]
    %v2152 = vld.sshfl [vmem:[#allocation1 + $0x30] sm:$0xff pattern:$0x73625140]
    %v2153 = vld.sshfl [vmem:[#allocation1 + $0x38] sm:$0xff pattern:$0x73625140]
    %2154 = vst [vmem:[#allocation1] ss:$4 sm:$0xff] %v1073
    %2155 = vst [vmem:[%s2124] ss:$4 sm:$0xff] %v1074
    %v2156 = vld.sshfl [vmem:[#allocation1] sm:$0xff pattern:$0x73625140]
    %v2157 = vld.sshfl [vmem:[#allocation1 + $0x8] sm:$0xff pattern:$0x73625140]
    %v2158 = vld.sshfl [vmem:[#allocation1 + $0x10] sm:$0xff pattern:$0x73625140]
    %v2159 = vld.sshfl [vmem:[#allocation1 + $0x18] sm:$0xff pattern:$0x73625140]
    %v2160 = vld.sshfl [vmem:[#allocation1 + $0x20] sm:$0xff pattern:$0x73625140]
    %v2161 = vld.sshfl [vmem:[#allocation1 + $0x28] sm:$0xff pattern:$0x73625140]
    %v2162 = vld.sshfl [vmem:[#allocation1 + $0x30] sm:$0xff pattern:$0x73625140]
    %v2163 = vld.sshfl [vmem:[#allocation1 + $0x38] sm:$0xff pattern:$0x73625140]
    %2164 = vst [vmem:[#allocation1] ss:$4 sm:$0xff] %v1075
    %2165 = vst [vmem:[%s2124] ss:$4 sm:$0xff] %v1076
    %v2166 = vld.sshfl [vmem:[#allocation1] sm:$0xff pattern:$0x73625140]
    %v2167 = vld.sshfl [vmem:[#allocation1 + $0x8] sm:$0xff pattern:$0x73625140]
    %v2168 = vld.sshfl [vmem:[#allocation1 + $0x10] sm:$0xff pattern:$0x73625140]
    %v2169 = vld.sshfl [vmem:[#allocation1 + $0x18] sm:$0xff pattern:$0x73625140]
    %v2170 = vld.sshfl [vmem:[#allocation1 + $0x20] sm:$0xff pattern:$0x73625140]
    %v2171 = vld.sshfl [vmem:[#allocation1 + $0x28] sm:$0xff pattern:$0x73625140]
    %v2172 = vld.sshfl [vmem:[#allocation1 + $0x30] sm:$0xff pattern:$0x73625140]
    %v2173 = vld.sshfl [vmem:[#allocation1 + $0x38] sm:$0xff pattern:$0x73625140]
    %2174 = vst [vmem:[#allocation1] ss:$4 sm:$0xff] %v1077
    %2175 = vst [vmem:[%s2124] ss:$4 sm:$0xff] %v1078
    %v2176 = vld.sshfl [vmem:[#allocation1] sm:$0xff pattern:$0x73625140]
    %v2177 = vld.sshfl [vmem:[#allocation1 + $0x8] sm:$0xff pattern:$0x73625140]
    %v2178 = vld.sshfl [vmem:[#allocation1 + $0x10] sm:$0xff pattern:$0x73625140]
    %v2179 = vld.sshfl [vmem:[#allocation1 + $0x18] sm:$0xff pattern:$0x73625140]
    %v2180 = vld.sshfl [vmem:[#allocation1 + $0x20] sm:$0xff pattern:$0x73625140]
    %v2181 = vld.sshfl [vmem:[#allocation1 + $0x28] sm:$0xff pattern:$0x73625140]
    %v2182 = vld.sshfl [vmem:[#allocation1 + $0x30] sm:$0xff pattern:$0x73625140]
    %v2183 = vld.sshfl [vmem:[#allocation1 + $0x38] sm:$0xff pattern:$0x73625140]
    %2184 = vst [vmem:[#allocation1] ss:$4 sm:$0xff] %v1079
    %2185 = vst [vmem:[%s2124] ss:$4 sm:$0xff] %v1080
    %v2186 = vld.sshfl [vmem:[#allocation1] sm:$0xff pattern:$0x73625140]
    %v2187 = vld.sshfl [vmem:[#allocation1 + $0x8] sm:$0xff pattern:$0x73625140]
    %v2188 = vld.sshfl [vmem:[#allocation1 + $0x10] sm:$0xff pattern:$0x73625140]
    %v2189 = vld.sshfl [vmem:[#allocation1 + $0x18] sm:$0xff pattern:$0x73625140]
    %v2190 = vld.sshfl [vmem:[#allocation1 + $0x20] sm:$0xff pattern:$0x73625140]
    %v2191 = vld.sshfl [vmem:[#allocation1 + $0x28] sm:$0xff pattern:$0x73625140]
    %v2192 = vld.sshfl [vmem:[#allocation1 + $0x30] sm:$0xff pattern:$0x73625140]
    %v2193 = vld.sshfl [vmem:[#allocation1 + $0x38] sm:$0xff pattern:$0x73625140]
    %2194 = vst [vmem:[#allocation1] ss:$4 sm:$0xff] %v1081
    %2195 = vst [vmem:[%s2124] ss:$4 sm:$0xff] %v1082
    %v2196 = vld.sshfl [vmem:[#allocation1] sm:$0xff pattern:$0x73625140]
    %v2197 = vld.sshfl [vmem:[#allocation1 + $0x8] sm:$0xff pattern:$0x73625140]
    %v2198 = vld.sshfl [vmem:[#allocation1 + $0x10] sm:$0xff pattern:$0x73625140]
    %v2199 = vld.sshfl [vmem:[#allocation1 + $0x18] sm:$0xff pattern:$0x73625140]
    %v2200 = vld.sshfl [vmem:[#allocation1 + $0x20] sm:$0xff pattern:$0x73625140]
    %v2201 = vld.sshfl [vmem:[#allocation1 + $0x28] sm:$0xff pattern:$0x73625140]
    %v2202 = vld.sshfl [vmem:[#allocation1 + $0x30] sm:$0xff pattern:$0x73625140]
    %v2203 = vld.sshfl [vmem:[#allocation1 + $0x38] sm:$0xff pattern:$0x73625140]
    %2268 = vmatpush.msra.mxu0 %v1098
    %2269 = vmatpush.msra.mxu0 %v1097
    %2270 = vmatpush.msra.mxu0 %v1096
    %2271 = vmatpush.msra.mxu0 %v1095
    %2272 = vmatpush.msra.mxu0 %v1094
    %2273 = vmatpush.msra.mxu0 %v1093
    %2274 = vmatpush.msra.mxu0 %v1092
    %2275 = vmatpush.msra.mxu0 %v1091
    %2276 = vmatpush.msra.mxu0 %v1090
    %2277 = vmatpush.msra.mxu0 %v1089
    %2278 = vmatpush.msra.mxu0 %v1088
    %2279 = vmatpush.msra.mxu0 %v1087
    %2280 = vmatpush.msra.mxu0 %v1086
    %2281 = vmatpush.msra.mxu0 %v1085
    %2282 = vmatpush.msra.mxu0 %v1084
    %2283 = vmatpush.msra.mxu0 %v1083
    %2284 = vmatmul.f32.gmra.mxu0 %v2126
    %v2285 = vpop.f32.mrf.mxu0
    %v2286 = vadd.f32 0.0, %v2285
    %2287 = vdwg.mxu0
    %2288 = vmatpush.msra.mxu0 %v1114
    %2289 = vmatpush.msra.mxu0 %v1113
    %2290 = vmatpush.msra.mxu0 %v1112
    %2291 = vmatpush.msra.mxu0 %v1111
    %2292 = vmatpush.msra.mxu0 %v1110
    %2293 = vmatpush.msra.mxu0 %v1109
    %2294 = vmatpush.msra.mxu0 %v1108
    %2295 = vmatpush.msra.mxu0 %v1107
    %2296 = vmatpush.msra.mxu0 %v1106
    %2297 = vmatpush.msra.mxu0 %v1105
    %2298 = vmatpush.msra.mxu0 %v1104
    %2299 = vmatpush.msra.mxu0 %v1103
    %2300 = vmatpush.msra.mxu0 %v1102
    %2301 = vmatpush.msra.mxu0 %v1101
    %2302 = vmatpush.msra.mxu0 %v1100
    %2303 = vmatpush.msra.mxu0 %v1099
    %2304 = vmatmul.f32.gmra.mxu0 %v2127
    %v2305 = vpop.f32.mrf.mxu0
    %v2306 = vadd.f32 %v2286, %v2305
    %2307 = vdwg.mxu0
    %2308 = vmatpush.msra.mxu0 %v1130
    %2309 = vmatpush.msra.mxu0 %v1129
    %2310 = vmatpush.msra.mxu0 %v1128
    %2311 = vmatpush.msra.mxu0 %v1127
    %2312 = vmatpush.msra.mxu0 %v1126
    %2313 = vmatpush.msra.mxu0 %v1125
    %2314 = vmatpush.msra.mxu0 %v1124
    %2315 = vmatpush.msra.mxu0 %v1123
    %2316 = vmatpush.msra.mxu0 %v1122
    %2317 = vmatpush.msra.mxu0 %v1121
    %2318 = vmatpush.msra.mxu0 %v1120
    %2319 = vmatpush.msra.mxu0 %v1119
    %2320 = vmatpush.msra.mxu0 %v1118
    %2321 = vmatpush.msra.mxu0 %v1117
    %2322 = vmatpush.msra.mxu0 %v1116
    %2323 = vmatpush.msra.mxu0 %v1115
    %2324 = vmatmul.f32.gmra.mxu0 %v2128
    %v2325 = vpop.f32.mrf.mxu0
    %v2326 = vadd.f32 %v2306, %v2325
    %2327 = vdwg.mxu0
    %2328 = vmatpush.msra.mxu0 %v1146
    %2329 = vmatpush.msra.mxu0 %v1145
    %2330 = vmatpush.msra.mxu0 %v1144
    %2331 = vmatpush.msra.mxu0 %v1143
    %2332 = vmatpush.msra.mxu0 %v1142
    %2333 = vmatpush.msra.mxu0 %v1141
    %2334 = vmatpush.msra.mxu0 %v1140
    %2335 = vmatpush.msra.mxu0 %v1139
    %2336 = vmatpush.msra.mxu0 %v1138
    %2337 = vmatpush.msra.mxu0 %v1137
    %2338 = vmatpush.msra.mxu0 %v1136
    %2339 = vmatpush.msra.mxu0 %v1135
    %2340 = vmatpush.msra.mxu0 %v1134
    %2341 = vmatpush.msra.mxu0 %v1133
    %2342 = vmatpush.msra.mxu0 %v1132
    %2343 = vmatpush.msra.mxu0 %v1131
    %2344 = vmatmul.f32.gmra.mxu0 %v2129
    %v2345 = vpop.f32.mrf.mxu0
    %v2346 = vadd.f32 %v2326, %v2345
    %2347 = vdwg.mxu0
    %2348 = vmatpush.msra.mxu0 %v1162
    %2349 = vmatpush.msra.mxu0 %v1161
    %2350 = vmatpush.msra.mxu0 %v1160
    %2351 = vmatpush.msra.mxu0 %v1159
    %2352 = vmatpush.msra.mxu0 %v1158
    %2353 = vmatpush.msra.mxu0 %v1157
    %2354 = vmatpush.msra.mxu0 %v1156
    %2355 = vmatpush.msra.mxu0 %v1155
    %2356 = vmatpush.msra.mxu0 %v1154
    %2357 = vmatpush.msra.mxu0 %v1153
    %2358 = vmatpush.msra.mxu0 %v1152
    %2359 = vmatpush.msra.mxu0 %v1151
    %2360 = vmatpush.msra.mxu0 %v1150
    %2361 = vmatpush.msra.mxu0 %v1149
    %2362 = vmatpush.msra.mxu0 %v1148
    %2363 = vmatpush.msra.mxu0 %v1147
    %2364 = vmatmul.f32.gmra.mxu0 %v2130
    %v2365 = vpop.f32.mrf.mxu0
    %v2366 = vadd.f32 %v2346, %v2365
    %2367 = vdwg.mxu0
    %2368 = vmatpush.msra.mxu0 %v1178
    %2369 = vmatpush.msra.mxu0 %v1177
    %2370 = vmatpush.msra.mxu0 %v1176
    %2371 = vmatpush.msra.mxu0 %v1175
    %2372 = vmatpush.msra.mxu0 %v1174
    %2373 = vmatpush.msra.mxu0 %v1173
    %2374 = vmatpush.msra.mxu0 %v1172
    %2375 = vmatpush.msra.mxu0 %v1171
    %2376 = vmatpush.msra.mxu0 %v1170
    %2377 = vmatpush.msra.mxu0 %v1169
    %2378 = vmatpush.msra.mxu0 %v1168
    %2379 = vmatpush.msra.mxu0 %v1167
    %2380 = vmatpush.msra.mxu0 %v1166
    %2381 = vmatpush.msra.mxu0 %v1165
    %2382 = vmatpush.msra.mxu0 %v1164
    %2383 = vmatpush.msra.mxu0 %v1163
    %2384 = vmatmul.f32.gmra.mxu0 %v2131
    %v2385 = vpop.f32.mrf.mxu0
    %v2386 = vadd.f32 %v2366, %v2385
    %2387 = vdwg.mxu0
    %2388 = vmatpush.msra.mxu0 %v1194
    %2389 = vmatpush.msra.mxu0 %v1193
    %2390 = vmatpush.msra.mxu0 %v1192
    %2391 = vmatpush.msra.mxu0 %v1191
    %2392 = vmatpush.msra.mxu0 %v1190
    %2393 = vmatpush.msra.mxu0 %v1189
    %2394 = vmatpush.msra.mxu0 %v1188
    %2395 = vmatpush.msra.mxu0 %v1187
    %2396 = vmatpush.msra.mxu0 %v1186
    %2397 = vmatpush.msra.mxu0 %v1185
    %2398 = vmatpush.msra.mxu0 %v1184
    %2399 = vmatpush.msra.mxu0 %v1183
    %2400 = vmatpush.msra.mxu0 %v1182
    %2401 = vmatpush.msra.mxu0 %v1181
    %2402 = vmatpush.msra.mxu0 %v1180
    %2403 = vmatpush.msra.mxu0 %v1179
    %2404 = vmatmul.f32.gmra.mxu0 %v2132
    %v2405 = vpop.f32.mrf.mxu0
    %v2406 = vadd.f32 %v2386, %v2405
    %2407 = vdwg.mxu0
    %2408 = vmatpush.msra.mxu0 %v1210
    %2409 = vmatpush.msra.mxu0 %v1209
    %2410 = vmatpush.msra.mxu0 %v1208
    %2411 = vmatpush.msra.mxu0 %v1207
    %2412 = vmatpush.msra.mxu0 %v1206
    %2413 = vmatpush.msra.mxu0 %v1205
    %2414 = vmatpush.msra.mxu0 %v1204
    %2415 = vmatpush.msra.mxu0 %v1203
    %2416 = vmatpush.msra.mxu0 %v1202
    %2417 = vmatpush.msra.mxu0 %v1201
    %2418 = vmatpush.msra.mxu0 %v1200
    %2419 = vmatpush.msra.mxu0 %v1199
    %2420 = vmatpush.msra.mxu0 %v1198
    %2421 = vmatpush.msra.mxu0 %v1197
    %2422 = vmatpush.msra.mxu0 %v1196
    %2423 = vmatpush.msra.mxu0 %v1195
    %2424 = vmatmul.f32.gmra.mxu0 %v2133
    %v2425 = vpop.f32.mrf.mxu0
    %v2426 = vadd.f32 %v2406, %v2425
    %2427 = vdwg.mxu0
    %2428 = vmatpush.msra.mxu0 %v1226
    %2429 = vmatpush.msra.mxu0 %v1225
    %2430 = vmatpush.msra.mxu0 %v1224
    %2431 = vmatpush.msra.mxu0 %v1223
    %2432 = vmatpush.msra.mxu0 %v1222
    %2433 = vmatpush.msra.mxu0 %v1221
    %2434 = vmatpush.msra.mxu0 %v1220
    %2435 = vmatpush.msra.mxu0 %v1219
    %2436 = vmatpush.msra.mxu0 %v1218
    %2437 = vmatpush.msra.mxu0 %v1217
    %2438 = vmatpush.msra.mxu0 %v1216
    %2439 = vmatpush.msra.mxu0 %v1215
    %2440 = vmatpush.msra.mxu0 %v1214
    %2441 = vmatpush.msra.mxu0 %v1213
    %2442 = vmatpush.msra.mxu0 %v1212
    %2443 = vmatpush.msra.mxu0 %v1211
    %2444 = vmatmul.f32.gmra.mxu0 %v2136
    %v2445 = vpop.f32.mrf.mxu0
    %v2446 = vadd.f32 %v2426, %v2445
    %2447 = vdwg.mxu0
    %2448 = vmatpush.msra.mxu0 %v1242
    %2449 = vmatpush.msra.mxu0 %v1241
    %2450 = vmatpush.msra.mxu0 %v1240
    %2451 = vmatpush.msra.mxu0 %v1239
    %2452 = vmatpush.msra.mxu0 %v1238
    %2453 = vmatpush.msra.mxu0 %v1237
    %2454 = vmatpush.msra.mxu0 %v1236
    %2455 = vmatpush.msra.mxu0 %v1235
    %2456 = vmatpush.msra.mxu0 %v1234
    %2457 = vmatpush.msra.mxu0 %v1233
    %2458 = vmatpush.msra.mxu0 %v1232
    %2459 = vmatpush.msra.mxu0 %v1231
    %2460 = vmatpush.msra.mxu0 %v1230
    %2461 = vmatpush.msra.mxu0 %v1229
    %2462 = vmatpush.msra.mxu0 %v1228
    %2463 = vmatpush.msra.mxu0 %v1227
    %2464 = vmatmul.f32.gmra.mxu0 %v2137
    %v2465 = vpop.f32.mrf.mxu0
    %v2466 = vadd.f32 %v2446, %v2465
    %2467 = vdwg.mxu0
    %2468 = vmatpush.msra.mxu0 %v1258
    %2469 = vmatpush.msra.mxu0 %v1257
    %2470 = vmatpush.msra.mxu0 %v1256
    %2471 = vmatpush.msra.mxu0 %v1255
    %2472 = vmatpush.msra.mxu0 %v1254
    %2473 = vmatpush.msra.mxu0 %v1253
    %2474 = vmatpush.msra.mxu0 %v1252
    %2475 = vmatpush.msra.mxu0 %v1251
    %2476 = vmatpush.msra.mxu0 %v1250
    %2477 = vmatpush.msra.mxu0 %v1249
    %2478 = vmatpush.msra.mxu0 %v1248
    %2479 = vmatpush.msra.mxu0 %v1247
    %2480 = vmatpush.msra.mxu0 %v1246
    %2481 = vmatpush.msra.mxu0 %v1245
    %2482 = vmatpush.msra.mxu0 %v1244
    %2483 = vmatpush.msra.mxu0 %v1243
    %2484 = vmatmul.f32.gmra.mxu0 %v2138
    %v2485 = vpop.f32.mrf.mxu0
    %v2486 = vadd.f32 %v2466, %v2485
    %2487 = vdwg.mxu0
    %2488 = vmatpush.msra.mxu0 %v1274
    %2489 = vmatpush.msra.mxu0 %v1273
    %2490 = vmatpush.msra.mxu0 %v1272
    %2491 = vmatpush.msra.mxu0 %v1271
    %2492 = vmatpush.msra.mxu0 %v1270
    %2493 = vmatpush.msra.mxu0 %v1269
    %2494 = vmatpush.msra.mxu0 %v1268
    %2495 = vmatpush.msra.mxu0 %v1267
    %2496 = vmatpush.msra.mxu0 %v1266
    %2497 = vmatpush.msra.mxu0 %v1265
    %2498 = vmatpush.msra.mxu0 %v1264
    %2499 = vmatpush.msra.mxu0 %v1263
    %2500 = vmatpush.msra.mxu0 %v1262
    %2501 = vmatpush.msra.mxu0 %v1261
    %2502 = vmatpush.msra.mxu0 %v1260
    %2503 = vmatpush.msra.mxu0 %v1259
    %2504 = vmatmul.f32.gmra.mxu0 %v2139
    %v2505 = vpop.f32.mrf.mxu0
    %v2506 = vadd.f32 %v2486, %v2505
    %2507 = vdwg.mxu0
    %2508 = vmatpush.msra.mxu0 %v1290
    %2509 = vmatpush.msra.mxu0 %v1289
    %2510 = vmatpush.msra.mxu0 %v1288
    %2511 = vmatpush.msra.mxu0 %v1287
    %2512 = vmatpush.msra.mxu0 %v1286
    %2513 = vmatpush.msra.mxu0 %v1285
    %2514 = vmatpush.msra.mxu0 %v1284
    %2515 = vmatpush.msra.mxu0 %v1283
    %2516 = vmatpush.msra.mxu0 %v1282
    %2517 = vmatpush.msra.mxu0 %v1281
    %2518 = vmatpush.msra.mxu0 %v1280
    %2519 = vmatpush.msra.mxu0 %v1279
    %2520 = vmatpush.msra.mxu0 %v1278
    %2521 = vmatpush.msra.mxu0 %v1277
    %2522 = vmatpush.msra.mxu0 %v1276
    %2523 = vmatpush.msra.mxu0 %v1275
    %2524 = vmatmul.f32.gmra.mxu0 %v2140
    %v2525 = vpop.f32.mrf.mxu0
    %v2526 = vadd.f32 %v2506, %v2525
    %2527 = vdwg.mxu0
    %2528 = vmatpush.msra.mxu0 %v1306
    %2529 = vmatpush.msra.mxu0 %v1305
    %2530 = vmatpush.msra.mxu0 %v1304
    %2531 = vmatpush.msra.mxu0 %v1303
    %2532 = vmatpush.msra.mxu0 %v1302
    %2533 = vmatpush.msra.mxu0 %v1301
    %2534 = vmatpush.msra.mxu0 %v1300
    %2535 = vmatpush.msra.mxu0 %v1299
    %2536 = vmatpush.msra.mxu0 %v1298
    %2537 = vmatpush.msra.mxu0 %v1297
    %2538 = vmatpush.msra.mxu0 %v1296
    %2539 = vmatpush.msra.mxu0 %v1295
    %2540 = vmatpush.msra.mxu0 %v1294
    %2541 = vmatpush.msra.mxu0 %v1293
    %2542 = vmatpush.msra.mxu0 %v1292
    %2543 = vmatpush.msra.mxu0 %v1291
    %2544 = vmatmul.f32.gmra.mxu0 %v2141
    %v2545 = vpop.f32.mrf.mxu0
    %v2546 = vadd.f32 %v2526, %v2545
    %2547 = vdwg.mxu0
    %2548 = vmatpush.msra.mxu0 %v1322
    %2549 = vmatpush.msra.mxu0 %v1321
    %2550 = vmatpush.msra.mxu0 %v1320
    %2551 = vmatpush.msra.mxu0 %v1319
    %2552 = vmatpush.msra.mxu0 %v1318
    %2553 = vmatpush.msra.mxu0 %v1317
    %2554 = vmatpush.msra.mxu0 %v1316
    %2555 = vmatpush.msra.mxu0 %v1315
    %2556 = vmatpush.msra.mxu0 %v1314
    %2557 = vmatpush.msra.mxu0 %v1313
    %2558 = vmatpush.msra.mxu0 %v1312
    %2559 = vmatpush.msra.mxu0 %v1311
    %2560 = vmatpush.msra.mxu0 %v1310
    %2561 = vmatpush.msra.mxu0 %v1309
    %2562 = vmatpush.msra.mxu0 %v1308
    %2563 = vmatpush.msra.mxu0 %v1307
    %2564 = vmatmul.f32.gmra.mxu0 %v2142
    %v2565 = vpop.f32.mrf.mxu0
    %v2566 = vadd.f32 %v2546, %v2565
    %2567 = vdwg.mxu0
    %2568 = vmatpush.msra.mxu0 %v1338
    %2569 = vmatpush.msra.mxu0 %v1337
    %2570 = vmatpush.msra.mxu0 %v1336
    %2571 = vmatpush.msra.mxu0 %v1335
    %2572 = vmatpush.msra.mxu0 %v1334
    %2573 = vmatpush.msra.mxu0 %v1333
    %2574 = vmatpush.msra.mxu0 %v1332
    %2575 = vmatpush.msra.mxu0 %v1331
    %2576 = vmatpush.msra.mxu0 %v1330
    %2577 = vmatpush.msra.mxu0 %v1329
    %2578 = vmatpush.msra.mxu0 %v1328
    %2579 = vmatpush.msra.mxu0 %v1327
    %2580 = vmatpush.msra.mxu0 %v1326
    %2581 = vmatpush.msra.mxu0 %v1325
    %2582 = vmatpush.msra.mxu0 %v1324
    %2583 = vmatpush.msra.mxu0 %v1323
    %2584 = vmatmul.f32.gmra.mxu0 %v2143
    %v2585 = vpop.f32.mrf.mxu0
    %v2586 = vadd.f32 %v2566, %v2585
    %2587 = vdwg.mxu0
    %2588 = vmatpush.msra.mxu0 %v1354
    %2589 = vmatpush.msra.mxu0 %v1353
    %2590 = vmatpush.msra.mxu0 %v1352
    %2591 = vmatpush.msra.mxu0 %v1351
    %2592 = vmatpush.msra.mxu0 %v1350
    %2593 = vmatpush.msra.mxu0 %v1349
    %2594 = vmatpush.msra.mxu0 %v1348
    %2595 = vmatpush.msra.mxu0 %v1347
    %2596 = vmatpush.msra.mxu0 %v1346
    %2597 = vmatpush.msra.mxu0 %v1345
    %2598 = vmatpush.msra.mxu0 %v1344
    %2599 = vmatpush.msra.mxu0 %v1343
    %2600 = vmatpush.msra.mxu0 %v1342
    %2601 = vmatpush.msra.mxu0 %v1341
    %2602 = vmatpush.msra.mxu0 %v1340
    %2603 = vmatpush.msra.mxu0 %v1339
    %2604 = vmatmul.f32.gmra.mxu0 %v2146
    %v2605 = vpop.f32.mrf.mxu0
    %v2606 = vadd.f32 %v2586, %v2605
    %2607 = vdwg.mxu0
    %2608 = vmatpush.msra.mxu0 %v1370
    %2609 = vmatpush.msra.mxu0 %v1369
    %2610 = vmatpush.msra.mxu0 %v1368
    %2611 = vmatpush.msra.mxu0 %v1367
    %2612 = vmatpush.msra.mxu0 %v1366
    %2613 = vmatpush.msra.mxu0 %v1365
    %2614 = vmatpush.msra.mxu0 %v1364
    %2615 = vmatpush.msra.mxu0 %v1363
    %2616 = vmatpush.msra.mxu0 %v1362
    %2617 = vmatpush.msra.mxu0 %v1361
    %2618 = vmatpush.msra.mxu0 %v1360
    %2619 = vmatpush.msra.mxu0 %v1359
    %2620 = vmatpush.msra.mxu0 %v1358
    %2621 = vmatpush.msra.mxu0 %v1357
    %2622 = vmatpush.msra.mxu0 %v1356
    %2623 = vmatpush.msra.mxu0 %v1355
    %2624 = vmatmul.f32.gmra.mxu0 %v2147
    %v2625 = vpop.f32.mrf.mxu0
    %v2626 = vadd.f32 %v2606, %v2625
    %2627 = vdwg.mxu0
    %2628 = vmatpush.msra.mxu0 %v1386
    %2629 = vmatpush.msra.mxu0 %v1385
    %2630 = vmatpush.msra.mxu0 %v1384
    %2631 = vmatpush.msra.mxu0 %v1383
    %2632 = vmatpush.msra.mxu0 %v1382
    %2633 = vmatpush.msra.mxu0 %v1381
    %2634 = vmatpush.msra.mxu0 %v1380
    %2635 = vmatpush.msra.mxu0 %v1379
    %2636 = vmatpush.msra.mxu0 %v1378
    %2637 = vmatpush.msra.mxu0 %v1377
    %2638 = vmatpush.msra.mxu0 %v1376
    %2639 = vmatpush.msra.mxu0 %v1375
    %2640 = vmatpush.msra.mxu0 %v1374
    %2641 = vmatpush.msra.mxu0 %v1373
    %2642 = vmatpush.msra.mxu0 %v1372
    %2643 = vmatpush.msra.mxu0 %v1371
    %2644 = vmatmul.f32.gmra.mxu0 %v2148
    %v2645 = vpop.f32.mrf.mxu0
    %v2646 = vadd.f32 %v2626, %v2645
    %2647 = vdwg.mxu0
    %2648 = vmatpush.msra.mxu0 %v1402
    %2649 = vmatpush.msra.mxu0 %v1401
    %2650 = vmatpush.msra.mxu0 %v1400
    %2651 = vmatpush.msra.mxu0 %v1399
    %2652 = vmatpush.msra.mxu0 %v1398
    %2653 = vmatpush.msra.mxu0 %v1397
    %2654 = vmatpush.msra.mxu0 %v1396
    %2655 = vmatpush.msra.mxu0 %v1395
    %2656 = vmatpush.msra.mxu0 %v1394
    %2657 = vmatpush.msra.mxu0 %v1393
    %2658 = vmatpush.msra.mxu0 %v1392
    %2659 = vmatpush.msra.mxu0 %v1391
    %2660 = vmatpush.msra.mxu0 %v1390
    %2661 = vmatpush.msra.mxu0 %v1389
    %2662 = vmatpush.msra.mxu0 %v1388
    %2663 = vmatpush.msra.mxu0 %v1387
    %2664 = vmatmul.f32.gmra.mxu0 %v2149
    %v2665 = vpop.f32.mrf.mxu0
    %v2666 = vadd.f32 %v2646, %v2665
    %2667 = vdwg.mxu0
    %2668 = vmatpush.msra.mxu0 %v1418
    %2669 = vmatpush.msra.mxu0 %v1417
    %2670 = vmatpush.msra.mxu0 %v1416
    %2671 = vmatpush.msra.mxu0 %v1415
    %2672 = vmatpush.msra.mxu0 %v1414
    %2673 = vmatpush.msra.mxu0 %v1413
    %2674 = vmatpush.msra.mxu0 %v1412
    %2675 = vmatpush.msra.mxu0 %v1411
    %2676 = vmatpush.msra.mxu0 %v1410
    %2677 = vmatpush.msra.mxu0 %v1409
    %2678 = vmatpush.msra.mxu0 %v1408
    %2679 = vmatpush.msra.mxu0 %v1407
    %2680 = vmatpush.msra.mxu0 %v1406
    %2681 = vmatpush.msra.mxu0 %v1405
    %2682 = vmatpush.msra.mxu0 %v1404
    %2683 = vmatpush.msra.mxu0 %v1403
    %2684 = vmatmul.f32.gmra.mxu0 %v2150
    %v2685 = vpop.f32.mrf.mxu0
    %v2686 = vadd.f32 %v2666, %v2685
    %2687 = vdwg.mxu0
    %2688 = vmatpush.msra.mxu0 %v1434
    %2689 = vmatpush.msra.mxu0 %v1433
    %2690 = vmatpush.msra.mxu0 %v1432
    %2691 = vmatpush.msra.mxu0 %v1431
    %2692 = vmatpush.msra.mxu0 %v1430
    %2693 = vmatpush.msra.mxu0 %v1429
    %2694 = vmatpush.msra.mxu0 %v1428
    %2695 = vmatpush.msra.mxu0 %v1427
    %2696 = vmatpush.msra.mxu0 %v1426
    %2697 = vmatpush.msra.mxu0 %v1425
    %2698 = vmatpush.msra.mxu0 %v1424
    %2699 = vmatpush.msra.mxu0 %v1423
    %2700 = vmatpush.msra.mxu0 %v1422
    %2701 = vmatpush.msra.mxu0 %v1421
    %2702 = vmatpush.msra.mxu0 %v1420
    %2703 = vmatpush.msra.mxu0 %v1419
    %2704 = vmatmul.f32.gmra.mxu0 %v2151
    %v2705 = vpop.f32.mrf.mxu0
    %v2706 = vadd.f32 %v2686, %v2705
    %2707 = vdwg.mxu0
    %2708 = vmatpush.msra.mxu0 %v1450
    %2709 = vmatpush.msra.mxu0 %v1449
    %2710 = vmatpush.msra.mxu0 %v1448
    %2711 = vmatpush.msra.mxu0 %v1447
    %2712 = vmatpush.msra.mxu0 %v1446
    %2713 = vmatpush.msra.mxu0 %v1445
    %2714 = vmatpush.msra.mxu0 %v1444
    %2715 = vmatpush.msra.mxu0 %v1443
    %2716 = vmatpush.msra.mxu0 %v1442
    %2717 = vmatpush.msra.mxu0 %v1441
    %2718 = vmatpush.msra.mxu0 %v1440
    %2719 = vmatpush.msra.mxu0 %v1439
    %2720 = vmatpush.msra.mxu0 %v1438
    %2721 = vmatpush.msra.mxu0 %v1437
    %2722 = vmatpush.msra.mxu0 %v1436
    %2723 = vmatpush.msra.mxu0 %v1435
    %2724 = vmatmul.f32.gmra.mxu0 %v2152
    %v2725 = vpop.f32.mrf.mxu0
    %v2726 = vadd.f32 %v2706, %v2725
    %2727 = vdwg.mxu0
    %2728 = vmatpush.msra.mxu0 %v1466
    %2729 = vmatpush.msra.mxu0 %v1465
    %2730 = vmatpush.msra.mxu0 %v1464
    %2731 = vmatpush.msra.mxu0 %v1463
    %2732 = vmatpush.msra.mxu0 %v1462
    %2733 = vmatpush.msra.mxu0 %v1461
    %2734 = vmatpush.msra.mxu0 %v1460
    %2735 = vmatpush.msra.mxu0 %v1459
    %2736 = vmatpush.msra.mxu0 %v1458
    %2737 = vmatpush.msra.mxu0 %v1457
    %2738 = vmatpush.msra.mxu0 %v1456
    %2739 = vmatpush.msra.mxu0 %v1455
    %2740 = vmatpush.msra.mxu0 %v1454
    %2741 = vmatpush.msra.mxu0 %v1453
    %2742 = vmatpush.msra.mxu0 %v1452
    %2743 = vmatpush.msra.mxu0 %v1451
    %2744 = vmatmul.f32.gmra.mxu0 %v2153
    %v2745 = vpop.f32.mrf.mxu0
    %v2746 = vadd.f32 %v2726, %v2745
    %2747 = vdwg.mxu0
    %2748 = vmatpush.msra.mxu0 %v1482
    %2749 = vmatpush.msra.mxu0 %v1481
    %2750 = vmatpush.msra.mxu0 %v1480
    %2751 = vmatpush.msra.mxu0 %v1479
    %2752 = vmatpush.msra.mxu0 %v1478
    %2753 = vmatpush.msra.mxu0 %v1477
    %2754 = vmatpush.msra.mxu0 %v1476
    %2755 = vmatpush.msra.mxu0 %v1475
    %2756 = vmatpush.msra.mxu0 %v1474
    %2757 = vmatpush.msra.mxu0 %v1473
    %2758 = vmatpush.msra.mxu0 %v1472
    %2759 = vmatpush.msra.mxu0 %v1471
    %2760 = vmatpush.msra.mxu0 %v1470
    %2761 = vmatpush.msra.mxu0 %v1469
    %2762 = vmatpush.msra.mxu0 %v1468
    %2763 = vmatpush.msra.mxu0 %v1467
    %2764 = vmatmul.f32.gmra.mxu0 %v2156
    %v2765 = vpop.f32.mrf.mxu0
    %v2766 = vadd.f32 %v2746, %v2765
    %2767 = vdwg.mxu0
    %2768 = vmatpush.msra.mxu0 %v1498
    %2769 = vmatpush.msra.mxu0 %v1497
    %2770 = vmatpush.msra.mxu0 %v1496
    %2771 = vmatpush.msra.mxu0 %v1495
    %2772 = vmatpush.msra.mxu0 %v1494
    %2773 = vmatpush.msra.mxu0 %v1493
    %2774 = vmatpush.msra.mxu0 %v1492
    %2775 = vmatpush.msra.mxu0 %v1491
    %2776 = vmatpush.msra.mxu0 %v1490
    %2777 = vmatpush.msra.mxu0 %v1489
    %2778 = vmatpush.msra.mxu0 %v1488
    %2779 = vmatpush.msra.mxu0 %v1487
    %2780 = vmatpush.msra.mxu0 %v1486
    %2781 = vmatpush.msra.mxu0 %v1485
    %2782 = vmatpush.msra.mxu0 %v1484
    %2783 = vmatpush.msra.mxu0 %v1483
    %2784 = vmatmul.f32.gmra.mxu0 %v2157
    %v2785 = vpop.f32.mrf.mxu0
    %v2786 = vadd.f32 %v2766, %v2785
    %2787 = vdwg.mxu0
    %2788 = vmatpush.msra.mxu0 %v1514
    %2789 = vmatpush.msra.mxu0 %v1513
    %2790 = vmatpush.msra.mxu0 %v1512
    %2791 = vmatpush.msra.mxu0 %v1511
    %2792 = vmatpush.msra.mxu0 %v1510
    %2793 = vmatpush.msra.mxu0 %v1509
    %2794 = vmatpush.msra.mxu0 %v1508
    %2795 = vmatpush.msra.mxu0 %v1507
    %2796 = vmatpush.msra.mxu0 %v1506
    %2797 = vmatpush.msra.mxu0 %v1505
    %2798 = vmatpush.msra.mxu0 %v1504
    %2799 = vmatpush.msra.mxu0 %v1503
    %2800 = vmatpush.msra.mxu0 %v1502
    %2801 = vmatpush.msra.mxu0 %v1501
    %2802 = vmatpush.msra.mxu0 %v1500
    %2803 = vmatpush.msra.mxu0 %v1499
    %2804 = vmatmul.f32.gmra.mxu0 %v2158
    %v2805 = vpop.f32.mrf.mxu0
    %v2806 = vadd.f32 %v2786, %v2805
    %2807 = vdwg.mxu0
    %2808 = vmatpush.msra.mxu0 %v1530
    %2809 = vmatpush.msra.mxu0 %v1529
    %2810 = vmatpush.msra.mxu0 %v1528
    %2811 = vmatpush.msra.mxu0 %v1527
    %2812 = vmatpush.msra.mxu0 %v1526
    %2813 = vmatpush.msra.mxu0 %v1525
    %2814 = vmatpush.msra.mxu0 %v1524
    %2815 = vmatpush.msra.mxu0 %v1523
    %2816 = vmatpush.msra.mxu0 %v1522
    %2817 = vmatpush.msra.mxu0 %v1521
    %2818 = vmatpush.msra.mxu0 %v1520
    %2819 = vmatpush.msra.mxu0 %v1519
    %2820 = vmatpush.msra.mxu0 %v1518
    %2821 = vmatpush.msra.mxu0 %v1517
    %2822 = vmatpush.msra.mxu0 %v1516
    %2823 = vmatpush.msra.mxu0 %v1515
    %2824 = vmatmul.f32.gmra.mxu0 %v2159
    %v2825 = vpop.f32.mrf.mxu0
    %v2826 = vadd.f32 %v2806, %v2825
    %2827 = vdwg.mxu0
    %2828 = vmatpush.msra.mxu0 %v1546
    %2829 = vmatpush.msra.mxu0 %v1545
    %2830 = vmatpush.msra.mxu0 %v1544
    %2831 = vmatpush.msra.mxu0 %v1543
    %2832 = vmatpush.msra.mxu0 %v1542
    %2833 = vmatpush.msra.mxu0 %v1541
    %2834 = vmatpush.msra.mxu0 %v1540
    %2835 = vmatpush.msra.mxu0 %v1539
    %2836 = vmatpush.msra.mxu0 %v1538
    %2837 = vmatpush.msra.mxu0 %v1537
    %2838 = vmatpush.msra.mxu0 %v1536
    %2839 = vmatpush.msra.mxu0 %v1535
    %2840 = vmatpush.msra.mxu0 %v1534
    %2841 = vmatpush.msra.mxu0 %v1533
    %2842 = vmatpush.msra.mxu0 %v1532
    %2843 = vmatpush.msra.mxu0 %v1531
    %2844 = vmatmul.f32.gmra.mxu0 %v2160
    %v2845 = vpop.f32.mrf.mxu0
    %v2846 = vadd.f32 %v2826, %v2845
    %2847 = vdwg.mxu0
    %2848 = vmatpush.msra.mxu0 %v1562
    %2849 = vmatpush.msra.mxu0 %v1561
    %2850 = vmatpush.msra.mxu0 %v1560
    %2851 = vmatpush.msra.mxu0 %v1559
    %2852 = vmatpush.msra.mxu0 %v1558
    %2853 = vmatpush.msra.mxu0 %v1557
    %2854 = vmatpush.msra.mxu0 %v1556
    %2855 = vmatpush.msra.mxu0 %v1555
    %2856 = vmatpush.msra.mxu0 %v1554
    %2857 = vmatpush.msra.mxu0 %v1553
    %2858 = vmatpush.msra.mxu0 %v1552
    %2859 = vmatpush.msra.mxu0 %v1551
    %2860 = vmatpush.msra.mxu0 %v1550
    %2861 = vmatpush.msra.mxu0 %v1549
    %2862 = vmatpush.msra.mxu0 %v1548
    %2863 = vmatpush.msra.mxu0 %v1547
    %2864 = vmatmul.f32.gmra.mxu0 %v2161
    %v2865 = vpop.f32.mrf.mxu0
    %v2866 = vadd.f32 %v2846, %v2865
    %2867 = vdwg.mxu0
    %2868 = vmatpush.msra.mxu0 %v1578
    %2869 = vmatpush.msra.mxu0 %v1577
    %2870 = vmatpush.msra.mxu0 %v1576
    %2871 = vmatpush.msra.mxu0 %v1575
    %2872 = vmatpush.msra.mxu0 %v1574
    %2873 = vmatpush.msra.mxu0 %v1573
    %2874 = vmatpush.msra.mxu0 %v1572
    %2875 = vmatpush.msra.mxu0 %v1571
    %2876 = vmatpush.msra.mxu0 %v1570
    %2877 = vmatpush.msra.mxu0 %v1569
    %2878 = vmatpush.msra.mxu0 %v1568
    %2879 = vmatpush.msra.mxu0 %v1567
    %2880 = vmatpush.msra.mxu0 %v1566
    %2881 = vmatpush.msra.mxu0 %v1565
    %2882 = vmatpush.msra.mxu0 %v1564
    %2883 = vmatpush.msra.mxu0 %v1563
    %2884 = vmatmul.f32.gmra.mxu0 %v2162
    %v2885 = vpop.f32.mrf.mxu0
    %v2886 = vadd.f32 %v2866, %v2885
    %2887 = vdwg.mxu0
    %2888 = vmatpush.msra.mxu0 %v1594
    %2889 = vmatpush.msra.mxu0 %v1593
    %2890 = vmatpush.msra.mxu0 %v1592
    %2891 = vmatpush.msra.mxu0 %v1591
    %2892 = vmatpush.msra.mxu0 %v1590
    %2893 = vmatpush.msra.mxu0 %v1589
    %2894 = vmatpush.msra.mxu0 %v1588
    %2895 = vmatpush.msra.mxu0 %v1587
    %2896 = vmatpush.msra.mxu0 %v1586
    %2897 = vmatpush.msra.mxu0 %v1585
    %2898 = vmatpush.msra.mxu0 %v1584
    %2899 = vmatpush.msra.mxu0 %v1583
    %2900 = vmatpush.msra.mxu0 %v1582
    %2901 = vmatpush.msra.mxu0 %v1581
    %2902 = vmatpush.msra.mxu0 %v1580
    %2903 = vmatpush.msra.mxu0 %v1579
    %2904 = vmatmul.f32.gmra.mxu0 %v2163
    %v2905 = vpop.f32.mrf.mxu0
    %v2906 = vadd.f32 %v2886, %v2905
    %2907 = vdwg.mxu0
    %2908 = vmatpush.msra.mxu0 %v1610
    %2909 = vmatpush.msra.mxu0 %v1609
    %2910 = vmatpush.msra.mxu0 %v1608
    %2911 = vmatpush.msra.mxu0 %v1607
    %2912 = vmatpush.msra.mxu0 %v1606
    %2913 = vmatpush.msra.mxu0 %v1605
    %2914 = vmatpush.msra.mxu0 %v1604
    %2915 = vmatpush.msra.mxu0 %v1603
    %2916 = vmatpush.msra.mxu0 %v1602
    %2917 = vmatpush.msra.mxu0 %v1601
    %2918 = vmatpush.msra.mxu0 %v1600
    %2919 = vmatpush.msra.mxu0 %v1599
    %2920 = vmatpush.msra.mxu0 %v1598
    %2921 = vmatpush.msra.mxu0 %v1597
    %2922 = vmatpush.msra.mxu0 %v1596
    %2923 = vmatpush.msra.mxu0 %v1595
    %2924 = vmatmul.f32.gmra.mxu0 %v2166
    %v2925 = vpop.f32.mrf.mxu0
    %v2926 = vadd.f32 %v2906, %v2925
    %2927 = vdwg.mxu0
    %2928 = vmatpush.msra.mxu0 %v1626
    %2929 = vmatpush.msra.mxu0 %v1625
    %2930 = vmatpush.msra.mxu0 %v1624
    %2931 = vmatpush.msra.mxu0 %v1623
    %2932 = vmatpush.msra.mxu0 %v1622
    %2933 = vmatpush.msra.mxu0 %v1621
    %2934 = vmatpush.msra.mxu0 %v1620
    %2935 = vmatpush.msra.mxu0 %v1619
    %2936 = vmatpush.msra.mxu0 %v1618
    %2937 = vmatpush.msra.mxu0 %v1617
    %2938 = vmatpush.msra.mxu0 %v1616
    %2939 = vmatpush.msra.mxu0 %v1615
    %2940 = vmatpush.msra.mxu0 %v1614
    %2941 = vmatpush.msra.mxu0 %v1613
    %2942 = vmatpush.msra.mxu0 %v1612
    %2943 = vmatpush.msra.mxu0 %v1611
    %2944 = vmatmul.f32.gmra.mxu0 %v2167
    %v2945 = vpop.f32.mrf.mxu0
    %v2946 = vadd.f32 %v2926, %v2945
    %2947 = vdwg.mxu0
    %2948 = vmatpush.msra.mxu0 %v1642
    %2949 = vmatpush.msra.mxu0 %v1641
    %2950 = vmatpush.msra.mxu0 %v1640
    %2951 = vmatpush.msra.mxu0 %v1639
    %2952 = vmatpush.msra.mxu0 %v1638
    %2953 = vmatpush.msra.mxu0 %v1637
    %2954 = vmatpush.msra.mxu0 %v1636
    %2955 = vmatpush.msra.mxu0 %v1635
    %2956 = vmatpush.msra.mxu0 %v1634
    %2957 = vmatpush.msra.mxu0 %v1633
    %2958 = vmatpush.msra.mxu0 %v1632
    %2959 = vmatpush.msra.mxu0 %v1631
    %2960 = vmatpush.msra.mxu0 %v1630
    %2961 = vmatpush.msra.mxu0 %v1629
    %2962 = vmatpush.msra.mxu0 %v1628
    %2963 = vmatpush.msra.mxu0 %v1627
    %2964 = vmatmul.f32.gmra.mxu0 %v2168
    %v2965 = vpop.f32.mrf.mxu0
    %v2966 = vadd.f32 %v2946, %v2965
    %2967 = vdwg.mxu0
    %2968 = vmatpush.msra.mxu0 %v1658
    %2969 = vmatpush.msra.mxu0 %v1657
    %2970 = vmatpush.msra.mxu0 %v1656
    %2971 = vmatpush.msra.mxu0 %v1655
    %2972 = vmatpush.msra.mxu0 %v1654
    %2973 = vmatpush.msra.mxu0 %v1653
    %2974 = vmatpush.msra.mxu0 %v1652
    %2975 = vmatpush.msra.mxu0 %v1651
    %2976 = vmatpush.msra.mxu0 %v1650
    %2977 = vmatpush.msra.mxu0 %v1649
    %2978 = vmatpush.msra.mxu0 %v1648
    %2979 = vmatpush.msra.mxu0 %v1647
    %2980 = vmatpush.msra.mxu0 %v1646
    %2981 = vmatpush.msra.mxu0 %v1645
    %2982 = vmatpush.msra.mxu0 %v1644
    %2983 = vmatpush.msra.mxu0 %v1643
    %2984 = vmatmul.f32.gmra.mxu0 %v2169
    %v2985 = vpop.f32.mrf.mxu0
    %v2986 = vadd.f32 %v2966, %v2985
    %2987 = vdwg.mxu0
    %2988 = vmatpush.msra.mxu0 %v1674
    %2989 = vmatpush.msra.mxu0 %v1673
    %2990 = vmatpush.msra.mxu0 %v1672
    %2991 = vmatpush.msra.mxu0 %v1671
    %2992 = vmatpush.msra.mxu0 %v1670
    %2993 = vmatpush.msra.mxu0 %v1669
    %2994 = vmatpush.msra.mxu0 %v1668
    %2995 = vmatpush.msra.mxu0 %v1667
    %2996 = vmatpush.msra.mxu0 %v1666
    %2997 = vmatpush.msra.mxu0 %v1665
    %2998 = vmatpush.msra.mxu0 %v1664
    %2999 = vmatpush.msra.mxu0 %v1663
    %3000 = vmatpush.msra.mxu0 %v1662
    %3001 = vmatpush.msra.mxu0 %v1661
    %3002 = vmatpush.msra.mxu0 %v1660
    %3003 = vmatpush.msra.mxu0 %v1659
    %3004 = vmatmul.f32.gmra.mxu0 %v2170
    %v3005 = vpop.f32.mrf.mxu0
    %v3006 = vadd.f32 %v2986, %v3005
    %3007 = vdwg.mxu0
    %3008 = vmatpush.msra.mxu0 %v1690
    %3009 = vmatpush.msra.mxu0 %v1689
    %3010 = vmatpush.msra.mxu0 %v1688
    %3011 = vmatpush.msra.mxu0 %v1687
    %3012 = vmatpush.msra.mxu0 %v1686
    %3013 = vmatpush.msra.mxu0 %v1685
    %3014 = vmatpush.msra.mxu0 %v1684
    %3015 = vmatpush.msra.mxu0 %v1683
    %3016 = vmatpush.msra.mxu0 %v1682
    %3017 = vmatpush.msra.mxu0 %v1681
    %3018 = vmatpush.msra.mxu0 %v1680
    %3019 = vmatpush.msra.mxu0 %v1679
    %3020 = vmatpush.msra.mxu0 %v1678
    %3021 = vmatpush.msra.mxu0 %v1677
    %3022 = vmatpush.msra.mxu0 %v1676
    %3023 = vmatpush.msra.mxu0 %v1675
    %3024 = vmatmul.f32.gmra.mxu0 %v2171
    %v3025 = vpop.f32.mrf.mxu0
    %v3026 = vadd.f32 %v3006, %v3025
    %3027 = vdwg.mxu0
    %3028 = vmatpush.msra.mxu0 %v1706
    %3029 = vmatpush.msra.mxu0 %v1705
    %3030 = vmatpush.msra.mxu0 %v1704
    %3031 = vmatpush.msra.mxu0 %v1703
    %3032 = vmatpush.msra.mxu0 %v1702
    %3033 = vmatpush.msra.mxu0 %v1701
    %3034 = vmatpush.msra.mxu0 %v1700
    %3035 = vmatpush.msra.mxu0 %v1699
    %3036 = vmatpush.msra.mxu0 %v1698
    %3037 = vmatpush.msra.mxu0 %v1697
    %3038 = vmatpush.msra.mxu0 %v1696
    %3039 = vmatpush.msra.mxu0 %v1695
    %3040 = vmatpush.msra.mxu0 %v1694
    %3041 = vmatpush.msra.mxu0 %v1693
    %3042 = vmatpush.msra.mxu0 %v1692
    %3043 = vmatpush.msra.mxu0 %v1691
    %3044 = vmatmul.f32.gmra.mxu0 %v2172
    %v3045 = vpop.f32.mrf.mxu0
    %v3046 = vadd.f32 %v3026, %v3045
    %3047 = vdwg.mxu0
    %3048 = vmatpush.msra.mxu0 %v1722
    %3049 = vmatpush.msra.mxu0 %v1721
    %3050 = vmatpush.msra.mxu0 %v1720
    %3051 = vmatpush.msra.mxu0 %v1719
    %3052 = vmatpush.msra.mxu0 %v1718
    %3053 = vmatpush.msra.mxu0 %v1717
    %3054 = vmatpush.msra.mxu0 %v1716
    %3055 = vmatpush.msra.mxu0 %v1715
    %3056 = vmatpush.msra.mxu0 %v1714
    %3057 = vmatpush.msra.mxu0 %v1713
    %3058 = vmatpush.msra.mxu0 %v1712
    %3059 = vmatpush.msra.mxu0 %v1711
    %3060 = vmatpush.msra.mxu0 %v1710
    %3061 = vmatpush.msra.mxu0 %v1709
    %3062 = vmatpush.msra.mxu0 %v1708
    %3063 = vmatpush.msra.mxu0 %v1707
    %3064 = vmatmul.f32.gmra.mxu0 %v2173
    %v3065 = vpop.f32.mrf.mxu0
    %v3066 = vadd.f32 %v3046, %v3065
    %3067 = vdwg.mxu0
    %3068 = vmatpush.msra.mxu0 %v1738
    %3069 = vmatpush.msra.mxu0 %v1737
    %3070 = vmatpush.msra.mxu0 %v1736
    %3071 = vmatpush.msra.mxu0 %v1735
    %3072 = vmatpush.msra.mxu0 %v1734
    %3073 = vmatpush.msra.mxu0 %v1733
    %3074 = vmatpush.msra.mxu0 %v1732
    %3075 = vmatpush.msra.mxu0 %v1731
    %3076 = vmatpush.msra.mxu0 %v1730
    %3077 = vmatpush.msra.mxu0 %v1729
    %3078 = vmatpush.msra.mxu0 %v1728
    %3079 = vmatpush.msra.mxu0 %v1727
    %3080 = vmatpush.msra.mxu0 %v1726
    %3081 = vmatpush.msra.mxu0 %v1725
    %3082 = vmatpush.msra.mxu0 %v1724
    %3083 = vmatpush.msra.mxu0 %v1723
    %3084 = vmatmul.f32.gmra.mxu0 %v2176
    %v3085 = vpop.f32.mrf.mxu0
    %v3086 = vadd.f32 %v3066, %v3085
    %3087 = vdwg.mxu0
    %3088 = vmatpush.msra.mxu0 %v1754
    %3089 = vmatpush.msra.mxu0 %v1753
    %3090 = vmatpush.msra.mxu0 %v1752
    %3091 = vmatpush.msra.mxu0 %v1751
    %3092 = vmatpush.msra.mxu0 %v1750
    %3093 = vmatpush.msra.mxu0 %v1749
    %3094 = vmatpush.msra.mxu0 %v1748
    %3095 = vmatpush.msra.mxu0 %v1747
    %3096 = vmatpush.msra.mxu0 %v1746
    %3097 = vmatpush.msra.mxu0 %v1745
    %3098 = vmatpush.msra.mxu0 %v1744
    %3099 = vmatpush.msra.mxu0 %v1743
    %3100 = vmatpush.msra.mxu0 %v1742
    %3101 = vmatpush.msra.mxu0 %v1741
    %3102 = vmatpush.msra.mxu0 %v1740
    %3103 = vmatpush.msra.mxu0 %v1739
    %3104 = vmatmul.f32.gmra.mxu0 %v2177
    %v3105 = vpop.f32.mrf.mxu0
    %v3106 = vadd.f32 %v3086, %v3105
    %3107 = vdwg.mxu0
    %3108 = vmatpush.msra.mxu0 %v1770
    %3109 = vmatpush.msra.mxu0 %v1769
    %3110 = vmatpush.msra.mxu0 %v1768
    %3111 = vmatpush.msra.mxu0 %v1767
    %3112 = vmatpush.msra.mxu0 %v1766
    %3113 = vmatpush.msra.mxu0 %v1765
    %3114 = vmatpush.msra.mxu0 %v1764
    %3115 = vmatpush.msra.mxu0 %v1763
    %3116 = vmatpush.msra.mxu0 %v1762
    %3117 = vmatpush.msra.mxu0 %v1761
    %3118 = vmatpush.msra.mxu0 %v1760
    %3119 = vmatpush.msra.mxu0 %v1759
    %3120 = vmatpush.msra.mxu0 %v1758
    %3121 = vmatpush.msra.mxu0 %v1757
    %3122 = vmatpush.msra.mxu0 %v1756
    %3123 = vmatpush.msra.mxu0 %v1755
    %3124 = vmatmul.f32.gmra.mxu0 %v2178
    %v3125 = vpop.f32.mrf.mxu0
    %v3126 = vadd.f32 %v3106, %v3125
    %3127 = vdwg.mxu0
    %3128 = vmatpush.msra.mxu0 %v1786
    %3129 = vmatpush.msra.mxu0 %v1785
    %3130 = vmatpush.msra.mxu0 %v1784
    %3131 = vmatpush.msra.mxu0 %v1783
    %3132 = vmatpush.msra.mxu0 %v1782
    %3133 = vmatpush.msra.mxu0 %v1781
    %3134 = vmatpush.msra.mxu0 %v1780
    %3135 = vmatpush.msra.mxu0 %v1779
    %3136 = vmatpush.msra.mxu0 %v1778
    %3137 = vmatpush.msra.mxu0 %v1777
    %3138 = vmatpush.msra.mxu0 %v1776
    %3139 = vmatpush.msra.mxu0 %v1775
    %3140 = vmatpush.msra.mxu0 %v1774
    %3141 = vmatpush.msra.mxu0 %v1773
    %3142 = vmatpush.msra.mxu0 %v1772
    %3143 = vmatpush.msra.mxu0 %v1771
    %3144 = vmatmul.f32.gmra.mxu0 %v2179
    %v3145 = vpop.f32.mrf.mxu0
    %v3146 = vadd.f32 %v3126, %v3145
    %3147 = vdwg.mxu0
    %3148 = vmatpush.msra.mxu0 %v1802
    %3149 = vmatpush.msra.mxu0 %v1801
    %3150 = vmatpush.msra.mxu0 %v1800
    %3151 = vmatpush.msra.mxu0 %v1799
    %3152 = vmatpush.msra.mxu0 %v1798
    %3153 = vmatpush.msra.mxu0 %v1797
    %3154 = vmatpush.msra.mxu0 %v1796
    %3155 = vmatpush.msra.mxu0 %v1795
    %3156 = vmatpush.msra.mxu0 %v1794
    %3157 = vmatpush.msra.mxu0 %v1793
    %3158 = vmatpush.msra.mxu0 %v1792
    %3159 = vmatpush.msra.mxu0 %v1791
    %3160 = vmatpush.msra.mxu0 %v1790
    %3161 = vmatpush.msra.mxu0 %v1789
    %3162 = vmatpush.msra.mxu0 %v1788
    %3163 = vmatpush.msra.mxu0 %v1787
    %3164 = vmatmul.f32.gmra.mxu0 %v2180
    %v3165 = vpop.f32.mrf.mxu0
    %v3166 = vadd.f32 %v3146, %v3165
    %3167 = vdwg.mxu0
    %3168 = vmatpush.msra.mxu0 %v1818
    %3169 = vmatpush.msra.mxu0 %v1817
    %3170 = vmatpush.msra.mxu0 %v1816
    %3171 = vmatpush.msra.mxu0 %v1815
    %3172 = vmatpush.msra.mxu0 %v1814
    %3173 = vmatpush.msra.mxu0 %v1813
    %3174 = vmatpush.msra.mxu0 %v1812
    %3175 = vmatpush.msra.mxu0 %v1811
    %3176 = vmatpush.msra.mxu0 %v1810
    %3177 = vmatpush.msra.mxu0 %v1809
    %3178 = vmatpush.msra.mxu0 %v1808
    %3179 = vmatpush.msra.mxu0 %v1807
    %3180 = vmatpush.msra.mxu0 %v1806
    %3181 = vmatpush.msra.mxu0 %v1805
    %3182 = vmatpush.msra.mxu0 %v1804
    %3183 = vmatpush.msra.mxu0 %v1803
    %3184 = vmatmul.f32.gmra.mxu0 %v2181
    %v3185 = vpop.f32.mrf.mxu0
    %v3186 = vadd.f32 %v3166, %v3185
    %3187 = vdwg.mxu0
    %3188 = vmatpush.msra.mxu0 %v1834
    %3189 = vmatpush.msra.mxu0 %v1833
    %3190 = vmatpush.msra.mxu0 %v1832
    %3191 = vmatpush.msra.mxu0 %v1831
    %3192 = vmatpush.msra.mxu0 %v1830
    %3193 = vmatpush.msra.mxu0 %v1829
    %3194 = vmatpush.msra.mxu0 %v1828
    %3195 = vmatpush.msra.mxu0 %v1827
    %3196 = vmatpush.msra.mxu0 %v1826
    %3197 = vmatpush.msra.mxu0 %v1825
    %3198 = vmatpush.msra.mxu0 %v1824
    %3199 = vmatpush.msra.mxu0 %v1823
    %3200 = vmatpush.msra.mxu0 %v1822
    %3201 = vmatpush.msra.mxu0 %v1821
    %3202 = vmatpush.msra.mxu0 %v1820
    %3203 = vmatpush.msra.mxu0 %v1819
    %3204 = vmatmul.f32.gmra.mxu0 %v2182
    %v3205 = vpop.f32.mrf.mxu0
    %v3206 = vadd.f32 %v3186, %v3205
    %3207 = vdwg.mxu0
    %3208 = vmatpush.msra.mxu0 %v1850
    %3209 = vmatpush.msra.mxu0 %v1849
    %3210 = vmatpush.msra.mxu0 %v1848
    %3211 = vmatpush.msra.mxu0 %v1847
    %3212 = vmatpush.msra.mxu0 %v1846
    %3213 = vmatpush.msra.mxu0 %v1845
    %3214 = vmatpush.msra.mxu0 %v1844
    %3215 = vmatpush.msra.mxu0 %v1843
    %3216 = vmatpush.msra.mxu0 %v1842
    %3217 = vmatpush.msra.mxu0 %v1841
    %3218 = vmatpush.msra.mxu0 %v1840
    %3219 = vmatpush.msra.mxu0 %v1839
    %3220 = vmatpush.msra.mxu0 %v1838
    %3221 = vmatpush.msra.mxu0 %v1837
    %3222 = vmatpush.msra.mxu0 %v1836
    %3223 = vmatpush.msra.mxu0 %v1835
    %3224 = vmatmul.f32.gmra.mxu0 %v2183
    %v3225 = vpop.f32.mrf.mxu0
    %v3226 = vadd.f32 %v3206, %v3225
    %3227 = vdwg.mxu0
    %3228 = vmatpush.msra.mxu0 %v1866
    %3229 = vmatpush.msra.mxu0 %v1865
    %3230 = vmatpush.msra.mxu0 %v1864
    %3231 = vmatpush.msra.mxu0 %v1863
    %3232 = vmatpush.msra.mxu0 %v1862
    %3233 = vmatpush.msra.mxu0 %v1861
    %3234 = vmatpush.msra.mxu0 %v1860
    %3235 = vmatpush.msra.mxu0 %v1859
    %3236 = vmatpush.msra.mxu0 %v1858
    %3237 = vmatpush.msra.mxu0 %v1857
    %3238 = vmatpush.msra.mxu0 %v1856
    %3239 = vmatpush.msra.mxu0 %v1855
    %3240 = vmatpush.msra.mxu0 %v1854
    %3241 = vmatpush.msra.mxu0 %v1853
    %3242 = vmatpush.msra.mxu0 %v1852
    %3243 = vmatpush.msra.mxu0 %v1851
    %3244 = vmatmul.f32.gmra.mxu0 %v2186
    %v3245 = vpop.f32.mrf.mxu0
    %v3246 = vadd.f32 %v3226, %v3245
    %3247 = vdwg.mxu0
    %3248 = vmatpush.msra.mxu0 %v1882
    %3249 = vmatpush.msra.mxu0 %v1881
    %3250 = vmatpush.msra.mxu0 %v1880
    %3251 = vmatpush.msra.mxu0 %v1879
    %3252 = vmatpush.msra.mxu0 %v1878
    %3253 = vmatpush.msra.mxu0 %v1877
    %3254 = vmatpush.msra.mxu0 %v1876
    %3255 = vmatpush.msra.mxu0 %v1875
    %3256 = vmatpush.msra.mxu0 %v1874
    %3257 = vmatpush.msra.mxu0 %v1873
    %3258 = vmatpush.msra.mxu0 %v1872
    %3259 = vmatpush.msra.mxu0 %v1871
    %3260 = vmatpush.msra.mxu0 %v1870
    %3261 = vmatpush.msra.mxu0 %v1869
    %3262 = vmatpush.msra.mxu0 %v1868
    %3263 = vmatpush.msra.mxu0 %v1867
    %3264 = vmatmul.f32.gmra.mxu0 %v2187
    %v3265 = vpop.f32.mrf.mxu0
    %v3266 = vadd.f32 %v3246, %v3265
    %3267 = vdwg.mxu0
    %3268 = vmatpush.msra.mxu0 %v1898
    %3269 = vmatpush.msra.mxu0 %v1897
    %3270 = vmatpush.msra.mxu0 %v1896
    %3271 = vmatpush.msra.mxu0 %v1895
    %3272 = vmatpush.msra.mxu0 %v1894
    %3273 = vmatpush.msra.mxu0 %v1893
    %3274 = vmatpush.msra.mxu0 %v1892
    %3275 = vmatpush.msra.mxu0 %v1891
    %3276 = vmatpush.msra.mxu0 %v1890
    %3277 = vmatpush.msra.mxu0 %v1889
    %3278 = vmatpush.msra.mxu0 %v1888
    %3279 = vmatpush.msra.mxu0 %v1887
    %3280 = vmatpush.msra.mxu0 %v1886
    %3281 = vmatpush.msra.mxu0 %v1885
    %3282 = vmatpush.msra.mxu0 %v1884
    %3283 = vmatpush.msra.mxu0 %v1883
    %3284 = vmatmul.f32.gmra.mxu0 %v2188
    %v3285 = vpop.f32.mrf.mxu0
    %v3286 = vadd.f32 %v3266, %v3285
    %3287 = vdwg.mxu0
    %3288 = vmatpush.msra.mxu0 %v1914
    %3289 = vmatpush.msra.mxu0 %v1913
    %3290 = vmatpush.msra.mxu0 %v1912
    %3291 = vmatpush.msra.mxu0 %v1911
    %3292 = vmatpush.msra.mxu0 %v1910
    %3293 = vmatpush.msra.mxu0 %v1909
    %3294 = vmatpush.msra.mxu0 %v1908
    %3295 = vmatpush.msra.mxu0 %v1907
    %3296 = vmatpush.msra.mxu0 %v1906
    %3297 = vmatpush.msra.mxu0 %v1905
    %3298 = vmatpush.msra.mxu0 %v1904
    %3299 = vmatpush.msra.mxu0 %v1903
    %3300 = vmatpush.msra.mxu0 %v1902
    %3301 = vmatpush.msra.mxu0 %v1901
    %3302 = vmatpush.msra.mxu0 %v1900
    %3303 = vmatpush.msra.mxu0 %v1899
    %3304 = vmatmul.f32.gmra.mxu0 %v2189
    %v3305 = vpop.f32.mrf.mxu0
    %v3306 = vadd.f32 %v3286, %v3305
    %3307 = vdwg.mxu0
    %3308 = vmatpush.msra.mxu0 %v1930
    %3309 = vmatpush.msra.mxu0 %v1929
    %3310 = vmatpush.msra.mxu0 %v1928
    %3311 = vmatpush.msra.mxu0 %v1927
    %3312 = vmatpush.msra.mxu0 %v1926
    %3313 = vmatpush.msra.mxu0 %v1925
    %3314 = vmatpush.msra.mxu0 %v1924
    %3315 = vmatpush.msra.mxu0 %v1923
    %3316 = vmatpush.msra.mxu0 %v1922
    %3317 = vmatpush.msra.mxu0 %v1921
    %3318 = vmatpush.msra.mxu0 %v1920
    %3319 = vmatpush.msra.mxu0 %v1919
    %3320 = vmatpush.msra.mxu0 %v1918
    %3321 = vmatpush.msra.mxu0 %v1917
    %3322 = vmatpush.msra.mxu0 %v1916
    %3323 = vmatpush.msra.mxu0 %v1915
    %3324 = vmatmul.f32.gmra.mxu0 %v2190
    %v3325 = vpop.f32.mrf.mxu0
    %v3326 = vadd.f32 %v3306, %v3325
    %3327 = vdwg.mxu0
    %3328 = vmatpush.msra.mxu0 %v1946
    %3329 = vmatpush.msra.mxu0 %v1945
    %3330 = vmatpush.msra.mxu0 %v1944
    %3331 = vmatpush.msra.mxu0 %v1943
    %3332 = vmatpush.msra.mxu0 %v1942
    %3333 = vmatpush.msra.mxu0 %v1941
    %3334 = vmatpush.msra.mxu0 %v1940
    %3335 = vmatpush.msra.mxu0 %v1939
    %3336 = vmatpush.msra.mxu0 %v1938
    %3337 = vmatpush.msra.mxu0 %v1937
    %3338 = vmatpush.msra.mxu0 %v1936
    %3339 = vmatpush.msra.mxu0 %v1935
    %3340 = vmatpush.msra.mxu0 %v1934
    %3341 = vmatpush.msra.mxu0 %v1933
    %3342 = vmatpush.msra.mxu0 %v1932
    %3343 = vmatpush.msra.mxu0 %v1931
    %3344 = vmatmul.f32.gmra.mxu0 %v2191
    %v3345 = vpop.f32.mrf.mxu0
    %v3346 = vadd.f32 %v3326, %v3345
    %3347 = vdwg.mxu0
    %3348 = vmatpush.msra.mxu0 %v1962
    %3349 = vmatpush.msra.mxu0 %v1961
    %3350 = vmatpush.msra.mxu0 %v1960
    %3351 = vmatpush.msra.mxu0 %v1959
    %3352 = vmatpush.msra.mxu0 %v1958
    %3353 = vmatpush.msra.mxu0 %v1957
    %3354 = vmatpush.msra.mxu0 %v1956
    %3355 = vmatpush.msra.mxu0 %v1955
    %3356 = vmatpush.msra.mxu0 %v1954
    %3357 = vmatpush.msra.mxu0 %v1953
    %3358 = vmatpush.msra.mxu0 %v1952
    %3359 = vmatpush.msra.mxu0 %v1951
    %3360 = vmatpush.msra.mxu0 %v1950
    %3361 = vmatpush.msra.mxu0 %v1949
    %3362 = vmatpush.msra.mxu0 %v1948
    %3363 = vmatpush.msra.mxu0 %v1947
    %3364 = vmatmul.f32.gmra.mxu0 %v2192
    %v3365 = vpop.f32.mrf.mxu0
    %v3366 = vadd.f32 %v3346, %v3365
    %3367 = vdwg.mxu0
    %3368 = vmatpush.msra.mxu0 %v1978
    %3369 = vmatpush.msra.mxu0 %v1977
    %3370 = vmatpush.msra.mxu0 %v1976
    %3371 = vmatpush.msra.mxu0 %v1975
    %3372 = vmatpush.msra.mxu0 %v1974
    %3373 = vmatpush.msra.mxu0 %v1973
    %3374 = vmatpush.msra.mxu0 %v1972
    %3375 = vmatpush.msra.mxu0 %v1971
    %3376 = vmatpush.msra.mxu0 %v1970
    %3377 = vmatpush.msra.mxu0 %v1969
    %3378 = vmatpush.msra.mxu0 %v1968
    %3379 = vmatpush.msra.mxu0 %v1967
    %3380 = vmatpush.msra.mxu0 %v1966
    %3381 = vmatpush.msra.mxu0 %v1965
    %3382 = vmatpush.msra.mxu0 %v1964
    %3383 = vmatpush.msra.mxu0 %v1963
    %3384 = vmatmul.f32.gmra.mxu0 %v2193
    %v3385 = vpop.f32.mrf.mxu0
    %v3386 = vadd.f32 %v3366, %v3385
    %3387 = vdwg.mxu0
    %3388 = vmatpush.msra.mxu0 %v1994
    %3389 = vmatpush.msra.mxu0 %v1993
    %3390 = vmatpush.msra.mxu0 %v1992
    %3391 = vmatpush.msra.mxu0 %v1991
    %3392 = vmatpush.msra.mxu0 %v1990
    %3393 = vmatpush.msra.mxu0 %v1989
    %3394 = vmatpush.msra.mxu0 %v1988
    %3395 = vmatpush.msra.mxu0 %v1987
    %3396 = vmatpush.msra.mxu0 %v1986
    %3397 = vmatpush.msra.mxu0 %v1985
    %3398 = vmatpush.msra.mxu0 %v1984
    %3399 = vmatpush.msra.mxu0 %v1983
    %3400 = vmatpush.msra.mxu0 %v1982
    %3401 = vmatpush.msra.mxu0 %v1981
    %3402 = vmatpush.msra.mxu0 %v1980
    %3403 = vmatpush.msra.mxu0 %v1979
    %3404 = vmatmul.f32.gmra.mxu0 %v2196
    %v3405 = vpop.f32.mrf.mxu0
    %v3406 = vadd.f32 %v3386, %v3405
    %3407 = vdwg.mxu0
    %3408 = vmatpush.msra.mxu0 %v2010
    %3409 = vmatpush.msra.mxu0 %v2009
    %3410 = vmatpush.msra.mxu0 %v2008
    %3411 = vmatpush.msra.mxu0 %v2007
    %3412 = vmatpush.msra.mxu0 %v2006
    %3413 = vmatpush.msra.mxu0 %v2005
    %3414 = vmatpush.msra.mxu0 %v2004
    %3415 = vmatpush.msra.mxu0 %v2003
    %3416 = vmatpush.msra.mxu0 %v2002
    %3417 = vmatpush.msra.mxu0 %v2001
    %3418 = vmatpush.msra.mxu0 %v2000
    %3419 = vmatpush.msra.mxu0 %v1999
    %3420 = vmatpush.msra.mxu0 %v1998
    %3421 = vmatpush.msra.mxu0 %v1997
    %3422 = vmatpush.msra.mxu0 %v1996
    %3423 = vmatpush.msra.mxu0 %v1995
    %3424 = vmatmul.f32.gmra.mxu0 %v2197
    %v3425 = vpop.f32.mrf.mxu0
    %v3426 = vadd.f32 %v3406, %v3425
    %3427 = vdwg.mxu0
    %3428 = vmatpush.msra.mxu0 %v2026
    %3429 = vmatpush.msra.mxu0 %v2025
    %3430 = vmatpush.msra.mxu0 %v2024
    %3431 = vmatpush.msra.mxu0 %v2023
    %3432 = vmatpush.msra.mxu0 %v2022
    %3433 = vmatpush.msra.mxu0 %v2021
    %3434 = vmatpush.msra.mxu0 %v2020
    %3435 = vmatpush.msra.mxu0 %v2019
    %3436 = vmatpush.msra.mxu0 %v2018
    %3437 = vmatpush.msra.mxu0 %v2017
    %3438 = vmatpush.msra.mxu0 %v2016
    %3439 = vmatpush.msra.mxu0 %v2015
    %3440 = vmatpush.msra.mxu0 %v2014
    %3441 = vmatpush.msra.mxu0 %v2013
    %3442 = vmatpush.msra.mxu0 %v2012
    %3443 = vmatpush.msra.mxu0 %v2011
    %3444 = vmatmul.f32.gmra.mxu0 %v2198
    %v3445 = vpop.f32.mrf.mxu0
    %v3446 = vadd.f32 %v3426, %v3445
    %3447 = vdwg.mxu0
    %3448 = vmatpush.msra.mxu0 %v2042
    %3449 = vmatpush.msra.mxu0 %v2041
    %3450 = vmatpush.msra.mxu0 %v2040
    %3451 = vmatpush.msra.mxu0 %v2039
    %3452 = vmatpush.msra.mxu0 %v2038
    %3453 = vmatpush.msra.mxu0 %v2037
    %3454 = vmatpush.msra.mxu0 %v2036
    %3455 = vmatpush.msra.mxu0 %v2035
    %3456 = vmatpush.msra.mxu0 %v2034
    %3457 = vmatpush.msra.mxu0 %v2033
    %3458 = vmatpush.msra.mxu0 %v2032
    %3459 = vmatpush.msra.mxu0 %v2031
    %3460 = vmatpush.msra.mxu0 %v2030
    %3461 = vmatpush.msra.mxu0 %v2029
    %3462 = vmatpush.msra.mxu0 %v2028
    %3463 = vmatpush.msra.mxu0 %v2027
    %3464 = vmatmul.f32.gmra.mxu0 %v2199
    %v3465 = vpop.f32.mrf.mxu0
    %v3466 = vadd.f32 %v3446, %v3465
    %3467 = vdwg.mxu0
    %3468 = vmatpush.msra.mxu0 %v2058
    %3469 = vmatpush.msra.mxu0 %v2057
    %3470 = vmatpush.msra.mxu0 %v2056
    %3471 = vmatpush.msra.mxu0 %v2055
    %3472 = vmatpush.msra.mxu0 %v2054
    %3473 = vmatpush.msra.mxu0 %v2053
    %3474 = vmatpush.msra.mxu0 %v2052
    %3475 = vmatpush.msra.mxu0 %v2051
    %3476 = vmatpush.msra.mxu0 %v2050
    %3477 = vmatpush.msra.mxu0 %v2049
    %3478 = vmatpush.msra.mxu0 %v2048
    %3479 = vmatpush.msra.mxu0 %v2047
    %3480 = vmatpush.msra.mxu0 %v2046
    %3481 = vmatpush.msra.mxu0 %v2045
    %3482 = vmatpush.msra.mxu0 %v2044
    %3483 = vmatpush.msra.mxu0 %v2043
    %3484 = vmatmul.f32.gmra.mxu0 %v2200
    %v3485 = vpop.f32.mrf.mxu0
    %v3486 = vadd.f32 %v3466, %v3485
    %3487 = vdwg.mxu0
    %3488 = vmatpush.msra.mxu0 %v2074
    %3489 = vmatpush.msra.mxu0 %v2073
    %3490 = vmatpush.msra.mxu0 %v2072
    %3491 = vmatpush.msra.mxu0 %v2071
    %3492 = vmatpush.msra.mxu0 %v2070
    %3493 = vmatpush.msra.mxu0 %v2069
    %3494 = vmatpush.msra.mxu0 %v2068
    %3495 = vmatpush.msra.mxu0 %v2067
    %3496 = vmatpush.msra.mxu0 %v2066
    %3497 = vmatpush.msra.mxu0 %v2065
    %3498 = vmatpush.msra.mxu0 %v2064
    %3499 = vmatpush.msra.mxu0 %v2063
    %3500 = vmatpush.msra.mxu0 %v2062
    %3501 = vmatpush.msra.mxu0 %v2061
    %3502 = vmatpush.msra.mxu0 %v2060
    %3503 = vmatpush.msra.mxu0 %v2059
    %3504 = vmatmul.f32.gmra.mxu0 %v2201
    %v3505 = vpop.f32.mrf.mxu0
    %v3506 = vadd.f32 %v3486, %v3505
    %3507 = vdwg.mxu0
    %3508 = vmatpush.msra.mxu0 %v2090
    %3509 = vmatpush.msra.mxu0 %v2089
    %3510 = vmatpush.msra.mxu0 %v2088
    %3511 = vmatpush.msra.mxu0 %v2087
    %3512 = vmatpush.msra.mxu0 %v2086
    %3513 = vmatpush.msra.mxu0 %v2085
    %3514 = vmatpush.msra.mxu0 %v2084
    %3515 = vmatpush.msra.mxu0 %v2083
    %3516 = vmatpush.msra.mxu0 %v2082
    %3517 = vmatpush.msra.mxu0 %v2081
    %3518 = vmatpush.msra.mxu0 %v2080
    %3519 = vmatpush.msra.mxu0 %v2079
    %3520 = vmatpush.msra.mxu0 %v2078
    %3521 = vmatpush.msra.mxu0 %v2077
    %3522 = vmatpush.msra.mxu0 %v2076
    %3523 = vmatpush.msra.mxu0 %v2075
    %3524 = vmatmul.f32.gmra.mxu0 %v2202
    %v3525 = vpop.f32.mrf.mxu0
    %v3526 = vadd.f32 %v3506, %v3525
    %3527 = vdwg.mxu0
    %3528 = vmatpush.msra.mxu0 %v2106
    %3529 = vmatpush.msra.mxu0 %v2105
    %3530 = vmatpush.msra.mxu0 %v2104
    %3531 = vmatpush.msra.mxu0 %v2103
    %3532 = vmatpush.msra.mxu0 %v2102
    %3533 = vmatpush.msra.mxu0 %v2101
    %3534 = vmatpush.msra.mxu0 %v2100
    %3535 = vmatpush.msra.mxu0 %v2099
    %3536 = vmatpush.msra.mxu0 %v2098
    %3537 = vmatpush.msra.mxu0 %v2097
    %3538 = vmatpush.msra.mxu0 %v2096
    %3539 = vmatpush.msra.mxu0 %v2095
    %3540 = vmatpush.msra.mxu0 %v2094
    %3541 = vmatpush.msra.mxu0 %v2093
    %3542 = vmatpush.msra.mxu0 %v2092
    %3543 = vmatpush.msra.mxu0 %v2091
    %3544 = vmatmul.f32.gmra.mxu0 %v2203
    %v3545 = vpop.f32.mrf.mxu0
    %v3546 = vadd.f32 %v3526, %v3545
    %3547 = vdwg.mxu0
    %3564 = vst [vmem:[#allocation1] ss:$4 sm:$0xff] %v27
    %s3565 = scalar_lea.vmem [#allocation1], 32
    %3566 = vst [vmem:[%s3565] ss:$4 sm:$0xff] %v28
    %v3567 = vld.sshfl [vmem:[#allocation1] sm:$0xff pattern:$0x73625140]
    %v3568 = vld.sshfl [vmem:[#allocation1 + $0x8] sm:$0xff pattern:$0x73625140]
    %v3569 = vld.sshfl [vmem:[#allocation1 + $0x10] sm:$0xff pattern:$0x73625140]
    %v3570 = vld.sshfl [vmem:[#allocation1 + $0x18] sm:$0xff pattern:$0x73625140]
    %v3571 = vld.sshfl [vmem:[#allocation1 + $0x20] sm:$0xff pattern:$0x73625140]
    %v3572 = vld.sshfl [vmem:[#allocation1 + $0x28] sm:$0xff pattern:$0x73625140]
    %v3573 = vld.sshfl [vmem:[#allocation1 + $0x30] sm:$0xff pattern:$0x73625140]
    %v3574 = vld.sshfl [vmem:[#allocation1 + $0x38] sm:$0xff pattern:$0x73625140]
    %3575 = vst [vmem:[#allocation1] ss:$4 sm:$0xff] %v29
    %3576 = vst [vmem:[%s3565] ss:$4 sm:$0xff] %v30
    %v3577 = vld.sshfl [vmem:[#allocation1] sm:$0xff pattern:$0x73625140]
    %v3578 = vld.sshfl [vmem:[#allocation1 + $0x8] sm:$0xff pattern:$0x73625140]
    %v3579 = vld.sshfl [vmem:[#allocation1 + $0x10] sm:$0xff pattern:$0x73625140]
    %v3580 = vld.sshfl [vmem:[#allocation1 + $0x18] sm:$0xff pattern:$0x73625140]
    %v3581 = vld.sshfl [vmem:[#allocation1 + $0x20] sm:$0xff pattern:$0x73625140]
    %v3582 = vld.sshfl [vmem:[#allocation1 + $0x28] sm:$0xff pattern:$0x73625140]
    %v3583 = vld.sshfl [vmem:[#allocation1 + $0x30] sm:$0xff pattern:$0x73625140]
    %v3584 = vld.sshfl [vmem:[#allocation1 + $0x38] sm:$0xff pattern:$0x73625140]
    %3585 = vst [vmem:[#allocation1] ss:$4 sm:$0xff] %v31
    %3586 = vst [vmem:[%s3565] ss:$4 sm:$0xff] %v32
    %v3587 = vld.sshfl [vmem:[#allocation1] sm:$0xff pattern:$0x73625140]
    %v3588 = vld.sshfl [vmem:[#allocation1 + $0x8] sm:$0xff pattern:$0x73625140]
    %v3589 = vld.sshfl [vmem:[#allocation1 + $0x10] sm:$0xff pattern:$0x73625140]
    %v3590 = vld.sshfl [vmem:[#allocation1 + $0x18] sm:$0xff pattern:$0x73625140]
    %v3591 = vld.sshfl [vmem:[#allocation1 + $0x20] sm:$0xff pattern:$0x73625140]
    %v3592 = vld.sshfl [vmem:[#allocation1 + $0x28] sm:$0xff pattern:$0x73625140]
    %v3593 = vld.sshfl [vmem:[#allocation1 + $0x30] sm:$0xff pattern:$0x73625140]
    %v3594 = vld.sshfl [vmem:[#allocation1 + $0x38] sm:$0xff pattern:$0x73625140]
    %3595 = vst [vmem:[#allocation1] ss:$4 sm:$0xff] %v33
    %3596 = vst [vmem:[%s3565] ss:$4 sm:$0xff] %v34
    %v3597 = vld.sshfl [vmem:[#allocation1] sm:$0xff pattern:$0x73625140]
    %v3598 = vld.sshfl [vmem:[#allocation1 + $0x8] sm:$0xff pattern:$0x73625140]
    %v3599 = vld.sshfl [vmem:[#allocation1 + $0x10] sm:$0xff pattern:$0x73625140]
    %v3600 = vld.sshfl [vmem:[#allocation1 + $0x18] sm:$0xff pattern:$0x73625140]
    %v3601 = vld.sshfl [vmem:[#allocation1 + $0x20] sm:$0xff pattern:$0x73625140]
    %v3602 = vld.sshfl [vmem:[#allocation1 + $0x28] sm:$0xff pattern:$0x73625140]
    %v3603 = vld.sshfl [vmem:[#allocation1 + $0x30] sm:$0xff pattern:$0x73625140]
    %v3604 = vld.sshfl [vmem:[#allocation1 + $0x38] sm:$0xff pattern:$0x73625140]
    %3605 = vst [vmem:[#allocation1] ss:$4 sm:$0xff] %v35
    %3606 = vst [vmem:[%s3565] ss:$4 sm:$0xff] %v36
    %v3607 = vld.sshfl [vmem:[#allocation1] sm:$0xff pattern:$0x73625140]
    %v3608 = vld.sshfl [vmem:[#allocation1 + $0x8] sm:$0xff pattern:$0x73625140]
    %v3609 = vld.sshfl [vmem:[#allocation1 + $0x10] sm:$0xff pattern:$0x73625140]
    %v3610 = vld.sshfl [vmem:[#allocation1 + $0x18] sm:$0xff pattern:$0x73625140]
    %v3611 = vld.sshfl [vmem:[#allocation1 + $0x20] sm:$0xff pattern:$0x73625140]
    %v3612 = vld.sshfl [vmem:[#allocation1 + $0x28] sm:$0xff pattern:$0x73625140]
    %v3613 = vld.sshfl [vmem:[#allocation1 + $0x30] sm:$0xff pattern:$0x73625140]
    %v3614 = vld.sshfl [vmem:[#allocation1 + $0x38] sm:$0xff pattern:$0x73625140]
    %3615 = vst [vmem:[#allocation1] ss:$4 sm:$0xff] %v37
    %3616 = vst [vmem:[%s3565] ss:$4 sm:$0xff] %v38
    %v3617 = vld.sshfl [vmem:[#allocation1] sm:$0xff pattern:$0x73625140]
    %v3618 = vld.sshfl [vmem:[#allocation1 + $0x8] sm:$0xff pattern:$0x73625140]
    %v3619 = vld.sshfl [vmem:[#allocation1 + $0x10] sm:$0xff pattern:$0x73625140]
    %v3620 = vld.sshfl [vmem:[#allocation1 + $0x18] sm:$0xff pattern:$0x73625140]
    %v3621 = vld.sshfl [vmem:[#allocation1 + $0x20] sm:$0xff pattern:$0x73625140]
    %v3622 = vld.sshfl [vmem:[#allocation1 + $0x28] sm:$0xff pattern:$0x73625140]
    %v3623 = vld.sshfl [vmem:[#allocation1 + $0x30] sm:$0xff pattern:$0x73625140]
    %v3624 = vld.sshfl [vmem:[#allocation1 + $0x38] sm:$0xff pattern:$0x73625140]
    %3625 = vst [vmem:[#allocation1] ss:$4 sm:$0xff] %v39
    %3626 = vst [vmem:[%s3565] ss:$4 sm:$0xff] %v40
    %v3627 = vld.sshfl [vmem:[#allocation1] sm:$0xff pattern:$0x73625140]
    %v3628 = vld.sshfl [vmem:[#allocation1 + $0x8] sm:$0xff pattern:$0x73625140]
    %v3629 = vld.sshfl [vmem:[#allocation1 + $0x10] sm:$0xff pattern:$0x73625140]
    %v3630 = vld.sshfl [vmem:[#allocation1 + $0x18] sm:$0xff pattern:$0x73625140]
    %v3631 = vld.sshfl [vmem:[#allocation1 + $0x20] sm:$0xff pattern:$0x73625140]
    %v3632 = vld.sshfl [vmem:[#allocation1 + $0x28] sm:$0xff pattern:$0x73625140]
    %v3633 = vld.sshfl [vmem:[#allocation1 + $0x30] sm:$0xff pattern:$0x73625140]
    %v3634 = vld.sshfl [vmem:[#allocation1 + $0x38] sm:$0xff pattern:$0x73625140]
    %3635 = vst [vmem:[#allocation1] ss:$4 sm:$0xff] %v41
    %3636 = vst [vmem:[%s3565] ss:$4 sm:$0xff] %v42
    %v3637 = vld.sshfl [vmem:[#allocation1] sm:$0xff pattern:$0x73625140]
    %v3638 = vld.sshfl [vmem:[#allocation1 + $0x8] sm:$0xff pattern:$0x73625140]
    %v3639 = vld.sshfl [vmem:[#allocation1 + $0x10] sm:$0xff pattern:$0x73625140]
    %v3640 = vld.sshfl [vmem:[#allocation1 + $0x18] sm:$0xff pattern:$0x73625140]
    %v3641 = vld.sshfl [vmem:[#allocation1 + $0x20] sm:$0xff pattern:$0x73625140]
    %v3642 = vld.sshfl [vmem:[#allocation1 + $0x28] sm:$0xff pattern:$0x73625140]
    %v3643 = vld.sshfl [vmem:[#allocation1 + $0x30] sm:$0xff pattern:$0x73625140]
    %v3644 = vld.sshfl [vmem:[#allocation1 + $0x38] sm:$0xff pattern:$0x73625140]
    %3709 = vmatpush.msra.mxu0 %v58
    %3710 = vmatpush.msra.mxu0 %v57
    %3711 = vmatpush.msra.mxu0 %v56
    %3712 = vmatpush.msra.mxu0 %v55
    %3713 = vmatpush.msra.mxu0 %v54
    %3714 = vmatpush.msra.mxu0 %v53
    %3715 = vmatpush.msra.mxu0 %v52
    %3716 = vmatpush.msra.mxu0 %v51
    %3717 = vmatpush.msra.mxu0 %v50
    %3718 = vmatpush.msra.mxu0 %v49
    %3719 = vmatpush.msra.mxu0 %v48
    %3720 = vmatpush.msra.mxu0 %v47
    %3721 = vmatpush.msra.mxu0 %v46
    %3722 = vmatpush.msra.mxu0 %v45
    %3723 = vmatpush.msra.mxu0 %v44
    %3724 = vmatpush.msra.mxu0 %v43
    %3725 = vmatmul.f32.gmra.mxu0 %v3567
    %v3726 = vpop.f32.mrf.mxu0
    %v3727 = vadd.f32 %v3546, %v3726
    %3728 = vdwg.mxu0
    %3729 = vmatpush.msra.mxu0 %v74
    %3730 = vmatpush.msra.mxu0 %v73
    %3731 = vmatpush.msra.mxu0 %v72
    %3732 = vmatpush.msra.mxu0 %v71
    %3733 = vmatpush.msra.mxu0 %v70
    %3734 = vmatpush.msra.mxu0 %v69
    %3735 = vmatpush.msra.mxu0 %v68
    %3736 = vmatpush.msra.mxu0 %v67
    %3737 = vmatpush.msra.mxu0 %v66
    %3738 = vmatpush.msra.mxu0 %v65
    %3739 = vmatpush.msra.mxu0 %v64
    %3740 = vmatpush.msra.mxu0 %v63
    %3741 = vmatpush.msra.mxu0 %v62
    %3742 = vmatpush.msra.mxu0 %v61
    %3743 = vmatpush.msra.mxu0 %v60
    %3744 = vmatpush.msra.mxu0 %v59
    %3745 = vmatmul.f32.gmra.mxu0 %v3568
    %v3746 = vpop.f32.mrf.mxu0
    %v3747 = vadd.f32 %v3727, %v3746
    %3748 = vdwg.mxu0
    %3749 = vmatpush.msra.mxu0 %v90
    %3750 = vmatpush.msra.mxu0 %v89
    %3751 = vmatpush.msra.mxu0 %v88
    %3752 = vmatpush.msra.mxu0 %v87
    %3753 = vmatpush.msra.mxu0 %v86
    %3754 = vmatpush.msra.mxu0 %v85
    %3755 = vmatpush.msra.mxu0 %v84
    %3756 = vmatpush.msra.mxu0 %v83
    %3757 = vmatpush.msra.mxu0 %v82
    %3758 = vmatpush.msra.mxu0 %v81
    %3759 = vmatpush.msra.mxu0 %v80
    %3760 = vmatpush.msra.mxu0 %v79
    %3761 = vmatpush.msra.mxu0 %v78
    %3762 = vmatpush.msra.mxu0 %v77
    %3763 = vmatpush.msra.mxu0 %v76
    %3764 = vmatpush.msra.mxu0 %v75
    %3765 = vmatmul.f32.gmra.mxu0 %v3569
    %v3766 = vpop.f32.mrf.mxu0
    %v3767 = vadd.f32 %v3747, %v3766
    %3768 = vdwg.mxu0
    %3769 = vmatpush.msra.mxu0 %v106
    %3770 = vmatpush.msra.mxu0 %v105
    %3771 = vmatpush.msra.mxu0 %v104
    %3772 = vmatpush.msra.mxu0 %v103
    %3773 = vmatpush.msra.mxu0 %v102
    %3774 = vmatpush.msra.mxu0 %v101
    %3775 = vmatpush.msra.mxu0 %v100
    %3776 = vmatpush.msra.mxu0 %v99
    %3777 = vmatpush.msra.mxu0 %v98
    %3778 = vmatpush.msra.mxu0 %v97
    %3779 = vmatpush.msra.mxu0 %v96
    %3780 = vmatpush.msra.mxu0 %v95
    %3781 = vmatpush.msra.mxu0 %v94
    %3782 = vmatpush.msra.mxu0 %v93
    %3783 = vmatpush.msra.mxu0 %v92
    %3784 = vmatpush.msra.mxu0 %v91
    %3785 = vmatmul.f32.gmra.mxu0 %v3570
    %v3786 = vpop.f32.mrf.mxu0
    %v3787 = vadd.f32 %v3767, %v3786
    %3788 = vdwg.mxu0
    %3789 = vmatpush.msra.mxu0 %v122
    %3790 = vmatpush.msra.mxu0 %v121
    %3791 = vmatpush.msra.mxu0 %v120
    %3792 = vmatpush.msra.mxu0 %v119
    %3793 = vmatpush.msra.mxu0 %v118
    %3794 = vmatpush.msra.mxu0 %v117
    %3795 = vmatpush.msra.mxu0 %v116
    %3796 = vmatpush.msra.mxu0 %v115
    %3797 = vmatpush.msra.mxu0 %v114
    %3798 = vmatpush.msra.mxu0 %v113
    %3799 = vmatpush.msra.mxu0 %v112
    %3800 = vmatpush.msra.mxu0 %v111
    %3801 = vmatpush.msra.mxu0 %v110
    %3802 = vmatpush.msra.mxu0 %v109
    %3803 = vmatpush.msra.mxu0 %v108
    %3804 = vmatpush.msra.mxu0 %v107
    %3805 = vmatmul.f32.gmra.mxu0 %v3571
    %v3806 = vpop.f32.mrf.mxu0
    %v3807 = vadd.f32 %v3787, %v3806
    %3808 = vdwg.mxu0
    %3809 = vmatpush.msra.mxu0 %v138
    %3810 = vmatpush.msra.mxu0 %v137
    %3811 = vmatpush.msra.mxu0 %v136
    %3812 = vmatpush.msra.mxu0 %v135
    %3813 = vmatpush.msra.mxu0 %v134
    %3814 = vmatpush.msra.mxu0 %v133
    %3815 = vmatpush.msra.mxu0 %v132
    %3816 = vmatpush.msra.mxu0 %v131
    %3817 = vmatpush.msra.mxu0 %v130
    %3818 = vmatpush.msra.mxu0 %v129
    %3819 = vmatpush.msra.mxu0 %v128
    %3820 = vmatpush.msra.mxu0 %v127
    %3821 = vmatpush.msra.mxu0 %v126
    %3822 = vmatpush.msra.mxu0 %v125
    %3823 = vmatpush.msra.mxu0 %v124
    %3824 = vmatpush.msra.mxu0 %v123
    %3825 = vmatmul.f32.gmra.mxu0 %v3572
    %v3826 = vpop.f32.mrf.mxu0
    %v3827 = vadd.f32 %v3807, %v3826
    %3828 = vdwg.mxu0
    %3829 = vmatpush.msra.mxu0 %v154
    %3830 = vmatpush.msra.mxu0 %v153
    %3831 = vmatpush.msra.mxu0 %v152
    %3832 = vmatpush.msra.mxu0 %v151
    %3833 = vmatpush.msra.mxu0 %v150
    %3834 = vmatpush.msra.mxu0 %v149
    %3835 = vmatpush.msra.mxu0 %v148
    %3836 = vmatpush.msra.mxu0 %v147
    %3837 = vmatpush.msra.mxu0 %v146
    %3838 = vmatpush.msra.mxu0 %v145
    %3839 = vmatpush.msra.mxu0 %v144
    %3840 = vmatpush.msra.mxu0 %v143
    %3841 = vmatpush.msra.mxu0 %v142
    %3842 = vmatpush.msra.mxu0 %v141
    %3843 = vmatpush.msra.mxu0 %v140
    %3844 = vmatpush.msra.mxu0 %v139
    %3845 = vmatmul.f32.gmra.mxu0 %v3573
    %v3846 = vpop.f32.mrf.mxu0
    %v3847 = vadd.f32 %v3827, %v3846
    %3848 = vdwg.mxu0
    %3849 = vmatpush.msra.mxu0 %v170
    %3850 = vmatpush.msra.mxu0 %v169
    %3851 = vmatpush.msra.mxu0 %v168
    %3852 = vmatpush.msra.mxu0 %v167
    %3853 = vmatpush.msra.mxu0 %v166
    %3854 = vmatpush.msra.mxu0 %v165
    %3855 = vmatpush.msra.mxu0 %v164
    %3856 = vmatpush.msra.mxu0 %v163
    %3857 = vmatpush.msra.mxu0 %v162
    %3858 = vmatpush.msra.mxu0 %v161
    %3859 = vmatpush.msra.mxu0 %v160
    %3860 = vmatpush.msra.mxu0 %v159
    %3861 = vmatpush.msra.mxu0 %v158
    %3862 = vmatpush.msra.mxu0 %v157
    %3863 = vmatpush.msra.mxu0 %v156
    %3864 = vmatpush.msra.mxu0 %v155
    %3865 = vmatmul.f32.gmra.mxu0 %v3574
    %v3866 = vpop.f32.mrf.mxu0
    %v3867 = vadd.f32 %v3847, %v3866
    %3868 = vdwg.mxu0
    %3869 = vmatpush.msra.mxu0 %v186
    %3870 = vmatpush.msra.mxu0 %v185
    %3871 = vmatpush.msra.mxu0 %v184
    %3872 = vmatpush.msra.mxu0 %v183
    %3873 = vmatpush.msra.mxu0 %v182
    %3874 = vmatpush.msra.mxu0 %v181
    %3875 = vmatpush.msra.mxu0 %v180
    %3876 = vmatpush.msra.mxu0 %v179
    %3877 = vmatpush.msra.mxu0 %v178
    %3878 = vmatpush.msra.mxu0 %v177
    %3879 = vmatpush.msra.mxu0 %v176
    %3880 = vmatpush.msra.mxu0 %v175
    %3881 = vmatpush.msra.mxu0 %v174
    %3882 = vmatpush.msra.mxu0 %v173
    %3883 = vmatpush.msra.mxu0 %v172
    %3884 = vmatpush.msra.mxu0 %v171
    %3885 = vmatmul.f32.gmra.mxu0 %v3577
    %v3886 = vpop.f32.mrf.mxu0
    %v3887 = vadd.f32 %v3867, %v3886
    %3888 = vdwg.mxu0
    %3889 = vmatpush.msra.mxu0 %v202
    %3890 = vmatpush.msra.mxu0 %v201
    %3891 = vmatpush.msra.mxu0 %v200
    %3892 = vmatpush.msra.mxu0 %v199
    %3893 = vmatpush.msra.mxu0 %v198
    %3894 = vmatpush.msra.mxu0 %v197
    %3895 = vmatpush.msra.mxu0 %v196
    %3896 = vmatpush.msra.mxu0 %v195
    %3897 = vmatpush.msra.mxu0 %v194
    %3898 = vmatpush.msra.mxu0 %v193
    %3899 = vmatpush.msra.mxu0 %v192
    %3900 = vmatpush.msra.mxu0 %v191
    %3901 = vmatpush.msra.mxu0 %v190
    %3902 = vmatpush.msra.mxu0 %v189
    %3903 = vmatpush.msra.mxu0 %v188
    %3904 = vmatpush.msra.mxu0 %v187
    %3905 = vmatmul.f32.gmra.mxu0 %v3578
    %v3906 = vpop.f32.mrf.mxu0
    %v3907 = vadd.f32 %v3887, %v3906
    %3908 = vdwg.mxu0
    %3909 = vmatpush.msra.mxu0 %v218
    %3910 = vmatpush.msra.mxu0 %v217
    %3911 = vmatpush.msra.mxu0 %v216
    %3912 = vmatpush.msra.mxu0 %v215
    %3913 = vmatpush.msra.mxu0 %v214
    %3914 = vmatpush.msra.mxu0 %v213
    %3915 = vmatpush.msra.mxu0 %v212
    %3916 = vmatpush.msra.mxu0 %v211
    %3917 = vmatpush.msra.mxu0 %v210
    %3918 = vmatpush.msra.mxu0 %v209
    %3919 = vmatpush.msra.mxu0 %v208
    %3920 = vmatpush.msra.mxu0 %v207
    %3921 = vmatpush.msra.mxu0 %v206
    %3922 = vmatpush.msra.mxu0 %v205
    %3923 = vmatpush.msra.mxu0 %v204
    %3924 = vmatpush.msra.mxu0 %v203
    %3925 = vmatmul.f32.gmra.mxu0 %v3579
    %v3926 = vpop.f32.mrf.mxu0
    %v3927 = vadd.f32 %v3907, %v3926
    %3928 = vdwg.mxu0
    %3929 = vmatpush.msra.mxu0 %v234
    %3930 = vmatpush.msra.mxu0 %v233
    %3931 = vmatpush.msra.mxu0 %v232
    %3932 = vmatpush.msra.mxu0 %v231
    %3933 = vmatpush.msra.mxu0 %v230
    %3934 = vmatpush.msra.mxu0 %v229
    %3935 = vmatpush.msra.mxu0 %v228
    %3936 = vmatpush.msra.mxu0 %v227
    %3937 = vmatpush.msra.mxu0 %v226
    %3938 = vmatpush.msra.mxu0 %v225
    %3939 = vmatpush.msra.mxu0 %v224
    %3940 = vmatpush.msra.mxu0 %v223
    %3941 = vmatpush.msra.mxu0 %v222
    %3942 = vmatpush.msra.mxu0 %v221
    %3943 = vmatpush.msra.mxu0 %v220
    %3944 = vmatpush.msra.mxu0 %v219
    %3945 = vmatmul.f32.gmra.mxu0 %v3580
    %v3946 = vpop.f32.mrf.mxu0
    %v3947 = vadd.f32 %v3927, %v3946
    %3948 = vdwg.mxu0
    %3949 = vmatpush.msra.mxu0 %v250
    %3950 = vmatpush.msra.mxu0 %v249
    %3951 = vmatpush.msra.mxu0 %v248
    %3952 = vmatpush.msra.mxu0 %v247
    %3953 = vmatpush.msra.mxu0 %v246
    %3954 = vmatpush.msra.mxu0 %v245
    %3955 = vmatpush.msra.mxu0 %v244
    %3956 = vmatpush.msra.mxu0 %v243
    %3957 = vmatpush.msra.mxu0 %v242
    %3958 = vmatpush.msra.mxu0 %v241
    %3959 = vmatpush.msra.mxu0 %v240
    %3960 = vmatpush.msra.mxu0 %v239
    %3961 = vmatpush.msra.mxu0 %v238
    %3962 = vmatpush.msra.mxu0 %v237
    %3963 = vmatpush.msra.mxu0 %v236
    %3964 = vmatpush.msra.mxu0 %v235
    %3965 = vmatmul.f32.gmra.mxu0 %v3581
    %v3966 = vpop.f32.mrf.mxu0
    %v3967 = vadd.f32 %v3947, %v3966
    %3968 = vdwg.mxu0
    %3969 = vmatpush.msra.mxu0 %v266
    %3970 = vmatpush.msra.mxu0 %v265
    %3971 = vmatpush.msra.mxu0 %v264
    %3972 = vmatpush.msra.mxu0 %v263
    %3973 = vmatpush.msra.mxu0 %v262
    %3974 = vmatpush.msra.mxu0 %v261
    %3975 = vmatpush.msra.mxu0 %v260
    %3976 = vmatpush.msra.mxu0 %v259
    %3977 = vmatpush.msra.mxu0 %v258
    %3978 = vmatpush.msra.mxu0 %v257
    %3979 = vmatpush.msra.mxu0 %v256
    %3980 = vmatpush.msra.mxu0 %v255
    %3981 = vmatpush.msra.mxu0 %v254
    %3982 = vmatpush.msra.mxu0 %v253
    %3983 = vmatpush.msra.mxu0 %v252
    %3984 = vmatpush.msra.mxu0 %v251
    %3985 = vmatmul.f32.gmra.mxu0 %v3582
    %v3986 = vpop.f32.mrf.mxu0
    %v3987 = vadd.f32 %v3967, %v3986
    %3988 = vdwg.mxu0
    %3989 = vmatpush.msra.mxu0 %v282
    %3990 = vmatpush.msra.mxu0 %v281
    %3991 = vmatpush.msra.mxu0 %v280
    %3992 = vmatpush.msra.mxu0 %v279
    %3993 = vmatpush.msra.mxu0 %v278
    %3994 = vmatpush.msra.mxu0 %v277
    %3995 = vmatpush.msra.mxu0 %v276
    %3996 = vmatpush.msra.mxu0 %v275
    %3997 = vmatpush.msra.mxu0 %v274
    %3998 = vmatpush.msra.mxu0 %v273
    %3999 = vmatpush.msra.mxu0 %v272
    %4000 = vmatpush.msra.mxu0 %v271
    %4001 = vmatpush.msra.mxu0 %v270
    %4002 = vmatpush.msra.mxu0 %v269
    %4003 = vmatpush.msra.mxu0 %v268
    %4004 = vmatpush.msra.mxu0 %v267
    %4005 = vmatmul.f32.gmra.mxu0 %v3583
    %v4006 = vpop.f32.mrf.mxu0
    %v4007 = vadd.f32 %v3987, %v4006
    %4008 = vdwg.mxu0
    %4009 = vmatpush.msra.mxu0 %v298
    %4010 = vmatpush.msra.mxu0 %v297
    %4011 = vmatpush.msra.mxu0 %v296
    %4012 = vmatpush.msra.mxu0 %v295
    %4013 = vmatpush.msra.mxu0 %v294
    %4014 = vmatpush.msra.mxu0 %v293
    %4015 = vmatpush.msra.mxu0 %v292
    %4016 = vmatpush.msra.mxu0 %v291
    %4017 = vmatpush.msra.mxu0 %v290
    %4018 = vmatpush.msra.mxu0 %v289
    %4019 = vmatpush.msra.mxu0 %v288
    %4020 = vmatpush.msra.mxu0 %v287
    %4021 = vmatpush.msra.mxu0 %v286
    %4022 = vmatpush.msra.mxu0 %v285
    %4023 = vmatpush.msra.mxu0 %v284
    %4024 = vmatpush.msra.mxu0 %v283
    %4025 = vmatmul.f32.gmra.mxu0 %v3584
    %v4026 = vpop.f32.mrf.mxu0
    %v4027 = vadd.f32 %v4007, %v4026
    %4028 = vdwg.mxu0
    %4029 = vmatpush.msra.mxu0 %v314
    %4030 = vmatpush.msra.mxu0 %v313
    %4031 = vmatpush.msra.mxu0 %v312
    %4032 = vmatpush.msra.mxu0 %v311
    %4033 = vmatpush.msra.mxu0 %v310
    %4034 = vmatpush.msra.mxu0 %v309
    %4035 = vmatpush.msra.mxu0 %v308
    %4036 = vmatpush.msra.mxu0 %v307
    %4037 = vmatpush.msra.mxu0 %v306
    %4038 = vmatpush.msra.mxu0 %v305
    %4039 = vmatpush.msra.mxu0 %v304
    %4040 = vmatpush.msra.mxu0 %v303
    %4041 = vmatpush.msra.mxu0 %v302
    %4042 = vmatpush.msra.mxu0 %v301
    %4043 = vmatpush.msra.mxu0 %v300
    %4044 = vmatpush.msra.mxu0 %v299
    %4045 = vmatmul.f32.gmra.mxu0 %v3587
    %v4046 = vpop.f32.mrf.mxu0
    %v4047 = vadd.f32 %v4027, %v4046
    %4048 = vdwg.mxu0
    %4049 = vmatpush.msra.mxu0 %v330
    %4050 = vmatpush.msra.mxu0 %v329
    %4051 = vmatpush.msra.mxu0 %v328
    %4052 = vmatpush.msra.mxu0 %v327
    %4053 = vmatpush.msra.mxu0 %v326
    %4054 = vmatpush.msra.mxu0 %v325
    %4055 = vmatpush.msra.mxu0 %v324
    %4056 = vmatpush.msra.mxu0 %v323
    %4057 = vmatpush.msra.mxu0 %v322
    %4058 = vmatpush.msra.mxu0 %v321
    %4059 = vmatpush.msra.mxu0 %v320
    %4060 = vmatpush.msra.mxu0 %v319
    %4061 = vmatpush.msra.mxu0 %v318
    %4062 = vmatpush.msra.mxu0 %v317
    %4063 = vmatpush.msra.mxu0 %v316
    %4064 = vmatpush.msra.mxu0 %v315
    %4065 = vmatmul.f32.gmra.mxu0 %v3588
    %v4066 = vpop.f32.mrf.mxu0
    %v4067 = vadd.f32 %v4047, %v4066
    %4068 = vdwg.mxu0
    %4069 = vmatpush.msra.mxu0 %v346
    %4070 = vmatpush.msra.mxu0 %v345
    %4071 = vmatpush.msra.mxu0 %v344
    %4072 = vmatpush.msra.mxu0 %v343
    %4073 = vmatpush.msra.mxu0 %v342
    %4074 = vmatpush.msra.mxu0 %v341
    %4075 = vmatpush.msra.mxu0 %v340
    %4076 = vmatpush.msra.mxu0 %v339
    %4077 = vmatpush.msra.mxu0 %v338
    %4078 = vmatpush.msra.mxu0 %v337
    %4079 = vmatpush.msra.mxu0 %v336
    %4080 = vmatpush.msra.mxu0 %v335
    %4081 = vmatpush.msra.mxu0 %v334
    %4082 = vmatpush.msra.mxu0 %v333
    %4083 = vmatpush.msra.mxu0 %v332
    %4084 = vmatpush.msra.mxu0 %v331
    %4085 = vmatmul.f32.gmra.mxu0 %v3589
    %v4086 = vpop.f32.mrf.mxu0
    %v4087 = vadd.f32 %v4067, %v4086
    %4088 = vdwg.mxu0
    %4089 = vmatpush.msra.mxu0 %v362
    %4090 = vmatpush.msra.mxu0 %v361
    %4091 = vmatpush.msra.mxu0 %v360
    %4092 = vmatpush.msra.mxu0 %v359
    %4093 = vmatpush.msra.mxu0 %v358
    %4094 = vmatpush.msra.mxu0 %v357
    %4095 = vmatpush.msra.mxu0 %v356
    %4096 = vmatpush.msra.mxu0 %v355
    %4097 = vmatpush.msra.mxu0 %v354
    %4098 = vmatpush.msra.mxu0 %v353
    %4099 = vmatpush.msra.mxu0 %v352
    %4100 = vmatpush.msra.mxu0 %v351
    %4101 = vmatpush.msra.mxu0 %v350
    %4102 = vmatpush.msra.mxu0 %v349
    %4103 = vmatpush.msra.mxu0 %v348
    %4104 = vmatpush.msra.mxu0 %v347
    %4105 = vmatmul.f32.gmra.mxu0 %v3590
    %v4106 = vpop.f32.mrf.mxu0
    %v4107 = vadd.f32 %v4087, %v4106
    %4108 = vdwg.mxu0
    %4109 = vmatpush.msra.mxu0 %v378
    %4110 = vmatpush.msra.mxu0 %v377
    %4111 = vmatpush.msra.mxu0 %v376
    %4112 = vmatpush.msra.mxu0 %v375
    %4113 = vmatpush.msra.mxu0 %v374
    %4114 = vmatpush.msra.mxu0 %v373
    %4115 = vmatpush.msra.mxu0 %v372
    %4116 = vmatpush.msra.mxu0 %v371
    %4117 = vmatpush.msra.mxu0 %v370
    %4118 = vmatpush.msra.mxu0 %v369
    %4119 = vmatpush.msra.mxu0 %v368
    %4120 = vmatpush.msra.mxu0 %v367
    %4121 = vmatpush.msra.mxu0 %v366
    %4122 = vmatpush.msra.mxu0 %v365
    %4123 = vmatpush.msra.mxu0 %v364
    %4124 = vmatpush.msra.mxu0 %v363
    %4125 = vmatmul.f32.gmra.mxu0 %v3591
    %v4126 = vpop.f32.mrf.mxu0
    %v4127 = vadd.f32 %v4107, %v4126
    %4128 = vdwg.mxu0
    %4129 = vmatpush.msra.mxu0 %v394
    %4130 = vmatpush.msra.mxu0 %v393
    %4131 = vmatpush.msra.mxu0 %v392
    %4132 = vmatpush.msra.mxu0 %v391
    %4133 = vmatpush.msra.mxu0 %v390
    %4134 = vmatpush.msra.mxu0 %v389
    %4135 = vmatpush.msra.mxu0 %v388
    %4136 = vmatpush.msra.mxu0 %v387
    %4137 = vmatpush.msra.mxu0 %v386
    %4138 = vmatpush.msra.mxu0 %v385
    %4139 = vmatpush.msra.mxu0 %v384
    %4140 = vmatpush.msra.mxu0 %v383
    %4141 = vmatpush.msra.mxu0 %v382
    %4142 = vmatpush.msra.mxu0 %v381
    %4143 = vmatpush.msra.mxu0 %v380
    %4144 = vmatpush.msra.mxu0 %v379
    %4145 = vmatmul.f32.gmra.mxu0 %v3592
    %v4146 = vpop.f32.mrf.mxu0
    %v4147 = vadd.f32 %v4127, %v4146
    %4148 = vdwg.mxu0
    %4149 = vmatpush.msra.mxu0 %v410
    %4150 = vmatpush.msra.mxu0 %v409
    %4151 = vmatpush.msra.mxu0 %v408
    %4152 = vmatpush.msra.mxu0 %v407
    %4153 = vmatpush.msra.mxu0 %v406
    %4154 = vmatpush.msra.mxu0 %v405
    %4155 = vmatpush.msra.mxu0 %v404
    %4156 = vmatpush.msra.mxu0 %v403
    %4157 = vmatpush.msra.mxu0 %v402
    %4158 = vmatpush.msra.mxu0 %v401
    %4159 = vmatpush.msra.mxu0 %v400
    %4160 = vmatpush.msra.mxu0 %v399
    %4161 = vmatpush.msra.mxu0 %v398
    %4162 = vmatpush.msra.mxu0 %v397
    %4163 = vmatpush.msra.mxu0 %v396
    %4164 = vmatpush.msra.mxu0 %v395
    %4165 = vmatmul.f32.gmra.mxu0 %v3593
    %v4166 = vpop.f32.mrf.mxu0
    %v4167 = vadd.f32 %v4147, %v4166
    %4168 = vdwg.mxu0
    %4169 = vmatpush.msra.mxu0 %v426
    %4170 = vmatpush.msra.mxu0 %v425
    %4171 = vmatpush.msra.mxu0 %v424
    %4172 = vmatpush.msra.mxu0 %v423
    %4173 = vmatpush.msra.mxu0 %v422
    %4174 = vmatpush.msra.mxu0 %v421
    %4175 = vmatpush.msra.mxu0 %v420
    %4176 = vmatpush.msra.mxu0 %v419
    %4177 = vmatpush.msra.mxu0 %v418
    %4178 = vmatpush.msra.mxu0 %v417
    %4179 = vmatpush.msra.mxu0 %v416
    %4180 = vmatpush.msra.mxu0 %v415
    %4181 = vmatpush.msra.mxu0 %v414
    %4182 = vmatpush.msra.mxu0 %v413
    %4183 = vmatpush.msra.mxu0 %v412
    %4184 = vmatpush.msra.mxu0 %v411
    %4185 = vmatmul.f32.gmra.mxu0 %v3594
    %v4186 = vpop.f32.mrf.mxu0
    %v4187 = vadd.f32 %v4167, %v4186
    %4188 = vdwg.mxu0
    %4189 = vmatpush.msra.mxu0 %v442
    %4190 = vmatpush.msra.mxu0 %v441
    %4191 = vmatpush.msra.mxu0 %v440
    %4192 = vmatpush.msra.mxu0 %v439
    %4193 = vmatpush.msra.mxu0 %v438
    %4194 = vmatpush.msra.mxu0 %v437
    %4195 = vmatpush.msra.mxu0 %v436
    %4196 = vmatpush.msra.mxu0 %v435
    %4197 = vmatpush.msra.mxu0 %v434
    %4198 = vmatpush.msra.mxu0 %v433
    %4199 = vmatpush.msra.mxu0 %v432
    %4200 = vmatpush.msra.mxu0 %v431
    %4201 = vmatpush.msra.mxu0 %v430
    %4202 = vmatpush.msra.mxu0 %v429
    %4203 = vmatpush.msra.mxu0 %v428
    %4204 = vmatpush.msra.mxu0 %v427
    %4205 = vmatmul.f32.gmra.mxu0 %v3597
    %v4206 = vpop.f32.mrf.mxu0
    %v4207 = vadd.f32 %v4187, %v4206
    %4208 = vdwg.mxu0
    %4209 = vmatpush.msra.mxu0 %v458
    %4210 = vmatpush.msra.mxu0 %v457
    %4211 = vmatpush.msra.mxu0 %v456
    %4212 = vmatpush.msra.mxu0 %v455
    %4213 = vmatpush.msra.mxu0 %v454
    %4214 = vmatpush.msra.mxu0 %v453
    %4215 = vmatpush.msra.mxu0 %v452
    %4216 = vmatpush.msra.mxu0 %v451
    %4217 = vmatpush.msra.mxu0 %v450
    %4218 = vmatpush.msra.mxu0 %v449
    %4219 = vmatpush.msra.mxu0 %v448
    %4220 = vmatpush.msra.mxu0 %v447
    %4221 = vmatpush.msra.mxu0 %v446
    %4222 = vmatpush.msra.mxu0 %v445
    %4223 = vmatpush.msra.mxu0 %v444
    %4224 = vmatpush.msra.mxu0 %v443
    %4225 = vmatmul.f32.gmra.mxu0 %v3598
    %v4226 = vpop.f32.mrf.mxu0
    %v4227 = vadd.f32 %v4207, %v4226
    %4228 = vdwg.mxu0
    %4229 = vmatpush.msra.mxu0 %v474
    %4230 = vmatpush.msra.mxu0 %v473
    %4231 = vmatpush.msra.mxu0 %v472
    %4232 = vmatpush.msra.mxu0 %v471
    %4233 = vmatpush.msra.mxu0 %v470
    %4234 = vmatpush.msra.mxu0 %v469
    %4235 = vmatpush.msra.mxu0 %v468
    %4236 = vmatpush.msra.mxu0 %v467
    %4237 = vmatpush.msra.mxu0 %v466
    %4238 = vmatpush.msra.mxu0 %v465
    %4239 = vmatpush.msra.mxu0 %v464
    %4240 = vmatpush.msra.mxu0 %v463
    %4241 = vmatpush.msra.mxu0 %v462
    %4242 = vmatpush.msra.mxu0 %v461
    %4243 = vmatpush.msra.mxu0 %v460
    %4244 = vmatpush.msra.mxu0 %v459
    %4245 = vmatmul.f32.gmra.mxu0 %v3599
    %v4246 = vpop.f32.mrf.mxu0
    %v4247 = vadd.f32 %v4227, %v4246
    %4248 = vdwg.mxu0
    %4249 = vmatpush.msra.mxu0 %v490
    %4250 = vmatpush.msra.mxu0 %v489
    %4251 = vmatpush.msra.mxu0 %v488
    %4252 = vmatpush.msra.mxu0 %v487
    %4253 = vmatpush.msra.mxu0 %v486
    %4254 = vmatpush.msra.mxu0 %v485
    %4255 = vmatpush.msra.mxu0 %v484
    %4256 = vmatpush.msra.mxu0 %v483
    %4257 = vmatpush.msra.mxu0 %v482
    %4258 = vmatpush.msra.mxu0 %v481
    %4259 = vmatpush.msra.mxu0 %v480
    %4260 = vmatpush.msra.mxu0 %v479
    %4261 = vmatpush.msra.mxu0 %v478
    %4262 = vmatpush.msra.mxu0 %v477
    %4263 = vmatpush.msra.mxu0 %v476
    %4264 = vmatpush.msra.mxu0 %v475
    %4265 = vmatmul.f32.gmra.mxu0 %v3600
    %v4266 = vpop.f32.mrf.mxu0
    %v4267 = vadd.f32 %v4247, %v4266
    %4268 = vdwg.mxu0
    %4269 = vmatpush.msra.mxu0 %v506
    %4270 = vmatpush.msra.mxu0 %v505
    %4271 = vmatpush.msra.mxu0 %v504
    %4272 = vmatpush.msra.mxu0 %v503
    %4273 = vmatpush.msra.mxu0 %v502
    %4274 = vmatpush.msra.mxu0 %v501
    %4275 = vmatpush.msra.mxu0 %v500
    %4276 = vmatpush.msra.mxu0 %v499
    %4277 = vmatpush.msra.mxu0 %v498
    %4278 = vmatpush.msra.mxu0 %v497
    %4279 = vmatpush.msra.mxu0 %v496
    %4280 = vmatpush.msra.mxu0 %v495
    %4281 = vmatpush.msra.mxu0 %v494
    %4282 = vmatpush.msra.mxu0 %v493
    %4283 = vmatpush.msra.mxu0 %v492
    %4284 = vmatpush.msra.mxu0 %v491
    %4285 = vmatmul.f32.gmra.mxu0 %v3601
    %v4286 = vpop.f32.mrf.mxu0
    %v4287 = vadd.f32 %v4267, %v4286
    %4288 = vdwg.mxu0
    %4289 = vmatpush.msra.mxu0 %v522
    %4290 = vmatpush.msra.mxu0 %v521
    %4291 = vmatpush.msra.mxu0 %v520
    %4292 = vmatpush.msra.mxu0 %v519
    %4293 = vmatpush.msra.mxu0 %v518
    %4294 = vmatpush.msra.mxu0 %v517
    %4295 = vmatpush.msra.mxu0 %v516
    %4296 = vmatpush.msra.mxu0 %v515
    %4297 = vmatpush.msra.mxu0 %v514
    %4298 = vmatpush.msra.mxu0 %v513
    %4299 = vmatpush.msra.mxu0 %v512
    %4300 = vmatpush.msra.mxu0 %v511
    %4301 = vmatpush.msra.mxu0 %v510
    %4302 = vmatpush.msra.mxu0 %v509
    %4303 = vmatpush.msra.mxu0 %v508
    %4304 = vmatpush.msra.mxu0 %v507
    %4305 = vmatmul.f32.gmra.mxu0 %v3602
    %v4306 = vpop.f32.mrf.mxu0
    %v4307 = vadd.f32 %v4287, %v4306
    %4308 = vdwg.mxu0
    %4309 = vmatpush.msra.mxu0 %v538
    %4310 = vmatpush.msra.mxu0 %v537
    %4311 = vmatpush.msra.mxu0 %v536
    %4312 = vmatpush.msra.mxu0 %v535
    %4313 = vmatpush.msra.mxu0 %v534
    %4314 = vmatpush.msra.mxu0 %v533
    %4315 = vmatpush.msra.mxu0 %v532
    %4316 = vmatpush.msra.mxu0 %v531
    %4317 = vmatpush.msra.mxu0 %v530
    %4318 = vmatpush.msra.mxu0 %v529
    %4319 = vmatpush.msra.mxu0 %v528
    %4320 = vmatpush.msra.mxu0 %v527
    %4321 = vmatpush.msra.mxu0 %v526
    %4322 = vmatpush.msra.mxu0 %v525
    %4323 = vmatpush.msra.mxu0 %v524
    %4324 = vmatpush.msra.mxu0 %v523
    %4325 = vmatmul.f32.gmra.mxu0 %v3603
    %v4326 = vpop.f32.mrf.mxu0
    %v4327 = vadd.f32 %v4307, %v4326
    %4328 = vdwg.mxu0
    %4329 = vmatpush.msra.mxu0 %v554
    %4330 = vmatpush.msra.mxu0 %v553
    %4331 = vmatpush.msra.mxu0 %v552
    %4332 = vmatpush.msra.mxu0 %v551
    %4333 = vmatpush.msra.mxu0 %v550
    %4334 = vmatpush.msra.mxu0 %v549
    %4335 = vmatpush.msra.mxu0 %v548
    %4336 = vmatpush.msra.mxu0 %v547
    %4337 = vmatpush.msra.mxu0 %v546
    %4338 = vmatpush.msra.mxu0 %v545
    %4339 = vmatpush.msra.mxu0 %v544
    %4340 = vmatpush.msra.mxu0 %v543
    %4341 = vmatpush.msra.mxu0 %v542
    %4342 = vmatpush.msra.mxu0 %v541
    %4343 = vmatpush.msra.mxu0 %v540
    %4344 = vmatpush.msra.mxu0 %v539
    %4345 = vmatmul.f32.gmra.mxu0 %v3604
    %v4346 = vpop.f32.mrf.mxu0
    %v4347 = vadd.f32 %v4327, %v4346
    %4348 = vdwg.mxu0
    %4349 = vmatpush.msra.mxu0 %v570
    %4350 = vmatpush.msra.mxu0 %v569
    %4351 = vmatpush.msra.mxu0 %v568
    %4352 = vmatpush.msra.mxu0 %v567
    %4353 = vmatpush.msra.mxu0 %v566
    %4354 = vmatpush.msra.mxu0 %v565
    %4355 = vmatpush.msra.mxu0 %v564
    %4356 = vmatpush.msra.mxu0 %v563
    %4357 = vmatpush.msra.mxu0 %v562
    %4358 = vmatpush.msra.mxu0 %v561
    %4359 = vmatpush.msra.mxu0 %v560
    %4360 = vmatpush.msra.mxu0 %v559
    %4361 = vmatpush.msra.mxu0 %v558
    %4362 = vmatpush.msra.mxu0 %v557
    %4363 = vmatpush.msra.mxu0 %v556
    %4364 = vmatpush.msra.mxu0 %v555
    %4365 = vmatmul.f32.gmra.mxu0 %v3607
    %v4366 = vpop.f32.mrf.mxu0
    %v4367 = vadd.f32 %v4347, %v4366
    %4368 = vdwg.mxu0
    %4369 = vmatpush.msra.mxu0 %v586
    %4370 = vmatpush.msra.mxu0 %v585
    %4371 = vmatpush.msra.mxu0 %v584
    %4372 = vmatpush.msra.mxu0 %v583
    %4373 = vmatpush.msra.mxu0 %v582
    %4374 = vmatpush.msra.mxu0 %v581
    %4375 = vmatpush.msra.mxu0 %v580
    %4376 = vmatpush.msra.mxu0 %v579
    %4377 = vmatpush.msra.mxu0 %v578
    %4378 = vmatpush.msra.mxu0 %v577
    %4379 = vmatpush.msra.mxu0 %v576
    %4380 = vmatpush.msra.mxu0 %v575
    %4381 = vmatpush.msra.mxu0 %v574
    %4382 = vmatpush.msra.mxu0 %v573
    %4383 = vmatpush.msra.mxu0 %v572
    %4384 = vmatpush.msra.mxu0 %v571
    %4385 = vmatmul.f32.gmra.mxu0 %v3608
    %v4386 = vpop.f32.mrf.mxu0
    %v4387 = vadd.f32 %v4367, %v4386
    %4388 = vdwg.mxu0
    %4389 = vmatpush.msra.mxu0 %v602
    %4390 = vmatpush.msra.mxu0 %v601
    %4391 = vmatpush.msra.mxu0 %v600
    %4392 = vmatpush.msra.mxu0 %v599
    %4393 = vmatpush.msra.mxu0 %v598
    %4394 = vmatpush.msra.mxu0 %v597
    %4395 = vmatpush.msra.mxu0 %v596
    %4396 = vmatpush.msra.mxu0 %v595
    %4397 = vmatpush.msra.mxu0 %v594
    %4398 = vmatpush.msra.mxu0 %v593
    %4399 = vmatpush.msra.mxu0 %v592
    %4400 = vmatpush.msra.mxu0 %v591
    %4401 = vmatpush.msra.mxu0 %v590
    %4402 = vmatpush.msra.mxu0 %v589
    %4403 = vmatpush.msra.mxu0 %v588
    %4404 = vmatpush.msra.mxu0 %v587
    %4405 = vmatmul.f32.gmra.mxu0 %v3609
    %v4406 = vpop.f32.mrf.mxu0
    %v4407 = vadd.f32 %v4387, %v4406
    %4408 = vdwg.mxu0
    %4409 = vmatpush.msra.mxu0 %v618
    %4410 = vmatpush.msra.mxu0 %v617
    %4411 = vmatpush.msra.mxu0 %v616
    %4412 = vmatpush.msra.mxu0 %v615
    %4413 = vmatpush.msra.mxu0 %v614
    %4414 = vmatpush.msra.mxu0 %v613
    %4415 = vmatpush.msra.mxu0 %v612
    %4416 = vmatpush.msra.mxu0 %v611
    %4417 = vmatpush.msra.mxu0 %v610
    %4418 = vmatpush.msra.mxu0 %v609
    %4419 = vmatpush.msra.mxu0 %v608
    %4420 = vmatpush.msra.mxu0 %v607
    %4421 = vmatpush.msra.mxu0 %v606
    %4422 = vmatpush.msra.mxu0 %v605
    %4423 = vmatpush.msra.mxu0 %v604
    %4424 = vmatpush.msra.mxu0 %v603
    %4425 = vmatmul.f32.gmra.mxu0 %v3610
    %v4426 = vpop.f32.mrf.mxu0
    %v4427 = vadd.f32 %v4407, %v4426
    %4428 = vdwg.mxu0
    %4429 = vmatpush.msra.mxu0 %v634
    %4430 = vmatpush.msra.mxu0 %v633
    %4431 = vmatpush.msra.mxu0 %v632
    %4432 = vmatpush.msra.mxu0 %v631
    %4433 = vmatpush.msra.mxu0 %v630
    %4434 = vmatpush.msra.mxu0 %v629
    %4435 = vmatpush.msra.mxu0 %v628
    %4436 = vmatpush.msra.mxu0 %v627
    %4437 = vmatpush.msra.mxu0 %v626
    %4438 = vmatpush.msra.mxu0 %v625
    %4439 = vmatpush.msra.mxu0 %v624
    %4440 = vmatpush.msra.mxu0 %v623
    %4441 = vmatpush.msra.mxu0 %v622
    %4442 = vmatpush.msra.mxu0 %v621
    %4443 = vmatpush.msra.mxu0 %v620
    %4444 = vmatpush.msra.mxu0 %v619
    %4445 = vmatmul.f32.gmra.mxu0 %v3611
    %v4446 = vpop.f32.mrf.mxu0
    %v4447 = vadd.f32 %v4427, %v4446
    %4448 = vdwg.mxu0
    %4449 = vmatpush.msra.mxu0 %v650
    %4450 = vmatpush.msra.mxu0 %v649
    %4451 = vmatpush.msra.mxu0 %v648
    %4452 = vmatpush.msra.mxu0 %v647
    %4453 = vmatpush.msra.mxu0 %v646
    %4454 = vmatpush.msra.mxu0 %v645
    %4455 = vmatpush.msra.mxu0 %v644
    %4456 = vmatpush.msra.mxu0 %v643
    %4457 = vmatpush.msra.mxu0 %v642
    %4458 = vmatpush.msra.mxu0 %v641
    %4459 = vmatpush.msra.mxu0 %v640
    %4460 = vmatpush.msra.mxu0 %v639
    %4461 = vmatpush.msra.mxu0 %v638
    %4462 = vmatpush.msra.mxu0 %v637
    %4463 = vmatpush.msra.mxu0 %v636
    %4464 = vmatpush.msra.mxu0 %v635
    %4465 = vmatmul.f32.gmra.mxu0 %v3612
    %v4466 = vpop.f32.mrf.mxu0
    %v4467 = vadd.f32 %v4447, %v4466
    %4468 = vdwg.mxu0
    %4469 = vmatpush.msra.mxu0 %v666
    %4470 = vmatpush.msra.mxu0 %v665
    %4471 = vmatpush.msra.mxu0 %v664
    %4472 = vmatpush.msra.mxu0 %v663
    %4473 = vmatpush.msra.mxu0 %v662
    %4474 = vmatpush.msra.mxu0 %v661
    %4475 = vmatpush.msra.mxu0 %v660
    %4476 = vmatpush.msra.mxu0 %v659
    %4477 = vmatpush.msra.mxu0 %v658
    %4478 = vmatpush.msra.mxu0 %v657
    %4479 = vmatpush.msra.mxu0 %v656
    %4480 = vmatpush.msra.mxu0 %v655
    %4481 = vmatpush.msra.mxu0 %v654
    %4482 = vmatpush.msra.mxu0 %v653
    %4483 = vmatpush.msra.mxu0 %v652
    %4484 = vmatpush.msra.mxu0 %v651
    %4485 = vmatmul.f32.gmra.mxu0 %v3613
    %v4486 = vpop.f32.mrf.mxu0
    %v4487 = vadd.f32 %v4467, %v4486
    %4488 = vdwg.mxu0
    %4489 = vmatpush.msra.mxu0 %v682
    %4490 = vmatpush.msra.mxu0 %v681
    %4491 = vmatpush.msra.mxu0 %v680
    %4492 = vmatpush.msra.mxu0 %v679
    %4493 = vmatpush.msra.mxu0 %v678
    %4494 = vmatpush.msra.mxu0 %v677
    %4495 = vmatpush.msra.mxu0 %v676
    %4496 = vmatpush.msra.mxu0 %v675
    %4497 = vmatpush.msra.mxu0 %v674
    %4498 = vmatpush.msra.mxu0 %v673
    %4499 = vmatpush.msra.mxu0 %v672
    %4500 = vmatpush.msra.mxu0 %v671
    %4501 = vmatpush.msra.mxu0 %v670
    %4502 = vmatpush.msra.mxu0 %v669
    %4503 = vmatpush.msra.mxu0 %v668
    %4504 = vmatpush.msra.mxu0 %v667
    %4505 = vmatmul.f32.gmra.mxu0 %v3614
    %v4506 = vpop.f32.mrf.mxu0
    %v4507 = vadd.f32 %v4487, %v4506
    %4508 = vdwg.mxu0
    %4509 = vmatpush.msra.mxu0 %v698
    %4510 = vmatpush.msra.mxu0 %v697
    %4511 = vmatpush.msra.mxu0 %v696
    %4512 = vmatpush.msra.mxu0 %v695
    %4513 = vmatpush.msra.mxu0 %v694
    %4514 = vmatpush.msra.mxu0 %v693
    %4515 = vmatpush.msra.mxu0 %v692
    %4516 = vmatpush.msra.mxu0 %v691
    %4517 = vmatpush.msra.mxu0 %v690
    %4518 = vmatpush.msra.mxu0 %v689
    %4519 = vmatpush.msra.mxu0 %v688
    %4520 = vmatpush.msra.mxu0 %v687
    %4521 = vmatpush.msra.mxu0 %v686
    %4522 = vmatpush.msra.mxu0 %v685
    %4523 = vmatpush.msra.mxu0 %v684
    %4524 = vmatpush.msra.mxu0 %v683
    %4525 = vmatmul.f32.gmra.mxu0 %v3617
    %v4526 = vpop.f32.mrf.mxu0
    %v4527 = vadd.f32 %v4507, %v4526
    %4528 = vdwg.mxu0
    %4529 = vmatpush.msra.mxu0 %v714
    %4530 = vmatpush.msra.mxu0 %v713
    %4531 = vmatpush.msra.mxu0 %v712
    %4532 = vmatpush.msra.mxu0 %v711
    %4533 = vmatpush.msra.mxu0 %v710
    %4534 = vmatpush.msra.mxu0 %v709
    %4535 = vmatpush.msra.mxu0 %v708
    %4536 = vmatpush.msra.mxu0 %v707
    %4537 = vmatpush.msra.mxu0 %v706
    %4538 = vmatpush.msra.mxu0 %v705
    %4539 = vmatpush.msra.mxu0 %v704
    %4540 = vmatpush.msra.mxu0 %v703
    %4541 = vmatpush.msra.mxu0 %v702
    %4542 = vmatpush.msra.mxu0 %v701
    %4543 = vmatpush.msra.mxu0 %v700
    %4544 = vmatpush.msra.mxu0 %v699
    %4545 = vmatmul.f32.gmra.mxu0 %v3618
    %v4546 = vpop.f32.mrf.mxu0
    %v4547 = vadd.f32 %v4527, %v4546
    %4548 = vdwg.mxu0
    %4549 = vmatpush.msra.mxu0 %v730
    %4550 = vmatpush.msra.mxu0 %v729
    %4551 = vmatpush.msra.mxu0 %v728
    %4552 = vmatpush.msra.mxu0 %v727
    %4553 = vmatpush.msra.mxu0 %v726
    %4554 = vmatpush.msra.mxu0 %v725
    %4555 = vmatpush.msra.mxu0 %v724
    %4556 = vmatpush.msra.mxu0 %v723
    %4557 = vmatpush.msra.mxu0 %v722
    %4558 = vmatpush.msra.mxu0 %v721
    %4559 = vmatpush.msra.mxu0 %v720
    %4560 = vmatpush.msra.mxu0 %v719
    %4561 = vmatpush.msra.mxu0 %v718
    %4562 = vmatpush.msra.mxu0 %v717
    %4563 = vmatpush.msra.mxu0 %v716
    %4564 = vmatpush.msra.mxu0 %v715
    %4565 = vmatmul.f32.gmra.mxu0 %v3619
    %v4566 = vpop.f32.mrf.mxu0
    %v4567 = vadd.f32 %v4547, %v4566
    %4568 = vdwg.mxu0
    %4569 = vmatpush.msra.mxu0 %v746
    %4570 = vmatpush.msra.mxu0 %v745
    %4571 = vmatpush.msra.mxu0 %v744
    %4572 = vmatpush.msra.mxu0 %v743
    %4573 = vmatpush.msra.mxu0 %v742
    %4574 = vmatpush.msra.mxu0 %v741
    %4575 = vmatpush.msra.mxu0 %v740
    %4576 = vmatpush.msra.mxu0 %v739
    %4577 = vmatpush.msra.mxu0 %v738
    %4578 = vmatpush.msra.mxu0 %v737
    %4579 = vmatpush.msra.mxu0 %v736
    %4580 = vmatpush.msra.mxu0 %v735
    %4581 = vmatpush.msra.mxu0 %v734
    %4582 = vmatpush.msra.mxu0 %v733
    %4583 = vmatpush.msra.mxu0 %v732
    %4584 = vmatpush.msra.mxu0 %v731
    %4585 = vmatmul.f32.gmra.mxu0 %v3620
    %v4586 = vpop.f32.mrf.mxu0
    %v4587 = vadd.f32 %v4567, %v4586
    %4588 = vdwg.mxu0
    %4589 = vmatpush.msra.mxu0 %v762
    %4590 = vmatpush.msra.mxu0 %v761
    %4591 = vmatpush.msra.mxu0 %v760
    %4592 = vmatpush.msra.mxu0 %v759
    %4593 = vmatpush.msra.mxu0 %v758
    %4594 = vmatpush.msra.mxu0 %v757
    %4595 = vmatpush.msra.mxu0 %v756
    %4596 = vmatpush.msra.mxu0 %v755
    %4597 = vmatpush.msra.mxu0 %v754
    %4598 = vmatpush.msra.mxu0 %v753
    %4599 = vmatpush.msra.mxu0 %v752
    %4600 = vmatpush.msra.mxu0 %v751
    %4601 = vmatpush.msra.mxu0 %v750
    %4602 = vmatpush.msra.mxu0 %v749
    %4603 = vmatpush.msra.mxu0 %v748
    %4604 = vmatpush.msra.mxu0 %v747
    %4605 = vmatmul.f32.gmra.mxu0 %v3621
    %v4606 = vpop.f32.mrf.mxu0
    %v4607 = vadd.f32 %v4587, %v4606
    %4608 = vdwg.mxu0
    %4609 = vmatpush.msra.mxu0 %v778
    %4610 = vmatpush.msra.mxu0 %v777
    %4611 = vmatpush.msra.mxu0 %v776
    %4612 = vmatpush.msra.mxu0 %v775
    %4613 = vmatpush.msra.mxu0 %v774
    %4614 = vmatpush.msra.mxu0 %v773
    %4615 = vmatpush.msra.mxu0 %v772
    %4616 = vmatpush.msra.mxu0 %v771
    %4617 = vmatpush.msra.mxu0 %v770
    %4618 = vmatpush.msra.mxu0 %v769
    %4619 = vmatpush.msra.mxu0 %v768
    %4620 = vmatpush.msra.mxu0 %v767
    %4621 = vmatpush.msra.mxu0 %v766
    %4622 = vmatpush.msra.mxu0 %v765
    %4623 = vmatpush.msra.mxu0 %v764
    %4624 = vmatpush.msra.mxu0 %v763
    %4625 = vmatmul.f32.gmra.mxu0 %v3622
    %v4626 = vpop.f32.mrf.mxu0
    %v4627 = vadd.f32 %v4607, %v4626
    %4628 = vdwg.mxu0
    %4629 = vmatpush.msra.mxu0 %v794
    %4630 = vmatpush.msra.mxu0 %v793
    %4631 = vmatpush.msra.mxu0 %v792
    %4632 = vmatpush.msra.mxu0 %v791
    %4633 = vmatpush.msra.mxu0 %v790
    %4634 = vmatpush.msra.mxu0 %v789
    %4635 = vmatpush.msra.mxu0 %v788
    %4636 = vmatpush.msra.mxu0 %v787
    %4637 = vmatpush.msra.mxu0 %v786
    %4638 = vmatpush.msra.mxu0 %v785
    %4639 = vmatpush.msra.mxu0 %v784
    %4640 = vmatpush.msra.mxu0 %v783
    %4641 = vmatpush.msra.mxu0 %v782
    %4642 = vmatpush.msra.mxu0 %v781
    %4643 = vmatpush.msra.mxu0 %v780
    %4644 = vmatpush.msra.mxu0 %v779
    %4645 = vmatmul.f32.gmra.mxu0 %v3623
    %v4646 = vpop.f32.mrf.mxu0
    %v4647 = vadd.f32 %v4627, %v4646
    %4648 = vdwg.mxu0
    %4649 = vmatpush.msra.mxu0 %v810
    %4650 = vmatpush.msra.mxu0 %v809
    %4651 = vmatpush.msra.mxu0 %v808
    %4652 = vmatpush.msra.mxu0 %v807
    %4653 = vmatpush.msra.mxu0 %v806
    %4654 = vmatpush.msra.mxu0 %v805
    %4655 = vmatpush.msra.mxu0 %v804
    %4656 = vmatpush.msra.mxu0 %v803
    %4657 = vmatpush.msra.mxu0 %v802
    %4658 = vmatpush.msra.mxu0 %v801
    %4659 = vmatpush.msra.mxu0 %v800
    %4660 = vmatpush.msra.mxu0 %v799
    %4661 = vmatpush.msra.mxu0 %v798
    %4662 = vmatpush.msra.mxu0 %v797
    %4663 = vmatpush.msra.mxu0 %v796
    %4664 = vmatpush.msra.mxu0 %v795
    %4665 = vmatmul.f32.gmra.mxu0 %v3624
    %v4666 = vpop.f32.mrf.mxu0
    %v4667 = vadd.f32 %v4647, %v4666
    %4668 = vdwg.mxu0
    %4669 = vmatpush.msra.mxu0 %v826
    %4670 = vmatpush.msra.mxu0 %v825
    %4671 = vmatpush.msra.mxu0 %v824
    %4672 = vmatpush.msra.mxu0 %v823
    %4673 = vmatpush.msra.mxu0 %v822
    %4674 = vmatpush.msra.mxu0 %v821
    %4675 = vmatpush.msra.mxu0 %v820
    %4676 = vmatpush.msra.mxu0 %v819
    %4677 = vmatpush.msra.mxu0 %v818
    %4678 = vmatpush.msra.mxu0 %v817
    %4679 = vmatpush.msra.mxu0 %v816
    %4680 = vmatpush.msra.mxu0 %v815
    %4681 = vmatpush.msra.mxu0 %v814
    %4682 = vmatpush.msra.mxu0 %v813
    %4683 = vmatpush.msra.mxu0 %v812
    %4684 = vmatpush.msra.mxu0 %v811
    %4685 = vmatmul.f32.gmra.mxu0 %v3627
    %v4686 = vpop.f32.mrf.mxu0
    %v4687 = vadd.f32 %v4667, %v4686
    %4688 = vdwg.mxu0
    %4689 = vmatpush.msra.mxu0 %v842
    %4690 = vmatpush.msra.mxu0 %v841
    %4691 = vmatpush.msra.mxu0 %v840
    %4692 = vmatpush.msra.mxu0 %v839
    %4693 = vmatpush.msra.mxu0 %v838
    %4694 = vmatpush.msra.mxu0 %v837
    %4695 = vmatpush.msra.mxu0 %v836
    %4696 = vmatpush.msra.mxu0 %v835
    %4697 = vmatpush.msra.mxu0 %v834
    %4698 = vmatpush.msra.mxu0 %v833
    %4699 = vmatpush.msra.mxu0 %v832
    %4700 = vmatpush.msra.mxu0 %v831
    %4701 = vmatpush.msra.mxu0 %v830
    %4702 = vmatpush.msra.mxu0 %v829
    %4703 = vmatpush.msra.mxu0 %v828
    %4704 = vmatpush.msra.mxu0 %v827
    %4705 = vmatmul.f32.gmra.mxu0 %v3628
    %v4706 = vpop.f32.mrf.mxu0
    %v4707 = vadd.f32 %v4687, %v4706
    %4708 = vdwg.mxu0
    %4709 = vmatpush.msra.mxu0 %v858
    %4710 = vmatpush.msra.mxu0 %v857
    %4711 = vmatpush.msra.mxu0 %v856
    %4712 = vmatpush.msra.mxu0 %v855
    %4713 = vmatpush.msra.mxu0 %v854
    %4714 = vmatpush.msra.mxu0 %v853
    %4715 = vmatpush.msra.mxu0 %v852
    %4716 = vmatpush.msra.mxu0 %v851
    %4717 = vmatpush.msra.mxu0 %v850
    %4718 = vmatpush.msra.mxu0 %v849
    %4719 = vmatpush.msra.mxu0 %v848
    %4720 = vmatpush.msra.mxu0 %v847
    %4721 = vmatpush.msra.mxu0 %v846
    %4722 = vmatpush.msra.mxu0 %v845
    %4723 = vmatpush.msra.mxu0 %v844
    %4724 = vmatpush.msra.mxu0 %v843
    %4725 = vmatmul.f32.gmra.mxu0 %v3629
    %v4726 = vpop.f32.mrf.mxu0
    %v4727 = vadd.f32 %v4707, %v4726
    %4728 = vdwg.mxu0
    %4729 = vmatpush.msra.mxu0 %v874
    %4730 = vmatpush.msra.mxu0 %v873
    %4731 = vmatpush.msra.mxu0 %v872
    %4732 = vmatpush.msra.mxu0 %v871
    %4733 = vmatpush.msra.mxu0 %v870
    %4734 = vmatpush.msra.mxu0 %v869
    %4735 = vmatpush.msra.mxu0 %v868
    %4736 = vmatpush.msra.mxu0 %v867
    %4737 = vmatpush.msra.mxu0 %v866
    %4738 = vmatpush.msra.mxu0 %v865
    %4739 = vmatpush.msra.mxu0 %v864
    %4740 = vmatpush.msra.mxu0 %v863
    %4741 = vmatpush.msra.mxu0 %v862
    %4742 = vmatpush.msra.mxu0 %v861
    %4743 = vmatpush.msra.mxu0 %v860
    %4744 = vmatpush.msra.mxu0 %v859
    %4745 = vmatmul.f32.gmra.mxu0 %v3630
    %v4746 = vpop.f32.mrf.mxu0
    %v4747 = vadd.f32 %v4727, %v4746
    %4748 = vdwg.mxu0
    %4749 = vmatpush.msra.mxu0 %v890
    %4750 = vmatpush.msra.mxu0 %v889
    %4751 = vmatpush.msra.mxu0 %v888
    %4752 = vmatpush.msra.mxu0 %v887
    %4753 = vmatpush.msra.mxu0 %v886
    %4754 = vmatpush.msra.mxu0 %v885
    %4755 = vmatpush.msra.mxu0 %v884
    %4756 = vmatpush.msra.mxu0 %v883
    %4757 = vmatpush.msra.mxu0 %v882
    %4758 = vmatpush.msra.mxu0 %v881
    %4759 = vmatpush.msra.mxu0 %v880
    %4760 = vmatpush.msra.mxu0 %v879
    %4761 = vmatpush.msra.mxu0 %v878
    %4762 = vmatpush.msra.mxu0 %v877
    %4763 = vmatpush.msra.mxu0 %v876
    %4764 = vmatpush.msra.mxu0 %v875
    %4765 = vmatmul.f32.gmra.mxu0 %v3631
    %v4766 = vpop.f32.mrf.mxu0
    %v4767 = vadd.f32 %v4747, %v4766
    %4768 = vdwg.mxu0
    %4769 = vmatpush.msra.mxu0 %v906
    %4770 = vmatpush.msra.mxu0 %v905
    %4771 = vmatpush.msra.mxu0 %v904
    %4772 = vmatpush.msra.mxu0 %v903
    %4773 = vmatpush.msra.mxu0 %v902
    %4774 = vmatpush.msra.mxu0 %v901
    %4775 = vmatpush.msra.mxu0 %v900
    %4776 = vmatpush.msra.mxu0 %v899
    %4777 = vmatpush.msra.mxu0 %v898
    %4778 = vmatpush.msra.mxu0 %v897
    %4779 = vmatpush.msra.mxu0 %v896
    %4780 = vmatpush.msra.mxu0 %v895
    %4781 = vmatpush.msra.mxu0 %v894
    %4782 = vmatpush.msra.mxu0 %v893
    %4783 = vmatpush.msra.mxu0 %v892
    %4784 = vmatpush.msra.mxu0 %v891
    %4785 = vmatmul.f32.gmra.mxu0 %v3632
    %v4786 = vpop.f32.mrf.mxu0
    %v4787 = vadd.f32 %v4767, %v4786
    %4788 = vdwg.mxu0
    %4789 = vmatpush.msra.mxu0 %v922
    %4790 = vmatpush.msra.mxu0 %v921
    %4791 = vmatpush.msra.mxu0 %v920
    %4792 = vmatpush.msra.mxu0 %v919
    %4793 = vmatpush.msra.mxu0 %v918
    %4794 = vmatpush.msra.mxu0 %v917
    %4795 = vmatpush.msra.mxu0 %v916
    %4796 = vmatpush.msra.mxu0 %v915
    %4797 = vmatpush.msra.mxu0 %v914
    %4798 = vmatpush.msra.mxu0 %v913
    %4799 = vmatpush.msra.mxu0 %v912
    %4800 = vmatpush.msra.mxu0 %v911
    %4801 = vmatpush.msra.mxu0 %v910
    %4802 = vmatpush.msra.mxu0 %v909
    %4803 = vmatpush.msra.mxu0 %v908
    %4804 = vmatpush.msra.mxu0 %v907
    %4805 = vmatmul.f32.gmra.mxu0 %v3633
    %v4806 = vpop.f32.mrf.mxu0
    %v4807 = vadd.f32 %v4787, %v4806
    %4808 = vdwg.mxu0
    %4809 = vmatpush.msra.mxu0 %v938
    %4810 = vmatpush.msra.mxu0 %v937
    %4811 = vmatpush.msra.mxu0 %v936
    %4812 = vmatpush.msra.mxu0 %v935
    %4813 = vmatpush.msra.mxu0 %v934
    %4814 = vmatpush.msra.mxu0 %v933
    %4815 = vmatpush.msra.mxu0 %v932
    %4816 = vmatpush.msra.mxu0 %v931
    %4817 = vmatpush.msra.mxu0 %v930
    %4818 = vmatpush.msra.mxu0 %v929
    %4819 = vmatpush.msra.mxu0 %v928
    %4820 = vmatpush.msra.mxu0 %v927
    %4821 = vmatpush.msra.mxu0 %v926
    %4822 = vmatpush.msra.mxu0 %v925
    %4823 = vmatpush.msra.mxu0 %v924
    %4824 = vmatpush.msra.mxu0 %v923
    %4825 = vmatmul.f32.gmra.mxu0 %v3634
    %v4826 = vpop.f32.mrf.mxu0
    %v4827 = vadd.f32 %v4807, %v4826
    %4828 = vdwg.mxu0
    %4829 = vmatpush.msra.mxu0 %v954
    %4830 = vmatpush.msra.mxu0 %v953
    %4831 = vmatpush.msra.mxu0 %v952
    %4832 = vmatpush.msra.mxu0 %v951
    %4833 = vmatpush.msra.mxu0 %v950
    %4834 = vmatpush.msra.mxu0 %v949
    %4835 = vmatpush.msra.mxu0 %v948
    %4836 = vmatpush.msra.mxu0 %v947
    %4837 = vmatpush.msra.mxu0 %v946
    %4838 = vmatpush.msra.mxu0 %v945
    %4839 = vmatpush.msra.mxu0 %v944
    %4840 = vmatpush.msra.mxu0 %v943
    %4841 = vmatpush.msra.mxu0 %v942
    %4842 = vmatpush.msra.mxu0 %v941
    %4843 = vmatpush.msra.mxu0 %v940
    %4844 = vmatpush.msra.mxu0 %v939
    %4845 = vmatmul.f32.gmra.mxu0 %v3637
    %v4846 = vpop.f32.mrf.mxu0
    %v4847 = vadd.f32 %v4827, %v4846
    %4848 = vdwg.mxu0
    %4849 = vmatpush.msra.mxu0 %v970
    %4850 = vmatpush.msra.mxu0 %v969
    %4851 = vmatpush.msra.mxu0 %v968
    %4852 = vmatpush.msra.mxu0 %v967
    %4853 = vmatpush.msra.mxu0 %v966
    %4854 = vmatpush.msra.mxu0 %v965
    %4855 = vmatpush.msra.mxu0 %v964
    %4856 = vmatpush.msra.mxu0 %v963
    %4857 = vmatpush.msra.mxu0 %v962
    %4858 = vmatpush.msra.mxu0 %v961
    %4859 = vmatpush.msra.mxu0 %v960
    %4860 = vmatpush.msra.mxu0 %v959
    %4861 = vmatpush.msra.mxu0 %v958
    %4862 = vmatpush.msra.mxu0 %v957
    %4863 = vmatpush.msra.mxu0 %v956
    %4864 = vmatpush.msra.mxu0 %v955
    %4865 = vmatmul.f32.gmra.mxu0 %v3638
    %v4866 = vpop.f32.mrf.mxu0
    %v4867 = vadd.f32 %v4847, %v4866
    %4868 = vdwg.mxu0
    %4869 = vmatpush.msra.mxu0 %v986
    %4870 = vmatpush.msra.mxu0 %v985
    %4871 = vmatpush.msra.mxu0 %v984
    %4872 = vmatpush.msra.mxu0 %v983
    %4873 = vmatpush.msra.mxu0 %v982
    %4874 = vmatpush.msra.mxu0 %v981
    %4875 = vmatpush.msra.mxu0 %v980
    %4876 = vmatpush.msra.mxu0 %v979
    %4877 = vmatpush.msra.mxu0 %v978
    %4878 = vmatpush.msra.mxu0 %v977
    %4879 = vmatpush.msra.mxu0 %v976
    %4880 = vmatpush.msra.mxu0 %v975
    %4881 = vmatpush.msra.mxu0 %v974
    %4882 = vmatpush.msra.mxu0 %v973
    %4883 = vmatpush.msra.mxu0 %v972
    %4884 = vmatpush.msra.mxu0 %v971
    %4885 = vmatmul.f32.gmra.mxu0 %v3639
    %v4886 = vpop.f32.mrf.mxu0
    %v4887 = vadd.f32 %v4867, %v4886
    %4888 = vdwg.mxu0
    %4889 = vmatpush.msra.mxu0 %v1002
    %4890 = vmatpush.msra.mxu0 %v1001
    %4891 = vmatpush.msra.mxu0 %v1000
    %4892 = vmatpush.msra.mxu0 %v999
    %4893 = vmatpush.msra.mxu0 %v998
    %4894 = vmatpush.msra.mxu0 %v997
    %4895 = vmatpush.msra.mxu0 %v996
    %4896 = vmatpush.msra.mxu0 %v995
    %4897 = vmatpush.msra.mxu0 %v994
    %4898 = vmatpush.msra.mxu0 %v993
    %4899 = vmatpush.msra.mxu0 %v992
    %4900 = vmatpush.msra.mxu0 %v991
    %4901 = vmatpush.msra.mxu0 %v990
    %4902 = vmatpush.msra.mxu0 %v989
    %4903 = vmatpush.msra.mxu0 %v988
    %4904 = vmatpush.msra.mxu0 %v987
    %4905 = vmatmul.f32.gmra.mxu0 %v3640
    %v4906 = vpop.f32.mrf.mxu0
    %v4907 = vadd.f32 %v4887, %v4906
    %4908 = vdwg.mxu0
    %4909 = vmatpush.msra.mxu0 %v1018
    %4910 = vmatpush.msra.mxu0 %v1017
    %4911 = vmatpush.msra.mxu0 %v1016
    %4912 = vmatpush.msra.mxu0 %v1015
    %4913 = vmatpush.msra.mxu0 %v1014
    %4914 = vmatpush.msra.mxu0 %v1013
    %4915 = vmatpush.msra.mxu0 %v1012
    %4916 = vmatpush.msra.mxu0 %v1011
    %4917 = vmatpush.msra.mxu0 %v1010
    %4918 = vmatpush.msra.mxu0 %v1009
    %4919 = vmatpush.msra.mxu0 %v1008
    %4920 = vmatpush.msra.mxu0 %v1007
    %4921 = vmatpush.msra.mxu0 %v1006
    %4922 = vmatpush.msra.mxu0 %v1005
    %4923 = vmatpush.msra.mxu0 %v1004
    %4924 = vmatpush.msra.mxu0 %v1003
    %4925 = vmatmul.f32.gmra.mxu0 %v3641
    %v4926 = vpop.f32.mrf.mxu0
    %v4927 = vadd.f32 %v4907, %v4926
    %4928 = vdwg.mxu0
    %4929 = vmatpush.msra.mxu0 %v1034
    %4930 = vmatpush.msra.mxu0 %v1033
    %4931 = vmatpush.msra.mxu0 %v1032
    %4932 = vmatpush.msra.mxu0 %v1031
    %4933 = vmatpush.msra.mxu0 %v1030
    %4934 = vmatpush.msra.mxu0 %v1029
    %4935 = vmatpush.msra.mxu0 %v1028
    %4936 = vmatpush.msra.mxu0 %v1027
    %4937 = vmatpush.msra.mxu0 %v1026
    %4938 = vmatpush.msra.mxu0 %v1025
    %4939 = vmatpush.msra.mxu0 %v1024
    %4940 = vmatpush.msra.mxu0 %v1023
    %4941 = vmatpush.msra.mxu0 %v1022
    %4942 = vmatpush.msra.mxu0 %v1021
    %4943 = vmatpush.msra.mxu0 %v1020
    %4944 = vmatpush.msra.mxu0 %v1019
    %4945 = vmatmul.f32.gmra.mxu0 %v3642
    %v4946 = vpop.f32.mrf.mxu0
    %v4947 = vadd.f32 %v4927, %v4946
    %4948 = vdwg.mxu0
    %4949 = vmatpush.msra.mxu0 %v1050
    %4950 = vmatpush.msra.mxu0 %v1049
    %4951 = vmatpush.msra.mxu0 %v1048
    %4952 = vmatpush.msra.mxu0 %v1047
    %4953 = vmatpush.msra.mxu0 %v1046
    %4954 = vmatpush.msra.mxu0 %v1045
    %4955 = vmatpush.msra.mxu0 %v1044
    %4956 = vmatpush.msra.mxu0 %v1043
    %4957 = vmatpush.msra.mxu0 %v1042
    %4958 = vmatpush.msra.mxu0 %v1041
    %4959 = vmatpush.msra.mxu0 %v1040
    %4960 = vmatpush.msra.mxu0 %v1039
    %4961 = vmatpush.msra.mxu0 %v1038
    %4962 = vmatpush.msra.mxu0 %v1037
    %4963 = vmatpush.msra.mxu0 %v1036
    %4964 = vmatpush.msra.mxu0 %v1035
    %4965 = vmatmul.f32.gmra.mxu0 %v3643
    %v4966 = vpop.f32.mrf.mxu0
    %v4967 = vadd.f32 %v4947, %v4966
    %4968 = vdwg.mxu0
    %4969 = vmatpush.msra.mxu0 %v1066
    %4970 = vmatpush.msra.mxu0 %v1065
    %4971 = vmatpush.msra.mxu0 %v1064
    %4972 = vmatpush.msra.mxu0 %v1063
    %4973 = vmatpush.msra.mxu0 %v1062
    %4974 = vmatpush.msra.mxu0 %v1061
    %4975 = vmatpush.msra.mxu0 %v1060
    %4976 = vmatpush.msra.mxu0 %v1059
    %4977 = vmatpush.msra.mxu0 %v1058
    %4978 = vmatpush.msra.mxu0 %v1057
    %4979 = vmatpush.msra.mxu0 %v1056
    %4980 = vmatpush.msra.mxu0 %v1055
    %4981 = vmatpush.msra.mxu0 %v1054
    %4982 = vmatpush.msra.mxu0 %v1053
    %4983 = vmatpush.msra.mxu0 %v1052
    %4984 = vmatpush.msra.mxu0 %v1051
    %4985 = vmatmul.f32.gmra.mxu0 %v3644
    %v4986 = vpop.f32.mrf.mxu0
    %v4987 = vadd.f32 %v4967, %v4986
    %4988 = vdwg.mxu0
    %v4989 = vld [vmem:[%s4] sm:$0x1]
    %v4991 = vperm.slane %v4989, 0
    %v4993 = vadd.f32 %v4987, %v4991
    %v4994 = vmax.f32 %v4993, 0.0
    %v4995 = vld [vmem:[%s5] sm:$0xff]
    %v4996 = vld [vmem:[%s5 + $0x8] sm:$0xff]
    %v4997 = vld [vmem:[%s5 + $0x10] sm:$0xff]
    %v4998 = vld [vmem:[%s5 + $0x18] sm:$0xff]
    %v4999 = vld [vmem:[%s6] sm:$0x1]
    %v5001 = vperm.slane %v4999, 0
    %vm5003 = vcmask 261120
    %v5005 = vsel %vm5003, %v4994, 0
    %5007 = vmatpush.msra.mxu0 0.0
    %5008 = vmatpush.msra.mxu0 0.0
    %5009 = vmatpush.msra.mxu0 0.0
    %5010 = vmatpush.msra.mxu0 0.0
    %5011 = vmatpush.msra.mxu0 0.0
    %5012 = vmatpush.msra.mxu0 0.0
    %5013 = vmatpush.msra.mxu0 0.0
    %5014 = vmatpush.msra.mxu0 0.0
    %5015 = vmatpush.msra.mxu0 0.0
    %5016 = vmatpush.msra.mxu0 0.0
    %5017 = vmatpush.msra.mxu0 0.0
    %5018 = vmatpush.msra.mxu0 0.0
    %5019 = vmatpush.msra.mxu0 %v4998
    %5020 = vmatpush.msra.mxu0 %v4997
    %5021 = vmatpush.msra.mxu0 %v4996
    %5022 = vmatpush.msra.mxu0 %v4995
    %5023 = vmatmul.f32.gmra.mxu0 %v5005
    %v5024 = vpop.f32.mrf.mxu0
    %v5025 = vadd.f32 %v5001, %v5024
    %5026 = vdwg.mxu0
    %vm5027 = vcmask 9216
    %5028 = vst.msk [vmem:[#allocation2] sm:$0x3] %vm5027, %v5025
    // Predicated region
    $region30: #{match_net_forward.1} parent=1 // pred_check
      _
    $region31: #{match_net_forward.1} parent=1 // pred_check_branch
      %5030 = sbr.rel (0) target = $region33
    $region32: #{match_net_forward.1} parent=1 // pred_region
      %5032 = vsyncadd [#allocation3], 0
      %s5034 = sshll.u32 [#allocation2], 4
      %s5035 = int_to_ptr.vmem [resolvable:$true] %s5034
      %s5036 = sshll.u32 %s7, 4
      %s5037 = int_to_ptr.hbm [resolvable:$true] %s5036
      %5039 = dma.vmem_to_hbm [thread:$0]  %s5035, 32, %s5037, [#allocation3]
    $region33: #{match_net_forward.1} parent=1 // pred_fallthru
      _
    // Predicated region
    $region34: #{match_net_forward.1} parent=1 // pred_check
      _
    $region35: #{match_net_forward.1} parent=1 // pred_check_branch
      %5041 = sbr.rel (0) target = $region37
    $region36: #{match_net_forward.1} parent=1 // pred_region
      %5043 = dma.done [#allocation3], 32
    $region37: #{match_net_forward.1} parent=1 // pred_fallthru
      _
    %5044 = vsyncpa [#allocation3], 1

</llo_original>
